<compile_context>
chip_gen: v7x
topology: tpu7x:2x2x1
jax: 0.10.0
libtpu: 0.0.40
codegen_flags: <defaults>
</compile_context>

<pallas_src>
import functools

import jax
import jax.numpy as jnp
import numpy as np
from jax.experimental import pallas as pl
from jax.experimental.pallas import tpu as pltpu

EPS = 1e-5
LANE = 128
_VMEM_LIMIT_BYTES = 32 * 1024 * 1024

_VMEM = pl.BlockSpec(memory_space=pltpu.MemorySpace.VMEM)


def _padded(n, lane=LANE):
    return ((n + lane - 1) // lane) * lane


# ----------------------------------------------------------------------------
# Fused kernel
# ----------------------------------------------------------------------------
def _bn_relu_train(h, gamma, beta):
    """Training-mode BatchNorm1d folded into one FMA, then ReLU.

    The preceding Linear's bias is intentionally dropped upstream: it cancels
    exactly in (h - mean) and does not affect the variance.  Padded feature
    columns carry h == 0 and gamma == beta == 0, so they stay exactly 0.
    """
    mean = jnp.mean(h, axis=0, keepdims=True)
    centered = h - mean
    var = jnp.mean(centered * centered, axis=0, keepdims=True)
    scale = jax.lax.rsqrt(var + EPS) * gamma
    shift = beta - mean * scale
    return jnp.maximum(h * scale + shift, 0.0)


def _fused_forward_kernel(
        x_ref, y_ref, eps_ref,
        enc_w1, enc_bn, enc_w2, enc_w3m, enc_b3m, enc_w3l, enc_b3l,
        cond_w1, cond_bn, cond_w2, cond_w3, cond_b3,
        cpl_w1x, cpl_w1c, cpl_bn, cpl_w2, cpl_w3, cpl_b3,
        dec_w, dec_b,
        xr_ref, mu_ref, lv_ref):
    mm_dtype = enc_w1.dtype   # weights are pre-cast; activations follow them

    def dot(a, w):
        return jnp.dot(a.astype(mm_dtype), w, preferred_element_type=jnp.float32)

    # ---- Encoder: Linear-BN-ReLU-Linear-BN-ReLU-Linear, chunk(mu, logvar) ----
    ebn = enc_bn[...]
    h = _bn_relu_train(dot(x_ref[...], enc_w1[...]), ebn[0:1], ebn[1:2])
    h = _bn_relu_train(dot(h, enc_w2[...]), ebn[2:3], ebn[3:4])
    mu = dot(h, enc_w3m[...]) + enc_b3m[...]
    lv = dot(h, enc_w3l[...]) + enc_b3l[...]

    # ---- Reparameterize (eps supplied from the host) ----
    z = mu + eps_ref[...] * jnp.exp(0.5 * lv)

    # ---- Conditional net ----
    cbn = cond_bn[...]
    hc = _bn_relu_train(dot(y_ref[...], cond_w1[...]), cbn[0:1], cbn[1:2])
    hc = _bn_relu_train(dot(hc, cond_w2[...]), cbn[2:3], cbn[3:4])
    c = dot(hc, cond_w3[...]) + cond_b3[...]

    # ---- Reverse CINN: z2 <- z2 - t(z1, c) per layer, layers reversed ----
    # W1x has zero rows for the x2/padding lanes (so z @ W1x == x1 @ W1x_real);
    # W3/b3 place their real columns on the x2 lanes (so z - t only moves x2).
    num_layers = cpl_w1x.shape[0]
    for l in reversed(range(num_layers)):
        bn = cpl_bn[l]
        hk = dot(z, cpl_w1x[l]) + dot(c, cpl_w1c[l])
        hk = _bn_relu_train(hk, bn[0:1], bn[1:2])
        hk = _bn_relu_train(dot(hk, cpl_w2[l]), bn[2:3], bn[3:4])
        t = dot(hk, cpl_w3[l]) + cpl_b3[l]
        z = z - t

    # ---- Decoder ----
    xr = dot(z, dec_w[...]) + dec_b[...]

    xr_ref[...] = xr.astype(xr_ref.dtype)
    mu_ref[...] = mu.astype(mu_ref.dtype)
    lv_ref[...] = lv.astype(lv_ref.dtype)


def _fused_cost(batch, pos_p, mom_p, hid_p, lat_p, cond_p, num_layers, operands):
    flops = 2 * batch * (
        pos_p * hid_p + hid_p * hid_p + 2 * hid_p * lat_p            # encoder
        + mom_p * hid_p + hid_p * hid_p + hid_p * cond_p             # conditional
        + num_layers * (lat_p * hid_p + cond_p * hid_p
                        + hid_p * hid_p + hid_p * lat_p)             # coupling
        + lat_p * pos_p)                                             # decoder
    transcendentals = (4 + 2 * num_layers) * hid_p + batch * lat_p
    in_bytes = sum(int(np.prod(a.shape)) * jnp.dtype(a.dtype).itemsize
                   for a in operands)
    out_bytes = 4 * batch * (pos_p + 2 * lat_p)
    return pl.CostEstimate(flops=int(flops), transcendentals=int(transcendentals),
                           bytes_accessed=int(in_bytes + out_bytes))


@jax.jit
def atomic_reconstruction_forward(x, y, eps, prep):
    """Full AtomicReconstructionModel.forward -> (x_recon, mu, logvar)."""
    batch, pos = x.shape
    mom = y.shape[1]
    lat = eps.shape[1]

    pos_p = prep["enc_w1"].shape[0]
    hid_p = prep["enc_w1"].shape[1]
    mom_p = prep["cond_w1"].shape[0]
    cond_p = prep["cond_w3"].shape[1]
    lat_p = prep["dec_w"].shape[0]
    num_layers = prep["cpl_w1x"].shape[0]

    x_p = jnp.pad(x, ((0, 0), (0, pos_p - pos)))
    y_p = jnp.pad(y, ((0, 0), (0, mom_p - mom)))
    eps_p = jnp.pad(eps, ((0, 0), (0, lat_p - lat)))

    operands = (
        x_p, y_p, eps_p,
        prep["enc_w1"], prep["enc_bn"], prep["enc_w2"],
        prep["enc_w3m"], prep["enc_b3m"], prep["enc_w3l"], prep["enc_b3l"],
        prep["cond_w1"], prep["cond_bn"], prep["cond_w2"],
        prep["cond_w3"], prep["cond_b3"],
        prep["cpl_w1x"], prep["cpl_w1c"], prep["cpl_bn"],
        prep["cpl_w2"], prep["cpl_w3"], prep["cpl_b3"],
        prep["dec_w"], prep["dec_b"],
    )

    out_shape = (jax.ShapeDtypeStruct((batch, pos_p), x.dtype),
                 jax.ShapeDtypeStruct((batch, lat_p), x.dtype),
                 jax.ShapeDtypeStruct((batch, lat_p), x.dtype))

    xr_p, mu_p, lv_p = pl.pallas_call(
        _fused_forward_kernel,
        out_shape=out_shape,
        in_specs=[_VMEM] * len(operands),
        out_specs=(_VMEM, _VMEM, _VMEM),
        compiler_params=pltpu.CompilerParams(vmem_limit_bytes=_VMEM_LIMIT_BYTES),
        cost_estimate=_fused_cost(batch, pos_p, mom_p, hid_p, lat_p, cond_p,
                                  num_layers, operands),
    )(*operands)

    return xr_p[:, :pos], mu_p[:, :lat], lv_p[:, :lat]


# ----------------------------------------------------------------------------
# Parameter init (PyTorch nn.Linear / nn.BatchNorm1d defaults) + padding prep
# ----------------------------------------------------------------------------
def _init_linear(key, fan_in, fan_out):
    kw, kb = jax.random.split(key)
    bound = 1.0 / np.sqrt(fan_in)
    w = jax.random.uniform(kw, (fan_in, fan_out), jnp.float32, -bound, bound)
    b = jax.random.uniform(kb, (1, fan_out), jnp.float32, -bound, bound)
    return w, b


def _init_mlp3(key, in_dim, hidden, out_dim):
    k1, k2, k3 = jax.random.split(key, 3)
    w1, b1 = _init_linear(k1, in_dim, hidden)
    w2, b2 = _init_linear(k2, hidden, hidden)
    w3, b3 = _init_linear(k3, hidden, out_dim)
    bn = jnp.concatenate([jnp.ones((1, hidden), jnp.float32),    # gamma1
                          jnp.zeros((1, hidden), jnp.float32),   # beta1
                          jnp.ones((1, hidden), jnp.float32),    # gamma2
                          jnp.zeros((1, hidden), jnp.float32)],  # beta2
                         axis=0)
    # b1/b2 feed only the pure-JAX reference; the kernel drops them (exact
    # no-ops under training-mode BatchNorm).
    return {"w1": w1, "b1": b1, "w2": w2, "b2": b2, "w3": w3, "b3": b3, "bn": bn}


def init_params(key, config):
    kenc, kcond, kdec, kcinn = jax.random.split(key, 4)
    encoder = _init_mlp3(kenc, config["position_dim"], config["hidden_dim"],
                         2 * config["latent_dim"])
    conditional = _init_mlp3(kcond, config["momenta_dim"], config["hidden_dim"],
                             config["conditional_dim"])
    half = config["latent_dim"] // 2
    cinn = [_init_mlp3(k, half + config["conditional_dim"],
                       config["hidden_dim"], half)
            for k in jax.random.split(kcinn, config["num_coupling_layers"])]
    dec_w, dec_b = _init_linear(kdec, config["latent_dim"],
                                config["position_dim"])
    return {"encoder": encoder, "conditional": conditional, "cinn": cinn,
            "dec_w": dec_w, "dec_b": dec_b}


def prepare_params(params, config, mm_dtype=jnp.bfloat16):
    """Pad / split / stack / pre-cast weights ONCE (call outside jit)."""
    pos, mom = config["position_dim"], config["momenta_dim"]
    hid, lat, cond = (config["hidden_dim"], config["latent_dim"],
                      config["conditional_dim"])
    half = lat // 2
    pos_p, mom_p, hid_p = _padded(pos), _padded(mom), _padded(hid)
    lat_p, cond_p = _padded(lat), _padded(cond)

    def pad_w(w, rows, cols, row_off=0, col_off=0):
        out = jnp.zeros((rows, cols), mm_dtype)
        return out.at[row_off:row_off + w.shape[0],
                      col_off:col_off + w.shape[1]].set(w.astype(mm_dtype))

    def pad_row(v, cols, col_off=0):          # biases / BN params stay f32
        out = jnp.zeros((1, cols), jnp.float32)
        return out.at[:, col_off:col_off + v.shape[1]].set(v)

    def pad_bn(bn, cols):                     # padded gamma/beta == 0
        out = jnp.zeros((4, cols), jnp.float32)
        return out.at[:, :bn.shape[1]].set(bn)

    enc, cn = params["encoder"], params["conditional"]
    prep = {
        "enc_w1": pad_w(enc["w1"], pos_p, hid_p),
        "enc_bn": pad_bn(enc["bn"], hid_p),
        "enc_w2": pad_w(enc["w2"], hid_p, hid_p),
        "enc_w3m": pad_w(enc["w3"][:, :lat], hid_p, lat_p),
        "enc_b3m": pad_row(enc["b3"][:, :lat], lat_p),
        "enc_w3l": pad_w(enc["w3"][:, lat:], hid_p, lat_p),
        "enc_b3l": pad_row(enc["b3"][:, lat:], lat_p),
        "cond_w1": pad_w(cn["w1"], mom_p, hid_p),
        "cond_bn": pad_bn(cn["bn"], hid_p),
        "cond_w2": pad_w(cn["w2"], hid_p, hid_p),
        "cond_w3": pad_w(cn["w3"], hid_p, cond_p),
        "cond_b3": pad_row(cn["b3"], cond_p),
        "dec_w": pad_w(params["dec_w"], lat_p, pos_p),
        "dec_b": pad_row(params["dec_b"], pos_p),
    }

    w1x, w1c, bns, w2s, w3s, b3s = [], [], [], [], [], []
    for p in params["cinn"]:
        # First Linear pre-split: rows [0:half] act on x1, rows [half:] on c.
        w1x.append(pad_w(p["w1"][:half], lat_p, hid_p))
        w1c.append(pad_w(p["w1"][half:], cond_p, hid_p))
        bns.append(pad_bn(p["bn"], hid_p))
        w2s.append(pad_w(p["w2"], hid_p, hid_p))
        # Last Linear pre-shifted: real columns land on the x2 lanes [half:lat].
        w3s.append(pad_w(p["w3"], hid_p, lat_p, col_off=half))
        b3s.append(pad_row(p["b3"], lat_p, col_off=half))
    prep["cpl_w1x"] = jnp.stack(w1x)
    prep["cpl_w1c"] = jnp.stack(w1c)
    prep["cpl_bn"] = jnp.stack(bns)
    prep["cpl_w2"] = jnp.stack(w2s)
    prep["cpl_w3"] = jnp.stack(w3s)
    prep["cpl_b3"] = jnp.stack(b3s)
    return prep


# ----------------------------------------------------------------------------
# Pure-JAX reference (PyTorch semantics: training-mode BN, Linear biases kept)
# ----------------------------------------------------------------------------
def _ref_dot(a, b, mm_dtype):
    return jnp.dot(a.astype(mm_dtype), b.astype(mm_dtype),
                   preferred_element_type=jnp.float32)


def _ref_mlp3(x, p, mm_dtype):
    def bn_relu(h, g, be):
        mean = jnp.mean(h, axis=0, keepdims=True)
        var = jnp.mean((h - mean) ** 2, axis=0, keepdims=True)
        return jnp.maximum((h - mean) * jax.lax.rsqrt(var + EPS) * g + be, 0.0)

    h = _ref_dot(x, p["w1"], mm_dtype) + p["b1"]
    h = bn_relu(h, p["bn"][0:1], p["bn"][1:2])
    h = _ref_dot(h, p["w2"], mm_dtype) + p["b2"]
    h = bn_relu(h, p["bn"][2:3], p["bn"][3:4])
    return _ref_dot(h, p["w3"], mm_dtype) + p["b3"]


def atomic_reconstruction_reference(x, y, eps, params, mm_dtype=jnp.float32):
    stats = _ref_mlp3(x, params["encoder"], mm_dtype)
    latent = stats.shape[1] // 2
    mu, logvar = stats[:, :latent], stats[:, latent:]
    z = mu + eps * jnp.exp(0.5 * logvar)
    c = _ref_mlp3(y, params["conditional"], mm_dtype)
    half = latent // 2
    for p in reversed(params["cinn"]):                 # cinn(..., reverse=True)
        x1, x2 = z[:, :half], z[:, half:]
        t = _ref_mlp3(jnp.concatenate([x1, c], axis=1), p, mm_dtype)
        z = jnp.concatenate([x1, x2 - t], axis=1)
    x_recon = _ref_dot(z, params["dec_w"], mm_dtype) + params["dec_b"]
    return x_recon, mu, logvar


# ----------------------------------------------------------------------------
if __name__ == "__main__":
    config = dict(position_dim=16, momenta_dim=12, hidden_dim=32,
                  latent_dim=8, conditional_dim=6, num_coupling_layers=3)
    batch = 8  # multiple of the f32 sublane pack; BN stats are full-batch

    key = jax.random.PRNGKey(0)
    kx, ky, keps, kp = jax.random.split(key, 4)
    x = jax.random.normal(kx, (batch, config["position_dim"]), jnp.float32)
    y = jax.random.normal(ky, (batch, config["momenta_dim"]), jnp.float32)
    # torch.randn_like(std) has no deterministic Pallas counterpart; eps is
    # drawn once here and fed to the fused reparameterization in the kernel.
    eps = jax.random.normal(keps, (batch, config["latent_dim"]), jnp.float32)
    params = init_params(kp, config)

    # bf16-MXU path (v6e/v7x production default).  Reference uses the same
    # bf16-input / f32-accumulate matmul convention for comparison.
    prep_bf16 = prepare_params(params, config, mm_dtype=jnp.bfloat16)
    x_recon, mu, logvar = jax.block_until_ready(
        atomic_reconstruction_forward(x, y, eps, prep_bf16))
    ref_recon, ref_mu, ref_logvar = atomic_reconstruction_reference(
        x, y, eps, params, mm_dtype=jnp.bfloat16)
    np.testing.assert_allclose(np.asarray(mu), np.asarray(ref_mu),
                               rtol=2e-2, atol=2e-2)
    np.testing.assert_allclose(np.asarray(logvar), np.asarray(ref_logvar),
                               rtol=2e-2, atol=2e-2)
    np.testing.assert_allclose(np.asarray(x_recon), np.asarray(ref_recon),
                               rtol=2e-2, atol=2e-2)

    # Full-f32 path (v5e-friendly escape hatch): compare against f32 reference.
    prep_f32 = prepare_params(params, config, mm_dtype=jnp.float32)
    x32, mu32, lv32 = jax.block_until_ready(
        atomic_reconstruction_forward(x, y, eps, prep_f32))
    r32, rmu32, rlv32 = atomic_reconstruction_reference(
        x, y, eps, params, mm_dtype=jnp.float32)
    np.testing.assert_allclose(np.asarray(mu32), np.asarray(rmu32),
                               rtol=1e-4, atol=1e-4)
    np.testing.assert_allclose(np.asarray(lv32), np.asarray(rlv32),
                               rtol=1e-4, atol=1e-4)
    np.testing.assert_allclose(np.asarray(x32), np.asarray(r32),
                               rtol=1e-4, atol=1e-4)

    print("KERNEL_OK")
</pallas_src>

<mosaic_0001>
module attributes {stable_mosaic.version = 11 : i64} {
  func.func @_fused_forward_kernel(%arg0: memref<8x128xf32, #tpu.memory_space<vmem>>, %arg1: memref<8x128xf32, #tpu.memory_space<vmem>>, %arg2: memref<8x128xf32, #tpu.memory_space<vmem>>, %arg3: memref<128x128xbf16, #tpu.memory_space<vmem>>, %arg4: memref<4x128xf32, #tpu.memory_space<vmem>>, %arg5: memref<128x128xbf16, #tpu.memory_space<vmem>>, %arg6: memref<128x128xbf16, #tpu.memory_space<vmem>>, %arg7: memref<1x128xf32, #tpu.memory_space<vmem>>, %arg8: memref<128x128xbf16, #tpu.memory_space<vmem>>, %arg9: memref<1x128xf32, #tpu.memory_space<vmem>>, %arg10: memref<128x128xbf16, #tpu.memory_space<vmem>>, %arg11: memref<4x128xf32, #tpu.memory_space<vmem>>, %arg12: memref<128x128xbf16, #tpu.memory_space<vmem>>, %arg13: memref<128x128xbf16, #tpu.memory_space<vmem>>, %arg14: memref<1x128xf32, #tpu.memory_space<vmem>>, %arg15: memref<3x128x128xbf16, #tpu.memory_space<vmem>>, %arg16: memref<3x128x128xbf16, #tpu.memory_space<vmem>>, %arg17: memref<3x4x128xf32, #tpu.memory_space<vmem>>, %arg18: memref<3x128x128xbf16, #tpu.memory_space<vmem>>, %arg19: memref<3x128x128xbf16, #tpu.memory_space<vmem>>, %arg20: memref<3x1x128xf32, #tpu.memory_space<vmem>>, %arg21: memref<128x128xbf16, #tpu.memory_space<vmem>>, %arg22: memref<1x128xf32, #tpu.memory_space<vmem>>, %arg23: memref<8x128xf32, #tpu.memory_space<vmem>>, %arg24: memref<8x128xf32, #tpu.memory_space<vmem>>, %arg25: memref<8x128xf32, #tpu.memory_space<vmem>>) attributes {dimension_semantics = [], scalar_prefetch = 0 : i64, scratch_operands = 0 : i64, tpu.core_type = #tpu.core_type<tc>} {
    %c0 = arith.constant 0 : index
    %c0_0 = arith.constant 0 : index
    %0 = vector.load %arg4[%c0, %c0_0] : memref<4x128xf32, #tpu.memory_space<vmem>>, vector<4x128xf32>
    %c0_1 = arith.constant 0 : index
    %c0_2 = arith.constant 0 : index
    %1 = vector.load %arg0[%c0_1, %c0_2] : memref<8x128xf32, #tpu.memory_space<vmem>>, vector<8x128xf32>
    %c0_3 = arith.constant 0 : index
    %c0_4 = arith.constant 0 : index
    %2 = vector.load %arg3[%c0_3, %c0_4] : memref<128x128xbf16, #tpu.memory_space<vmem>>, vector<128x128xbf16>
    %3 = arith.truncf %1 : vector<8x128xf32> to vector<8x128xbf16>
    %cst = arith.constant dense<0.000000e+00> : vector<8x128xf32>
    %4 = tpu.matmul %3, %2, %cst {dimension_numbers = #tpu.dot_dimension_numbers<[1], [0], [0], [1], [0, 0, 1, 1], [], []>} : vector<8x128xbf16>, vector<128x128xbf16>, vector<8x128xf32> -> vector<8x128xf32>
    %5 = vector.extract_strided_slice %0 {offsets = [0, 0], sizes = [1, 128], strides = [1, 1]} : vector<4x128xf32> to vector<1x128xf32>
    %6 = vector.extract_strided_slice %0 {offsets = [1, 0], sizes = [1, 128], strides = [1, 1]} : vector<4x128xf32> to vector<1x128xf32>
    %cst_5 = arith.constant dense<0.000000e+00> : vector<128xf32>
    %7 = vector.multi_reduction <add>, %4, %cst_5 [0] : vector<8x128xf32> to vector<128xf32>
    %8 = vector.shape_cast %7 : vector<128xf32> to vector<1x128xf32>
    %cst_6 = arith.constant 8.000000e+00 : f32
    %9 = vector.broadcast %cst_6 : f32 to vector<1x128xf32>
    %10 = arith.divf %8, %9 : vector<1x128xf32>
    %11 = vector.broadcast %10 : vector<1x128xf32> to vector<8x128xf32>
    %12 = arith.subf %4, %11 : vector<8x128xf32>
    %13 = arith.mulf %12, %12 : vector<8x128xf32>
    %cst_7 = arith.constant dense<0.000000e+00> : vector<128xf32>
    %14 = vector.multi_reduction <add>, %13, %cst_7 [0] : vector<8x128xf32> to vector<128xf32>
    %15 = vector.shape_cast %14 : vector<128xf32> to vector<1x128xf32>
    %cst_8 = arith.constant 8.000000e+00 : f32
    %16 = vector.broadcast %cst_8 : f32 to vector<1x128xf32>
    %17 = arith.divf %15, %16 : vector<1x128xf32>
    %cst_9 = arith.constant 9.99999974E-6 : f32
    %18 = vector.broadcast %cst_9 : f32 to vector<1x128xf32>
    %19 = arith.addf %17, %18 : vector<1x128xf32>
    %20 = math.rsqrt %19 : vector<1x128xf32>
    %21 = arith.mulf %20, %5 : vector<1x128xf32>
    %22 = arith.mulf %10, %21 : vector<1x128xf32>
    %23 = arith.subf %6, %22 : vector<1x128xf32>
    %24 = vector.broadcast %21 : vector<1x128xf32> to vector<8x128xf32>
    %25 = arith.mulf %4, %24 : vector<8x128xf32>
    %26 = vector.broadcast %23 : vector<1x128xf32> to vector<8x128xf32>
    %27 = arith.addf %25, %26 : vector<8x128xf32>
    %cst_10 = arith.constant 0.000000e+00 : f32
    %28 = vector.broadcast %cst_10 : f32 to vector<8x128xf32>
    %29 = arith.maximumf %27, %28 : vector<8x128xf32>
    %c0_11 = arith.constant 0 : index
    %c0_12 = arith.constant 0 : index
    %30 = vector.load %arg5[%c0_11, %c0_12] : memref<128x128xbf16, #tpu.memory_space<vmem>>, vector<128x128xbf16>
    %31 = arith.truncf %29 : vector<8x128xf32> to vector<8x128xbf16>
    %cst_13 = arith.constant dense<0.000000e+00> : vector<8x128xf32>
    %32 = tpu.matmul %31, %30, %cst_13 {dimension_numbers = #tpu.dot_dimension_numbers<[1], [0], [0], [1], [0, 0, 1, 1], [], []>} : vector<8x128xbf16>, vector<128x128xbf16>, vector<8x128xf32> -> vector<8x128xf32>
    %33 = vector.extract_strided_slice %0 {offsets = [2, 0], sizes = [1, 128], strides = [1, 1]} : vector<4x128xf32> to vector<1x128xf32>
    %34 = vector.extract_strided_slice %0 {offsets = [3, 0], sizes = [1, 128], strides = [1, 1]} : vector<4x128xf32> to vector<1x128xf32>
    %cst_14 = arith.constant dense<0.000000e+00> : vector<128xf32>
    %35 = vector.multi_reduction <add>, %32, %cst_14 [0] : vector<8x128xf32> to vector<128xf32>
    %36 = vector.shape_cast %35 : vector<128xf32> to vector<1x128xf32>
    %cst_15 = arith.constant 8.000000e+00 : f32
    %37 = vector.broadcast %cst_15 : f32 to vector<1x128xf32>
    %38 = arith.divf %36, %37 : vector<1x128xf32>
    %39 = vector.broadcast %38 : vector<1x128xf32> to vector<8x128xf32>
    %40 = arith.subf %32, %39 : vector<8x128xf32>
    %41 = arith.mulf %40, %40 : vector<8x128xf32>
    %cst_16 = arith.constant dense<0.000000e+00> : vector<128xf32>
    %42 = vector.multi_reduction <add>, %41, %cst_16 [0] : vector<8x128xf32> to vector<128xf32>
    %43 = vector.shape_cast %42 : vector<128xf32> to vector<1x128xf32>
    %cst_17 = arith.constant 8.000000e+00 : f32
    %44 = vector.broadcast %cst_17 : f32 to vector<1x128xf32>
    %45 = arith.divf %43, %44 : vector<1x128xf32>
    %cst_18 = arith.constant 9.99999974E-6 : f32
    %46 = vector.broadcast %cst_18 : f32 to vector<1x128xf32>
    %47 = arith.addf %45, %46 : vector<1x128xf32>
    %48 = math.rsqrt %47 : vector<1x128xf32>
    %49 = arith.mulf %48, %33 : vector<1x128xf32>
    %50 = arith.mulf %38, %49 : vector<1x128xf32>
    %51 = arith.subf %34, %50 : vector<1x128xf32>
    %52 = vector.broadcast %49 : vector<1x128xf32> to vector<8x128xf32>
    %53 = arith.mulf %32, %52 : vector<8x128xf32>
    %54 = vector.broadcast %51 : vector<1x128xf32> to vector<8x128xf32>
    %55 = arith.addf %53, %54 : vector<8x128xf32>
    %cst_19 = arith.constant 0.000000e+00 : f32
    %56 = vector.broadcast %cst_19 : f32 to vector<8x128xf32>
    %57 = arith.maximumf %55, %56 : vector<8x128xf32>
    %c0_20 = arith.constant 0 : index
    %c0_21 = arith.constant 0 : index
    %58 = vector.load %arg6[%c0_20, %c0_21] : memref<128x128xbf16, #tpu.memory_space<vmem>>, vector<128x128xbf16>
    %59 = arith.truncf %57 : vector<8x128xf32> to vector<8x128xbf16>
    %cst_22 = arith.constant dense<0.000000e+00> : vector<8x128xf32>
    %60 = tpu.matmul %59, %58, %cst_22 {dimension_numbers = #tpu.dot_dimension_numbers<[1], [0], [0], [1], [0, 0, 1, 1], [], []>} : vector<8x128xbf16>, vector<128x128xbf16>, vector<8x128xf32> -> vector<8x128xf32>
    %c0_23 = arith.constant 0 : index
    %c0_24 = arith.constant 0 : index
    %61 = vector.load %arg7[%c0_23, %c0_24] : memref<1x128xf32, #tpu.memory_space<vmem>>, vector<1x128xf32>
    %62 = vector.broadcast %61 : vector<1x128xf32> to vector<8x128xf32>
    %63 = arith.addf %60, %62 : vector<8x128xf32>
    %c0_25 = arith.constant 0 : index
    %c0_26 = arith.constant 0 : index
    %64 = vector.load %arg8[%c0_25, %c0_26] : memref<128x128xbf16, #tpu.memory_space<vmem>>, vector<128x128xbf16>
    %65 = arith.truncf %57 : vector<8x128xf32> to vector<8x128xbf16>
    %cst_27 = arith.constant dense<0.000000e+00> : vector<8x128xf32>
    %66 = tpu.matmul %65, %64, %cst_27 {dimension_numbers = #tpu.dot_dimension_numbers<[1], [0], [0], [1], [0, 0, 1, 1], [], []>} : vector<8x128xbf16>, vector<128x128xbf16>, vector<8x128xf32> -> vector<8x128xf32>
    %c0_28 = arith.constant 0 : index
    %c0_29 = arith.constant 0 : index
    %67 = vector.load %arg9[%c0_28, %c0_29] : memref<1x128xf32, #tpu.memory_space<vmem>>, vector<1x128xf32>
    %68 = vector.broadcast %67 : vector<1x128xf32> to vector<8x128xf32>
    %69 = arith.addf %66, %68 : vector<8x128xf32>
    %c0_30 = arith.constant 0 : index
    %c0_31 = arith.constant 0 : index
    %70 = vector.load %arg2[%c0_30, %c0_31] : memref<8x128xf32, #tpu.memory_space<vmem>>, vector<8x128xf32>
    %cst_32 = arith.constant 5.000000e-01 : f32
    %71 = vector.broadcast %cst_32 : f32 to vector<8x128xf32>
    %72 = arith.mulf %71, %69 : vector<8x128xf32>
    %73 = math.exp %72 : vector<8x128xf32>
    %74 = arith.mulf %70, %73 : vector<8x128xf32>
    %75 = arith.addf %63, %74 : vector<8x128xf32>
    %c0_33 = arith.constant 0 : index
    %c0_34 = arith.constant 0 : index
    %76 = vector.load %arg11[%c0_33, %c0_34] : memref<4x128xf32, #tpu.memory_space<vmem>>, vector<4x128xf32>
    %c0_35 = arith.constant 0 : index
    %c0_36 = arith.constant 0 : index
    %77 = vector.load %arg1[%c0_35, %c0_36] : memref<8x128xf32, #tpu.memory_space<vmem>>, vector<8x128xf32>
    %c0_37 = arith.constant 0 : index
    %c0_38 = arith.constant 0 : index
    %78 = vector.load %arg10[%c0_37, %c0_38] : memref<128x128xbf16, #tpu.memory_space<vmem>>, vector<128x128xbf16>
    %79 = arith.truncf %77 : vector<8x128xf32> to vector<8x128xbf16>
    %cst_39 = arith.constant dense<0.000000e+00> : vector<8x128xf32>
    %80 = tpu.matmul %79, %78, %cst_39 {dimension_numbers = #tpu.dot_dimension_numbers<[1], [0], [0], [1], [0, 0, 1, 1], [], []>} : vector<8x128xbf16>, vector<128x128xbf16>, vector<8x128xf32> -> vector<8x128xf32>
    %81 = vector.extract_strided_slice %76 {offsets = [0, 0], sizes = [1, 128], strides = [1, 1]} : vector<4x128xf32> to vector<1x128xf32>
    %82 = vector.extract_strided_slice %76 {offsets = [1, 0], sizes = [1, 128], strides = [1, 1]} : vector<4x128xf32> to vector<1x128xf32>
    %cst_40 = arith.constant dense<0.000000e+00> : vector<128xf32>
    %83 = vector.multi_reduction <add>, %80, %cst_40 [0] : vector<8x128xf32> to vector<128xf32>
    %84 = vector.shape_cast %83 : vector<128xf32> to vector<1x128xf32>
    %cst_41 = arith.constant 8.000000e+00 : f32
    %85 = vector.broadcast %cst_41 : f32 to vector<1x128xf32>
    %86 = arith.divf %84, %85 : vector<1x128xf32>
    %87 = vector.broadcast %86 : vector<1x128xf32> to vector<8x128xf32>
    %88 = arith.subf %80, %87 : vector<8x128xf32>
    %89 = arith.mulf %88, %88 : vector<8x128xf32>
    %cst_42 = arith.constant dense<0.000000e+00> : vector<128xf32>
    %90 = vector.multi_reduction <add>, %89, %cst_42 [0] : vector<8x128xf32> to vector<128xf32>
    %91 = vector.shape_cast %90 : vector<128xf32> to vector<1x128xf32>
    %cst_43 = arith.constant 8.000000e+00 : f32
    %92 = vector.broadcast %cst_43 : f32 to vector<1x128xf32>
    %93 = arith.divf %91, %92 : vector<1x128xf32>
    %cst_44 = arith.constant 9.99999974E-6 : f32
    %94 = vector.broadcast %cst_44 : f32 to vector<1x128xf32>
    %95 = arith.addf %93, %94 : vector<1x128xf32>
    %96 = math.rsqrt %95 : vector<1x128xf32>
    %97 = arith.mulf %96, %81 : vector<1x128xf32>
    %98 = arith.mulf %86, %97 : vector<1x128xf32>
    %99 = arith.subf %82, %98 : vector<1x128xf32>
    %100 = vector.broadcast %97 : vector<1x128xf32> to vector<8x128xf32>
    %101 = arith.mulf %80, %100 : vector<8x128xf32>
    %102 = vector.broadcast %99 : vector<1x128xf32> to vector<8x128xf32>
    %103 = arith.addf %101, %102 : vector<8x128xf32>
    %cst_45 = arith.constant 0.000000e+00 : f32
    %104 = vector.broadcast %cst_45 : f32 to vector<8x128xf32>
    %105 = arith.maximumf %103, %104 : vector<8x128xf32>
    %c0_46 = arith.constant 0 : index
    %c0_47 = arith.constant 0 : index
    %106 = vector.load %arg12[%c0_46, %c0_47] : memref<128x128xbf16, #tpu.memory_space<vmem>>, vector<128x128xbf16>
    %107 = arith.truncf %105 : vector<8x128xf32> to vector<8x128xbf16>
    %cst_48 = arith.constant dense<0.000000e+00> : vector<8x128xf32>
    %108 = tpu.matmul %107, %106, %cst_48 {dimension_numbers = #tpu.dot_dimension_numbers<[1], [0], [0], [1], [0, 0, 1, 1], [], []>} : vector<8x128xbf16>, vector<128x128xbf16>, vector<8x128xf32> -> vector<8x128xf32>
    %109 = vector.extract_strided_slice %76 {offsets = [2, 0], sizes = [1, 128], strides = [1, 1]} : vector<4x128xf32> to vector<1x128xf32>
    %110 = vector.extract_strided_slice %76 {offsets = [3, 0], sizes = [1, 128], strides = [1, 1]} : vector<4x128xf32> to vector<1x128xf32>
    %cst_49 = arith.constant dense<0.000000e+00> : vector<128xf32>
    %111 = vector.multi_reduction <add>, %108, %cst_49 [0] : vector<8x128xf32> to vector<128xf32>
    %112 = vector.shape_cast %111 : vector<128xf32> to vector<1x128xf32>
    %cst_50 = arith.constant 8.000000e+00 : f32
    %113 = vector.broadcast %cst_50 : f32 to vector<1x128xf32>
    %114 = arith.divf %112, %113 : vector<1x128xf32>
    %115 = vector.broadcast %114 : vector<1x128xf32> to vector<8x128xf32>
    %116 = arith.subf %108, %115 : vector<8x128xf32>
    %117 = arith.mulf %116, %116 : vector<8x128xf32>
    %cst_51 = arith.constant dense<0.000000e+00> : vector<128xf32>
    %118 = vector.multi_reduction <add>, %117, %cst_51 [0] : vector<8x128xf32> to vector<128xf32>
    %119 = vector.shape_cast %118 : vector<128xf32> to vector<1x128xf32>
    %cst_52 = arith.constant 8.000000e+00 : f32
    %120 = vector.broadcast %cst_52 : f32 to vector<1x128xf32>
    %121 = arith.divf %119, %120 : vector<1x128xf32>
    %cst_53 = arith.constant 9.99999974E-6 : f32
    %122 = vector.broadcast %cst_53 : f32 to vector<1x128xf32>
    %123 = arith.addf %121, %122 : vector<1x128xf32>
    %124 = math.rsqrt %123 : vector<1x128xf32>
    %125 = arith.mulf %124, %109 : vector<1x128xf32>
    %126 = arith.mulf %114, %125 : vector<1x128xf32>
    %127 = arith.subf %110, %126 : vector<1x128xf32>
    %128 = vector.broadcast %125 : vector<1x128xf32> to vector<8x128xf32>
    %129 = arith.mulf %108, %128 : vector<8x128xf32>
    %130 = vector.broadcast %127 : vector<1x128xf32> to vector<8x128xf32>
    %131 = arith.addf %129, %130 : vector<8x128xf32>
    %cst_54 = arith.constant 0.000000e+00 : f32
    %132 = vector.broadcast %cst_54 : f32 to vector<8x128xf32>
    %133 = arith.maximumf %131, %132 : vector<8x128xf32>
    %c0_55 = arith.constant 0 : index
    %c0_56 = arith.constant 0 : index
    %134 = vector.load %arg13[%c0_55, %c0_56] : memref<128x128xbf16, #tpu.memory_space<vmem>>, vector<128x128xbf16>
    %135 = arith.truncf %133 : vector<8x128xf32> to vector<8x128xbf16>
    %cst_57 = arith.constant dense<0.000000e+00> : vector<8x128xf32>
    %136 = tpu.matmul %135, %134, %cst_57 {dimension_numbers = #tpu.dot_dimension_numbers<[1], [0], [0], [1], [0, 0, 1, 1], [], []>} : vector<8x128xbf16>, vector<128x128xbf16>, vector<8x128xf32> -> vector<8x128xf32>
    %c0_58 = arith.constant 0 : index
    %c0_59 = arith.constant 0 : index
    %137 = vector.load %arg14[%c0_58, %c0_59] : memref<1x128xf32, #tpu.memory_space<vmem>>, vector<1x128xf32>
    %138 = vector.broadcast %137 : vector<1x128xf32> to vector<8x128xf32>
    %139 = arith.addf %136, %138 : vector<8x128xf32>
    %c2 = arith.constant 2 : index
    %c0_60 = arith.constant 0 : index
    %c0_61 = arith.constant 0 : index
    %140 = vector.load %arg17[%c2, %c0_60, %c0_61] : memref<3x4x128xf32, #tpu.memory_space<vmem>>, vector<1x4x128xf32>
    %141 = vector.shape_cast %140 : vector<1x4x128xf32> to vector<4x128xf32>
    %c2_62 = arith.constant 2 : index
    %c0_63 = arith.constant 0 : index
    %c0_64 = arith.constant 0 : index
    %142 = vector.load %arg15[%c2_62, %c0_63, %c0_64] : memref<3x128x128xbf16, #tpu.memory_space<vmem>>, vector<1x128x128xbf16>
    %143 = vector.shape_cast %142 : vector<1x128x128xbf16> to vector<128x128xbf16>
    %144 = arith.truncf %75 : vector<8x128xf32> to vector<8x128xbf16>
    %cst_65 = arith.constant dense<0.000000e+00> : vector<8x128xf32>
    %145 = tpu.matmul %144, %143, %cst_65 {dimension_numbers = #tpu.dot_dimension_numbers<[1], [0], [0], [1], [0, 0, 1, 1], [], []>} : vector<8x128xbf16>, vector<128x128xbf16>, vector<8x128xf32> -> vector<8x128xf32>
    %c2_66 = arith.constant 2 : index
    %c0_67 = arith.constant 0 : index
    %c0_68 = arith.constant 0 : index
    %146 = vector.load %arg16[%c2_66, %c0_67, %c0_68] : memref<3x128x128xbf16, #tpu.memory_space<vmem>>, vector<1x128x128xbf16>
    %147 = vector.shape_cast %146 : vector<1x128x128xbf16> to vector<128x128xbf16>
    %148 = arith.truncf %139 : vector<8x128xf32> to vector<8x128xbf16>
    %cst_69 = arith.constant dense<0.000000e+00> : vector<8x128xf32>
    %149 = tpu.matmul %148, %147, %cst_69 {dimension_numbers = #tpu.dot_dimension_numbers<[1], [0], [0], [1], [0, 0, 1, 1], [], []>} : vector<8x128xbf16>, vector<128x128xbf16>, vector<8x128xf32> -> vector<8x128xf32>
    %150 = arith.addf %145, %149 : vector<8x128xf32>
    %151 = vector.extract_strided_slice %141 {offsets = [0, 0], sizes = [1, 128], strides = [1, 1]} : vector<4x128xf32> to vector<1x128xf32>
    %152 = vector.extract_strided_slice %141 {offsets = [1, 0], sizes = [1, 128], strides = [1, 1]} : vector<4x128xf32> to vector<1x128xf32>
    %cst_70 = arith.constant dense<0.000000e+00> : vector<128xf32>
    %153 = vector.multi_reduction <add>, %150, %cst_70 [0] : vector<8x128xf32> to vector<128xf32>
    %154 = vector.shape_cast %153 : vector<128xf32> to vector<1x128xf32>
    %cst_71 = arith.constant 8.000000e+00 : f32
    %155 = vector.broadcast %cst_71 : f32 to vector<1x128xf32>
    %156 = arith.divf %154, %155 : vector<1x128xf32>
    %157 = vector.broadcast %156 : vector<1x128xf32> to vector<8x128xf32>
    %158 = arith.subf %150, %157 : vector<8x128xf32>
    %159 = arith.mulf %158, %158 : vector<8x128xf32>
    %cst_72 = arith.constant dense<0.000000e+00> : vector<128xf32>
    %160 = vector.multi_reduction <add>, %159, %cst_72 [0] : vector<8x128xf32> to vector<128xf32>
    %161 = vector.shape_cast %160 : vector<128xf32> to vector<1x128xf32>
    %cst_73 = arith.constant 8.000000e+00 : f32
    %162 = vector.broadcast %cst_73 : f32 to vector<1x128xf32>
    %163 = arith.divf %161, %162 : vector<1x128xf32>
    %cst_74 = arith.constant 9.99999974E-6 : f32
    %164 = vector.broadcast %cst_74 : f32 to vector<1x128xf32>
    %165 = arith.addf %163, %164 : vector<1x128xf32>
    %166 = math.rsqrt %165 : vector<1x128xf32>
    %167 = arith.mulf %166, %151 : vector<1x128xf32>
    %168 = arith.mulf %156, %167 : vector<1x128xf32>
    %169 = arith.subf %152, %168 : vector<1x128xf32>
    %170 = vector.broadcast %167 : vector<1x128xf32> to vector<8x128xf32>
    %171 = arith.mulf %150, %170 : vector<8x128xf32>
    %172 = vector.broadcast %169 : vector<1x128xf32> to vector<8x128xf32>
    %173 = arith.addf %171, %172 : vector<8x128xf32>
    %cst_75 = arith.constant 0.000000e+00 : f32
    %174 = vector.broadcast %cst_75 : f32 to vector<8x128xf32>
    %175 = arith.maximumf %173, %174 : vector<8x128xf32>
    %c2_76 = arith.constant 2 : index
    %c0_77 = arith.constant 0 : index
    %c0_78 = arith.constant 0 : index
    %176 = vector.load %arg18[%c2_76, %c0_77, %c0_78] : memref<3x128x128xbf16, #tpu.memory_space<vmem>>, vector<1x128x128xbf16>
    %177 = vector.shape_cast %176 : vector<1x128x128xbf16> to vector<128x128xbf16>
    %178 = arith.truncf %175 : vector<8x128xf32> to vector<8x128xbf16>
    %cst_79 = arith.constant dense<0.000000e+00> : vector<8x128xf32>
    %179 = tpu.matmul %178, %177, %cst_79 {dimension_numbers = #tpu.dot_dimension_numbers<[1], [0], [0], [1], [0, 0, 1, 1], [], []>} : vector<8x128xbf16>, vector<128x128xbf16>, vector<8x128xf32> -> vector<8x128xf32>
    %180 = vector.extract_strided_slice %141 {offsets = [2, 0], sizes = [1, 128], strides = [1, 1]} : vector<4x128xf32> to vector<1x128xf32>
    %181 = vector.extract_strided_slice %141 {offsets = [3, 0], sizes = [1, 128], strides = [1, 1]} : vector<4x128xf32> to vector<1x128xf32>
    %cst_80 = arith.constant dense<0.000000e+00> : vector<128xf32>
    %182 = vector.multi_reduction <add>, %179, %cst_80 [0] : vector<8x128xf32> to vector<128xf32>
    %183 = vector.shape_cast %182 : vector<128xf32> to vector<1x128xf32>
    %cst_81 = arith.constant 8.000000e+00 : f32
    %184 = vector.broadcast %cst_81 : f32 to vector<1x128xf32>
    %185 = arith.divf %183, %184 : vector<1x128xf32>
    %186 = vector.broadcast %185 : vector<1x128xf32> to vector<8x128xf32>
    %187 = arith.subf %179, %186 : vector<8x128xf32>
    %188 = arith.mulf %187, %187 : vector<8x128xf32>
    %cst_82 = arith.constant dense<0.000000e+00> : vector<128xf32>
    %189 = vector.multi_reduction <add>, %188, %cst_82 [0] : vector<8x128xf32> to vector<128xf32>
    %190 = vector.shape_cast %189 : vector<128xf32> to vector<1x128xf32>
    %cst_83 = arith.constant 8.000000e+00 : f32
    %191 = vector.broadcast %cst_83 : f32 to vector<1x128xf32>
    %192 = arith.divf %190, %191 : vector<1x128xf32>
    %cst_84 = arith.constant 9.99999974E-6 : f32
    %193 = vector.broadcast %cst_84 : f32 to vector<1x128xf32>
    %194 = arith.addf %192, %193 : vector<1x128xf32>
    %195 = math.rsqrt %194 : vector<1x128xf32>
    %196 = arith.mulf %195, %180 : vector<1x128xf32>
    %197 = arith.mulf %185, %196 : vector<1x128xf32>
    %198 = arith.subf %181, %197 : vector<1x128xf32>
    %199 = vector.broadcast %196 : vector<1x128xf32> to vector<8x128xf32>
    %200 = arith.mulf %179, %199 : vector<8x128xf32>
    %201 = vector.broadcast %198 : vector<1x128xf32> to vector<8x128xf32>
    %202 = arith.addf %200, %201 : vector<8x128xf32>
    %cst_85 = arith.constant 0.000000e+00 : f32
    %203 = vector.broadcast %cst_85 : f32 to vector<8x128xf32>
    %204 = arith.maximumf %202, %203 : vector<8x128xf32>
    %c2_86 = arith.constant 2 : index
    %c0_87 = arith.constant 0 : index
    %c0_88 = arith.constant 0 : index
    %205 = vector.load %arg19[%c2_86, %c0_87, %c0_88] : memref<3x128x128xbf16, #tpu.memory_space<vmem>>, vector<1x128x128xbf16>
    %206 = vector.shape_cast %205 : vector<1x128x128xbf16> to vector<128x128xbf16>
    %207 = arith.truncf %204 : vector<8x128xf32> to vector<8x128xbf16>
    %cst_89 = arith.constant dense<0.000000e+00> : vector<8x128xf32>
    %208 = tpu.matmul %207, %206, %cst_89 {dimension_numbers = #tpu.dot_dimension_numbers<[1], [0], [0], [1], [0, 0, 1, 1], [], []>} : vector<8x128xbf16>, vector<128x128xbf16>, vector<8x128xf32> -> vector<8x128xf32>
    %c2_90 = arith.constant 2 : index
    %c0_91 = arith.constant 0 : index
    %c0_92 = arith.constant 0 : index
    %209 = vector.load %arg20[%c2_90, %c0_91, %c0_92] : memref<3x1x128xf32, #tpu.memory_space<vmem>>, vector<1x1x128xf32>
    %210 = vector.shape_cast %209 : vector<1x1x128xf32> to vector<1x128xf32>
    %211 = vector.broadcast %210 : vector<1x128xf32> to vector<8x128xf32>
    %212 = arith.addf %208, %211 : vector<8x128xf32>
    %213 = arith.subf %75, %212 : vector<8x128xf32>
    %c1 = arith.constant 1 : index
    %c0_93 = arith.constant 0 : index
    %c0_94 = arith.constant 0 : index
    %214 = vector.load %arg17[%c1, %c0_93, %c0_94] : memref<3x4x128xf32, #tpu.memory_space<vmem>>, vector<1x4x128xf32>
    %215 = vector.shape_cast %214 : vector<1x4x128xf32> to vector<4x128xf32>
    %c1_95 = arith.constant 1 : index
    %c0_96 = arith.constant 0 : index
    %c0_97 = arith.constant 0 : index
    %216 = vector.load %arg15[%c1_95, %c0_96, %c0_97] : memref<3x128x128xbf16, #tpu.memory_space<vmem>>, vector<1x128x128xbf16>
    %217 = vector.shape_cast %216 : vector<1x128x128xbf16> to vector<128x128xbf16>
    %218 = arith.truncf %213 : vector<8x128xf32> to vector<8x128xbf16>
    %cst_98 = arith.constant dense<0.000000e+00> : vector<8x128xf32>
    %219 = tpu.matmul %218, %217, %cst_98 {dimension_numbers = #tpu.dot_dimension_numbers<[1], [0], [0], [1], [0, 0, 1, 1], [], []>} : vector<8x128xbf16>, vector<128x128xbf16>, vector<8x128xf32> -> vector<8x128xf32>
    %c1_99 = arith.constant 1 : index
    %c0_100 = arith.constant 0 : index
    %c0_101 = arith.constant 0 : index
    %220 = vector.load %arg16[%c1_99, %c0_100, %c0_101] : memref<3x128x128xbf16, #tpu.memory_space<vmem>>, vector<1x128x128xbf16>
    %221 = vector.shape_cast %220 : vector<1x128x128xbf16> to vector<128x128xbf16>
    %222 = arith.truncf %139 : vector<8x128xf32> to vector<8x128xbf16>
    %cst_102 = arith.constant dense<0.000000e+00> : vector<8x128xf32>
    %223 = tpu.matmul %222, %221, %cst_102 {dimension_numbers = #tpu.dot_dimension_numbers<[1], [0], [0], [1], [0, 0, 1, 1], [], []>} : vector<8x128xbf16>, vector<128x128xbf16>, vector<8x128xf32> -> vector<8x128xf32>
    %224 = arith.addf %219, %223 : vector<8x128xf32>
    %225 = vector.extract_strided_slice %215 {offsets = [0, 0], sizes = [1, 128], strides = [1, 1]} : vector<4x128xf32> to vector<1x128xf32>
    %226 = vector.extract_strided_slice %215 {offsets = [1, 0], sizes = [1, 128], strides = [1, 1]} : vector<4x128xf32> to vector<1x128xf32>
    %cst_103 = arith.constant dense<0.000000e+00> : vector<128xf32>
    %227 = vector.multi_reduction <add>, %224, %cst_103 [0] : vector<8x128xf32> to vector<128xf32>
    %228 = vector.shape_cast %227 : vector<128xf32> to vector<1x128xf32>
    %cst_104 = arith.constant 8.000000e+00 : f32
    %229 = vector.broadcast %cst_104 : f32 to vector<1x128xf32>
    %230 = arith.divf %228, %229 : vector<1x128xf32>
    %231 = vector.broadcast %230 : vector<1x128xf32> to vector<8x128xf32>
    %232 = arith.subf %224, %231 : vector<8x128xf32>
    %233 = arith.mulf %232, %232 : vector<8x128xf32>
    %cst_105 = arith.constant dense<0.000000e+00> : vector<128xf32>
    %234 = vector.multi_reduction <add>, %233, %cst_105 [0] : vector<8x128xf32> to vector<128xf32>
    %235 = vector.shape_cast %234 : vector<128xf32> to vector<1x128xf32>
    %cst_106 = arith.constant 8.000000e+00 : f32
    %236 = vector.broadcast %cst_106 : f32 to vector<1x128xf32>
    %237 = arith.divf %235, %236 : vector<1x128xf32>
    %cst_107 = arith.constant 9.99999974E-6 : f32
    %238 = vector.broadcast %cst_107 : f32 to vector<1x128xf32>
    %239 = arith.addf %237, %238 : vector<1x128xf32>
    %240 = math.rsqrt %239 : vector<1x128xf32>
    %241 = arith.mulf %240, %225 : vector<1x128xf32>
    %242 = arith.mulf %230, %241 : vector<1x128xf32>
    %243 = arith.subf %226, %242 : vector<1x128xf32>
    %244 = vector.broadcast %241 : vector<1x128xf32> to vector<8x128xf32>
    %245 = arith.mulf %224, %244 : vector<8x128xf32>
    %246 = vector.broadcast %243 : vector<1x128xf32> to vector<8x128xf32>
    %247 = arith.addf %245, %246 : vector<8x128xf32>
    %cst_108 = arith.constant 0.000000e+00 : f32
    %248 = vector.broadcast %cst_108 : f32 to vector<8x128xf32>
    %249 = arith.maximumf %247, %248 : vector<8x128xf32>
    %c1_109 = arith.constant 1 : index
    %c0_110 = arith.constant 0 : index
    %c0_111 = arith.constant 0 : index
    %250 = vector.load %arg18[%c1_109, %c0_110, %c0_111] : memref<3x128x128xbf16, #tpu.memory_space<vmem>>, vector<1x128x128xbf16>
    %251 = vector.shape_cast %250 : vector<1x128x128xbf16> to vector<128x128xbf16>
    %252 = arith.truncf %249 : vector<8x128xf32> to vector<8x128xbf16>
    %cst_112 = arith.constant dense<0.000000e+00> : vector<8x128xf32>
    %253 = tpu.matmul %252, %251, %cst_112 {dimension_numbers = #tpu.dot_dimension_numbers<[1], [0], [0], [1], [0, 0, 1, 1], [], []>} : vector<8x128xbf16>, vector<128x128xbf16>, vector<8x128xf32> -> vector<8x128xf32>
    %254 = vector.extract_strided_slice %215 {offsets = [2, 0], sizes = [1, 128], strides = [1, 1]} : vector<4x128xf32> to vector<1x128xf32>
    %255 = vector.extract_strided_slice %215 {offsets = [3, 0], sizes = [1, 128], strides = [1, 1]} : vector<4x128xf32> to vector<1x128xf32>
    %cst_113 = arith.constant dense<0.000000e+00> : vector<128xf32>
    %256 = vector.multi_reduction <add>, %253, %cst_113 [0] : vector<8x128xf32> to vector<128xf32>
    %257 = vector.shape_cast %256 : vector<128xf32> to vector<1x128xf32>
    %cst_114 = arith.constant 8.000000e+00 : f32
    %258 = vector.broadcast %cst_114 : f32 to vector<1x128xf32>
    %259 = arith.divf %257, %258 : vector<1x128xf32>
    %260 = vector.broadcast %259 : vector<1x128xf32> to vector<8x128xf32>
    %261 = arith.subf %253, %260 : vector<8x128xf32>
    %262 = arith.mulf %261, %261 : vector<8x128xf32>
    %cst_115 = arith.constant dense<0.000000e+00> : vector<128xf32>
    %263 = vector.multi_reduction <add>, %262, %cst_115 [0] : vector<8x128xf32> to vector<128xf32>
    %264 = vector.shape_cast %263 : vector<128xf32> to vector<1x128xf32>
    %cst_116 = arith.constant 8.000000e+00 : f32
    %265 = vector.broadcast %cst_116 : f32 to vector<1x128xf32>
    %266 = arith.divf %264, %265 : vector<1x128xf32>
    %cst_117 = arith.constant 9.99999974E-6 : f32
    %267 = vector.broadcast %cst_117 : f32 to vector<1x128xf32>
    %268 = arith.addf %266, %267 : vector<1x128xf32>
    %269 = math.rsqrt %268 : vector<1x128xf32>
    %270 = arith.mulf %269, %254 : vector<1x128xf32>
    %271 = arith.mulf %259, %270 : vector<1x128xf32>
    %272 = arith.subf %255, %271 : vector<1x128xf32>
    %273 = vector.broadcast %270 : vector<1x128xf32> to vector<8x128xf32>
    %274 = arith.mulf %253, %273 : vector<8x128xf32>
    %275 = vector.broadcast %272 : vector<1x128xf32> to vector<8x128xf32>
    %276 = arith.addf %274, %275 : vector<8x128xf32>
    %cst_118 = arith.constant 0.000000e+00 : f32
    %277 = vector.broadcast %cst_118 : f32 to vector<8x128xf32>
    %278 = arith.maximumf %276, %277 : vector<8x128xf32>
    %c1_119 = arith.constant 1 : index
    %c0_120 = arith.constant 0 : index
    %c0_121 = arith.constant 0 : index
    %279 = vector.load %arg19[%c1_119, %c0_120, %c0_121] : memref<3x128x128xbf16, #tpu.memory_space<vmem>>, vector<1x128x128xbf16>
    %280 = vector.shape_cast %279 : vector<1x128x128xbf16> to vector<128x128xbf16>
    %281 = arith.truncf %278 : vector<8x128xf32> to vector<8x128xbf16>
    %cst_122 = arith.constant dense<0.000000e+00> : vector<8x128xf32>
    %282 = tpu.matmul %281, %280, %cst_122 {dimension_numbers = #tpu.dot_dimension_numbers<[1], [0], [0], [1], [0, 0, 1, 1], [], []>} : vector<8x128xbf16>, vector<128x128xbf16>, vector<8x128xf32> -> vector<8x128xf32>
    %c1_123 = arith.constant 1 : index
    %c0_124 = arith.constant 0 : index
    %c0_125 = arith.constant 0 : index
    %283 = vector.load %arg20[%c1_123, %c0_124, %c0_125] : memref<3x1x128xf32, #tpu.memory_space<vmem>>, vector<1x1x128xf32>
    %284 = vector.shape_cast %283 : vector<1x1x128xf32> to vector<1x128xf32>
    %285 = vector.broadcast %284 : vector<1x128xf32> to vector<8x128xf32>
    %286 = arith.addf %282, %285 : vector<8x128xf32>
    %287 = arith.subf %213, %286 : vector<8x128xf32>
    %c0_126 = arith.constant 0 : index
    %c0_127 = arith.constant 0 : index
    %c0_128 = arith.constant 0 : index
    %288 = vector.load %arg17[%c0_126, %c0_127, %c0_128] : memref<3x4x128xf32, #tpu.memory_space<vmem>>, vector<1x4x128xf32>
    %289 = vector.shape_cast %288 : vector<1x4x128xf32> to vector<4x128xf32>
    %c0_129 = arith.constant 0 : index
    %c0_130 = arith.constant 0 : index
    %c0_131 = arith.constant 0 : index
    %290 = vector.load %arg15[%c0_129, %c0_130, %c0_131] : memref<3x128x128xbf16, #tpu.memory_space<vmem>>, vector<1x128x128xbf16>
    %291 = vector.shape_cast %290 : vector<1x128x128xbf16> to vector<128x128xbf16>
    %292 = arith.truncf %287 : vector<8x128xf32> to vector<8x128xbf16>
    %cst_132 = arith.constant dense<0.000000e+00> : vector<8x128xf32>
    %293 = tpu.matmul %292, %291, %cst_132 {dimension_numbers = #tpu.dot_dimension_numbers<[1], [0], [0], [1], [0, 0, 1, 1], [], []>} : vector<8x128xbf16>, vector<128x128xbf16>, vector<8x128xf32> -> vector<8x128xf32>
    %c0_133 = arith.constant 0 : index
    %c0_134 = arith.constant 0 : index
    %c0_135 = arith.constant 0 : index
    %294 = vector.load %arg16[%c0_133, %c0_134, %c0_135] : memref<3x128x128xbf16, #tpu.memory_space<vmem>>, vector<1x128x128xbf16>
    %295 = vector.shape_cast %294 : vector<1x128x128xbf16> to vector<128x128xbf16>
    %296 = arith.truncf %139 : vector<8x128xf32> to vector<8x128xbf16>
    %cst_136 = arith.constant dense<0.000000e+00> : vector<8x128xf32>
    %297 = tpu.matmul %296, %295, %cst_136 {dimension_numbers = #tpu.dot_dimension_numbers<[1], [0], [0], [1], [0, 0, 1, 1], [], []>} : vector<8x128xbf16>, vector<128x128xbf16>, vector<8x128xf32> -> vector<8x128xf32>
    %298 = arith.addf %293, %297 : vector<8x128xf32>
    %299 = vector.extract_strided_slice %289 {offsets = [0, 0], sizes = [1, 128], strides = [1, 1]} : vector<4x128xf32> to vector<1x128xf32>
    %300 = vector.extract_strided_slice %289 {offsets = [1, 0], sizes = [1, 128], strides = [1, 1]} : vector<4x128xf32> to vector<1x128xf32>
    %cst_137 = arith.constant dense<0.000000e+00> : vector<128xf32>
    %301 = vector.multi_reduction <add>, %298, %cst_137 [0] : vector<8x128xf32> to vector<128xf32>
    %302 = vector.shape_cast %301 : vector<128xf32> to vector<1x128xf32>
    %cst_138 = arith.constant 8.000000e+00 : f32
    %303 = vector.broadcast %cst_138 : f32 to vector<1x128xf32>
    %304 = arith.divf %302, %303 : vector<1x128xf32>
    %305 = vector.broadcast %304 : vector<1x128xf32> to vector<8x128xf32>
    %306 = arith.subf %298, %305 : vector<8x128xf32>
    %307 = arith.mulf %306, %306 : vector<8x128xf32>
    %cst_139 = arith.constant dense<0.000000e+00> : vector<128xf32>
    %308 = vector.multi_reduction <add>, %307, %cst_139 [0] : vector<8x128xf32> to vector<128xf32>
    %309 = vector.shape_cast %308 : vector<128xf32> to vector<1x128xf32>
    %cst_140 = arith.constant 8.000000e+00 : f32
    %310 = vector.broadcast %cst_140 : f32 to vector<1x128xf32>
    %311 = arith.divf %309, %310 : vector<1x128xf32>
    %cst_141 = arith.constant 9.99999974E-6 : f32
    %312 = vector.broadcast %cst_141 : f32 to vector<1x128xf32>
    %313 = arith.addf %311, %312 : vector<1x128xf32>
    %314 = math.rsqrt %313 : vector<1x128xf32>
    %315 = arith.mulf %314, %299 : vector<1x128xf32>
    %316 = arith.mulf %304, %315 : vector<1x128xf32>
    %317 = arith.subf %300, %316 : vector<1x128xf32>
    %318 = vector.broadcast %315 : vector<1x128xf32> to vector<8x128xf32>
    %319 = arith.mulf %298, %318 : vector<8x128xf32>
    %320 = vector.broadcast %317 : vector<1x128xf32> to vector<8x128xf32>
    %321 = arith.addf %319, %320 : vector<8x128xf32>
    %cst_142 = arith.constant 0.000000e+00 : f32
    %322 = vector.broadcast %cst_142 : f32 to vector<8x128xf32>
    %323 = arith.maximumf %321, %322 : vector<8x128xf32>
    %c0_143 = arith.constant 0 : index
    %c0_144 = arith.constant 0 : index
    %c0_145 = arith.constant 0 : index
    %324 = vector.load %arg18[%c0_143, %c0_144, %c0_145] : memref<3x128x128xbf16, #tpu.memory_space<vmem>>, vector<1x128x128xbf16>
    %325 = vector.shape_cast %324 : vector<1x128x128xbf16> to vector<128x128xbf16>
    %326 = arith.truncf %323 : vector<8x128xf32> to vector<8x128xbf16>
    %cst_146 = arith.constant dense<0.000000e+00> : vector<8x128xf32>
    %327 = tpu.matmul %326, %325, %cst_146 {dimension_numbers = #tpu.dot_dimension_numbers<[1], [0], [0], [1], [0, 0, 1, 1], [], []>} : vector<8x128xbf16>, vector<128x128xbf16>, vector<8x128xf32> -> vector<8x128xf32>
    %328 = vector.extract_strided_slice %289 {offsets = [2, 0], sizes = [1, 128], strides = [1, 1]} : vector<4x128xf32> to vector<1x128xf32>
    %329 = vector.extract_strided_slice %289 {offsets = [3, 0], sizes = [1, 128], strides = [1, 1]} : vector<4x128xf32> to vector<1x128xf32>
    %cst_147 = arith.constant dense<0.000000e+00> : vector<128xf32>
    %330 = vector.multi_reduction <add>, %327, %cst_147 [0] : vector<8x128xf32> to vector<128xf32>
    %331 = vector.shape_cast %330 : vector<128xf32> to vector<1x128xf32>
    %cst_148 = arith.constant 8.000000e+00 : f32
    %332 = vector.broadcast %cst_148 : f32 to vector<1x128xf32>
    %333 = arith.divf %331, %332 : vector<1x128xf32>
    %334 = vector.broadcast %333 : vector<1x128xf32> to vector<8x128xf32>
    %335 = arith.subf %327, %334 : vector<8x128xf32>
    %336 = arith.mulf %335, %335 : vector<8x128xf32>
    %cst_149 = arith.constant dense<0.000000e+00> : vector<128xf32>
    %337 = vector.multi_reduction <add>, %336, %cst_149 [0] : vector<8x128xf32> to vector<128xf32>
    %338 = vector.shape_cast %337 : vector<128xf32> to vector<1x128xf32>
    %cst_150 = arith.constant 8.000000e+00 : f32
    %339 = vector.broadcast %cst_150 : f32 to vector<1x128xf32>
    %340 = arith.divf %338, %339 : vector<1x128xf32>
    %cst_151 = arith.constant 9.99999974E-6 : f32
    %341 = vector.broadcast %cst_151 : f32 to vector<1x128xf32>
    %342 = arith.addf %340, %341 : vector<1x128xf32>
    %343 = math.rsqrt %342 : vector<1x128xf32>
    %344 = arith.mulf %343, %328 : vector<1x128xf32>
    %345 = arith.mulf %333, %344 : vector<1x128xf32>
    %346 = arith.subf %329, %345 : vector<1x128xf32>
    %347 = vector.broadcast %344 : vector<1x128xf32> to vector<8x128xf32>
    %348 = arith.mulf %327, %347 : vector<8x128xf32>
    %349 = vector.broadcast %346 : vector<1x128xf32> to vector<8x128xf32>
    %350 = arith.addf %348, %349 : vector<8x128xf32>
    %cst_152 = arith.constant 0.000000e+00 : f32
    %351 = vector.broadcast %cst_152 : f32 to vector<8x128xf32>
    %352 = arith.maximumf %350, %351 : vector<8x128xf32>
    %c0_153 = arith.constant 0 : index
    %c0_154 = arith.constant 0 : index
    %c0_155 = arith.constant 0 : index
    %353 = vector.load %arg19[%c0_153, %c0_154, %c0_155] : memref<3x128x128xbf16, #tpu.memory_space<vmem>>, vector<1x128x128xbf16>
    %354 = vector.shape_cast %353 : vector<1x128x128xbf16> to vector<128x128xbf16>
    %355 = arith.truncf %352 : vector<8x128xf32> to vector<8x128xbf16>
    %cst_156 = arith.constant dense<0.000000e+00> : vector<8x128xf32>
    %356 = tpu.matmul %355, %354, %cst_156 {dimension_numbers = #tpu.dot_dimension_numbers<[1], [0], [0], [1], [0, 0, 1, 1], [], []>} : vector<8x128xbf16>, vector<128x128xbf16>, vector<8x128xf32> -> vector<8x128xf32>
    %c0_157 = arith.constant 0 : index
    %c0_158 = arith.constant 0 : index
    %c0_159 = arith.constant 0 : index
    %357 = vector.load %arg20[%c0_157, %c0_158, %c0_159] : memref<3x1x128xf32, #tpu.memory_space<vmem>>, vector<1x1x128xf32>
    %358 = vector.shape_cast %357 : vector<1x1x128xf32> to vector<1x128xf32>
    %359 = vector.broadcast %358 : vector<1x128xf32> to vector<8x128xf32>
    %360 = arith.addf %356, %359 : vector<8x128xf32>
    %361 = arith.subf %287, %360 : vector<8x128xf32>
    %c0_160 = arith.constant 0 : index
    %c0_161 = arith.constant 0 : index
    %362 = vector.load %arg21[%c0_160, %c0_161] : memref<128x128xbf16, #tpu.memory_space<vmem>>, vector<128x128xbf16>
    %363 = arith.truncf %361 : vector<8x128xf32> to vector<8x128xbf16>
    %cst_162 = arith.constant dense<0.000000e+00> : vector<8x128xf32>
    %364 = tpu.matmul %363, %362, %cst_162 {dimension_numbers = #tpu.dot_dimension_numbers<[1], [0], [0], [1], [0, 0, 1, 1], [], []>} : vector<8x128xbf16>, vector<128x128xbf16>, vector<8x128xf32> -> vector<8x128xf32>
    %c0_163 = arith.constant 0 : index
    %c0_164 = arith.constant 0 : index
    %365 = vector.load %arg22[%c0_163, %c0_164] : memref<1x128xf32, #tpu.memory_space<vmem>>, vector<1x128xf32>
    %366 = vector.broadcast %365 : vector<1x128xf32> to vector<8x128xf32>
    %367 = arith.addf %364, %366 : vector<8x128xf32>
    %c0_165 = arith.constant 0 : index
    %c0_166 = arith.constant 0 : index
    %368 = vector.load %arg23[%c0_165, %c0_166] : memref<8x128xf32, #tpu.memory_space<vmem>>, vector<8x128xf32>
    tpu.vector_store %arg23[%c0_165, %c0_166], %367 {strides = array<i32>} : memref<8x128xf32, #tpu.memory_space<vmem>>, vector<8x128xf32>,
    %c0_167 = arith.constant 0 : index
    %c0_168 = arith.constant 0 : index
    %369 = vector.load %arg24[%c0_167, %c0_168] : memref<8x128xf32, #tpu.memory_space<vmem>>, vector<8x128xf32>
    tpu.vector_store %arg24[%c0_167, %c0_168], %63 {strides = array<i32>} : memref<8x128xf32, #tpu.memory_space<vmem>>, vector<8x128xf32>,
    %c0_169 = arith.constant 0 : index
    %c0_170 = arith.constant 0 : index
    %370 = vector.load %arg25[%c0_169, %c0_170] : memref<8x128xf32, #tpu.memory_space<vmem>>, vector<8x128xf32>
    tpu.vector_store %arg25[%c0_169, %c0_170], %69 {strides = array<i32>} : memref<8x128xf32, #tpu.memory_space<vmem>>, vector<8x128xf32>,
    return
  }
}

</mosaic_0001>

<llo_original>
// kernel: atomic_reconstruction_forward.1
$region0: #{atomic_reconstruction_forward.1}
  #allocation0 [shape = 'u32[]', space=smem, size = 0x4, offset = 0x4, fixed_abs, tag = 'smem constant byte address 0x4 - core index']
  #allocation1 [shape = 'u32[144,128]{1,0:T(1,128)}', space=vmem, size = 0x12000, scoped, tag = 'internal scratch']
  %s0 = inlined_call_operand.vmem [shape: f32[8,128], index: 0, kind: input, shape index: {}]
  %s1 = inlined_call_operand.vmem [shape: f32[8,128], index: 1, kind: input, shape index: {}]
  %s2 = inlined_call_operand.vmem [shape: f32[8,128], index: 2, kind: input, shape index: {}]
  %s3 = inlined_call_operand.vmem [shape: bf16[128,128], index: 3, kind: input, shape index: {}]
  %s4 = inlined_call_operand.hbm [shape: f32[4,128], index: 4, kind: input, shape index: {}]
  %s5 = inlined_call_operand.hbm [shape: bf16[128,128], index: 5, kind: input, shape index: {}]
  %s6 = inlined_call_operand.vmem [shape: bf16[128,128], index: 6, kind: input, shape index: {}]
  %s7 = inlined_call_operand.vmem [shape: f32[1,128], index: 7, kind: input, shape index: {}]
  %s8 = inlined_call_operand.hbm [shape: bf16[128,128], index: 8, kind: input, shape index: {}]
  %s9 = inlined_call_operand.vmem [shape: f32[1,128], index: 9, kind: input, shape index: {}]
  %s10 = inlined_call_operand.hbm [shape: bf16[128,128], index: 10, kind: input, shape index: {}]
  %s11 = inlined_call_operand.hbm [shape: f32[4,128], index: 11, kind: input, shape index: {}]
  %s12 = inlined_call_operand.hbm [shape: bf16[128,128], index: 12, kind: input, shape index: {}]
  %s13 = inlined_call_operand.hbm [shape: bf16[128,128], index: 13, kind: input, shape index: {}]
  %s14 = inlined_call_operand.hbm [shape: f32[1,128], index: 14, kind: input, shape index: {}]
  %s15 = inlined_call_operand.hbm [shape: bf16[3,128,128], index: 15, kind: input, shape index: {}]
  %s16 = inlined_call_operand.hbm [shape: bf16[3,128,128], index: 16, kind: input, shape index: {}]
  %s17 = inlined_call_operand.hbm [shape: f32[3,4,128], index: 17, kind: input, shape index: {}]
  %s18 = inlined_call_operand.hbm [shape: bf16[3,128,128], index: 18, kind: input, shape index: {}]
  %s19 = inlined_call_operand.hbm [shape: bf16[3,128,128], index: 19, kind: input, shape index: {}]
  %s20 = inlined_call_operand.hbm [shape: f32[3,1,128], index: 20, kind: input, shape index: {}]
  %s21 = inlined_call_operand.hbm [shape: bf16[128,128], index: 21, kind: input, shape index: {}]
  %s22 = inlined_call_operand.hbm [shape: f32[1,128], index: 22, kind: input, shape index: {}]
  %s23 = inlined_call_operand.hbm [shape: f32[8,128], index: 23, kind: output, shape index: {0}]
  %s24 = inlined_call_operand.hbm [shape: f32[8,128], index: 24, kind: output, shape index: {1}]
  %s25 = inlined_call_operand.hbm [shape: f32[8,128], index: 25, kind: output, shape index: {2}]
  %26 = xla_tuple %s23, %s24, %s25
  %s27 = sld [smem:[#allocation0]]
  $region182: #{atomic_reconstruction_forward.1} parent=0
    _
  %s29 = ssub.s32 1, %s27
  %s30 = scalar_select 0, %s29, %s27
  $region1: #{atomic_reconstruction_forward.1} parent=0
    #allocation2 [shape = 'u8[2048]{0}', space=vmem, size = 0x800, scoped, tag = 'input window, operand 4, single buffered']
    #allocation3 [shape = 's32[1]{0}', space=sflag, size = 0x4, scoped, tag = 'scoped memory for atomic_reconstruction_forward.1']
    #allocation4 [shape = 's32[1]{0}', space=sflag, size = 0x4, scoped, tag = 'scoped memory for atomic_reconstruction_forward.1']
    #allocation5 [shape = 'u8[32768]{0}', space=vmem, size = 0x8000, scoped, tag = 'input window, operand 5, single buffered']
    #allocation6 [shape = 's32[1]{0}', space=sflag, size = 0x4, scoped, tag = 'scoped memory for atomic_reconstruction_forward.1']
    #allocation7 [shape = 'u8[32768]{0}', space=vmem, size = 0x8000, scoped, tag = 'input window, operand 8, single buffered']
    #allocation8 [shape = 'u8[32768]{0}', space=vmem, size = 0x8000, scoped, tag = 'input window, operand 10, single buffered']
    #allocation9 [shape = 's32[1]{0}', space=sflag, size = 0x4, scoped, tag = 'scoped memory for atomic_reconstruction_forward.1']
    #allocation10 [shape = 'u8[2048]{0}', space=vmem, size = 0x800, scoped, tag = 'input window, operand 11, single buffered']
    #allocation11 [shape = 'u8[32768]{0}', space=vmem, size = 0x8000, scoped, tag = 'input window, operand 12, single buffered']
    #allocation12 [shape = 's32[1]{0}', space=sflag, size = 0x4, scoped, tag = 'scoped memory for atomic_reconstruction_forward.1']
    #allocation13 [shape = 'u8[32768]{0}', space=vmem, size = 0x8000, scoped, tag = 'input window, operand 13, single buffered']
    #allocation14 [shape = 'u8[512]{0}', space=vmem, size = 0x400, scoped, tag = 'input window, operand 14, single buffered']
    #allocation15 [shape = 's32[1]{0}', space=sflag, size = 0x4, scoped, tag = 'scoped memory for atomic_reconstruction_forward.1']
    #allocation16 [shape = 'u8[98304]{0}', space=vmem, size = 0x18000, scoped, tag = 'input window, operand 15, single buffered']
    #allocation17 [shape = 'u8[98304]{0}', space=vmem, size = 0x18000, scoped, tag = 'input window, operand 16, single buffered']
    #allocation18 [shape = 's32[1]{0}', space=sflag, size = 0x4, scoped, tag = 'scoped memory for atomic_reconstruction_forward.1']
    #allocation19 [shape = 'u8[6144]{0}', space=vmem, size = 0x1800, scoped, tag = 'input window, operand 17, single buffered']
    #allocation20 [shape = 'u8[98304]{0}', space=vmem, size = 0x18000, scoped, tag = 'input window, operand 18, single buffered']
    #allocation21 [shape = 's32[1]{0}', space=sflag, size = 0x4, scoped, tag = 'scoped memory for atomic_reconstruction_forward.1']
    #allocation22 [shape = 'u8[98304]{0}', space=vmem, size = 0x18000, scoped, tag = 'input window, operand 19, single buffered']
    #allocation23 [shape = 'u8[1536]{0}', space=vmem, size = 0x800, scoped, tag = 'input window, operand 20, single buffered']
    #allocation24 [shape = 's32[1]{0}', space=sflag, size = 0x4, scoped, tag = 'scoped memory for atomic_reconstruction_forward.1']
    #allocation25 [shape = 'u8[32768]{0}', space=vmem, size = 0x8000, scoped, tag = 'input window, operand 21, single buffered']
    #allocation26 [shape = 'u8[512]{0}', space=vmem, size = 0x400, scoped, tag = 'input window, operand 22, single buffered']
    #allocation27 [shape = 's32[1]{0}', space=sflag, size = 0x4, scoped, tag = 'scoped memory for atomic_reconstruction_forward.1']
    #allocation28 [shape = 'u8[4096]{0}', space=vmem, size = 0x1000, scoped, tag = 'output window, operand 0, single buffered']
    #allocation29 [shape = 'u8[4096]{0}', space=vmem, size = 0x1000, scoped, tag = 'output window, operand 1, single buffered']
    #allocation30 [shape = 's32[1]{0}', space=sflag, size = 0x4, scoped, tag = 'scoped memory for atomic_reconstruction_forward.1']
    #allocation31 [shape = 'u8[4096]{0}', space=vmem, size = 0x1000, scoped, tag = 'output window, operand 2, single buffered']
    %31 = vsyncpa [#allocation3], 0
    %32 = vsyncpa [#allocation6], 0
    %33 = vsyncpa [#allocation9], 0
    %34 = vsyncpa [#allocation12], 0
    %35 = vsyncpa [#allocation15], 0
    %36 = vsyncpa [#allocation18], 0
    %37 = vsyncpa [#allocation21], 0
    %38 = vsyncpa [#allocation24], 0
    %39 = vsyncpa [#allocation27], 0
    %40 = vsyncpa [#allocation4], 0
    %41 = vsyncpa [#allocation30], 0
    // Predicated region
    $region2: #{atomic_reconstruction_forward.1} parent=1 // pred_check
      _
    $region3: #{atomic_reconstruction_forward.1} parent=1 // pred_check_branch
      %43 = sbr.rel (0) target = $region5
    $region4: #{atomic_reconstruction_forward.1} parent=1 // pred_region
      _
    $region5: #{atomic_reconstruction_forward.1} parent=1 // pred_fallthru
      _
    // Predicated region
    $region6: #{atomic_reconstruction_forward.1} parent=1 // pred_check
      _
    $region7: #{atomic_reconstruction_forward.1} parent=1 // pred_check_branch
      %45 = sbr.rel (0) target = $region9
    $region8: #{atomic_reconstruction_forward.1} parent=1 // pred_region
      _
    $region9: #{atomic_reconstruction_forward.1} parent=1 // pred_fallthru
      _
    // Predicated region
    $region10: #{atomic_reconstruction_forward.1} parent=1 // pred_check
      _
    $region11: #{atomic_reconstruction_forward.1} parent=1 // pred_check_branch
      %47 = sbr.rel (0) target = $region13
    $region12: #{atomic_reconstruction_forward.1} parent=1 // pred_region
      _
    $region13: #{atomic_reconstruction_forward.1} parent=1 // pred_fallthru
      _
    // Predicated region
    $region14: #{atomic_reconstruction_forward.1} parent=1 // pred_check
      _
    $region15: #{atomic_reconstruction_forward.1} parent=1 // pred_check_branch
      %49 = sbr.rel (0) target = $region17
    $region16: #{atomic_reconstruction_forward.1} parent=1 // pred_region
      _
    $region17: #{atomic_reconstruction_forward.1} parent=1 // pred_fallthru
      _
    // Predicated region
    $region18: #{atomic_reconstruction_forward.1} parent=1 // pred_check
      _
    $region19: #{atomic_reconstruction_forward.1} parent=1 // pred_check_branch
      %51 = sbr.rel (0) target = $region21
    $region20: #{atomic_reconstruction_forward.1} parent=1 // pred_region
      %s53 = ssub.s32 64, 64
      %54 = vsyncadd [#allocation3], %s53
      %s56 = sshll.u32 [#allocation2], 4
      %s57 = int_to_ptr.vmem [resolvable:$true] %s56
      %59 = dma.hbm_to_vmem [thread:$0]  %s4, 64, %s57, [#allocation3]
    $region21: #{atomic_reconstruction_forward.1} parent=1 // pred_fallthru
      _
    // Predicated region
    $region22: #{atomic_reconstruction_forward.1} parent=1 // pred_check
      _
    $region23: #{atomic_reconstruction_forward.1} parent=1 // pred_check_branch
      %61 = sbr.rel (0) target = $region25
    $region24: #{atomic_reconstruction_forward.1} parent=1 // pred_region
      %s63 = ssub.s32 1024, 1024
      %64 = vsyncadd [#allocation6], %s63
      %s65 = sshll.u32 [#allocation5], 4
      %s66 = int_to_ptr.vmem [resolvable:$true] %s65
      %71 = dma.hbm_to_vmem [thread:$0]  %s5, 1024, %s66, [#allocation6], 64, 64, 4
    $region25: #{atomic_reconstruction_forward.1} parent=1 // pred_fallthru
      _
    // Predicated region
    $region26: #{atomic_reconstruction_forward.1} parent=1 // pred_check
      _
    $region27: #{atomic_reconstruction_forward.1} parent=1 // pred_check_branch
      %73 = sbr.rel (0) target = $region29
    $region28: #{atomic_reconstruction_forward.1} parent=1 // pred_region
      _
    $region29: #{atomic_reconstruction_forward.1} parent=1 // pred_fallthru
      _
    // Predicated region
    $region30: #{atomic_reconstruction_forward.1} parent=1 // pred_check
      _
    $region31: #{atomic_reconstruction_forward.1} parent=1 // pred_check_branch
      %75 = sbr.rel (0) target = $region33
    $region32: #{atomic_reconstruction_forward.1} parent=1 // pred_region
      _
    $region33: #{atomic_reconstruction_forward.1} parent=1 // pred_fallthru
      _
    // Predicated region
    $region34: #{atomic_reconstruction_forward.1} parent=1 // pred_check
      _
    $region35: #{atomic_reconstruction_forward.1} parent=1 // pred_check_branch
      %77 = sbr.rel (0) target = $region37
    $region36: #{atomic_reconstruction_forward.1} parent=1 // pred_region
      %s79 = ssub.s32 1024, 1024
      %80 = vsyncadd [#allocation6], %s79
      %s81 = sshll.u32 [#allocation7], 4
      %s82 = int_to_ptr.vmem [resolvable:$true] %s81
      %87 = dma.hbm_to_vmem [thread:$0]  %s8, 1024, %s82, [#allocation6], 64, 64, 4
    $region37: #{atomic_reconstruction_forward.1} parent=1 // pred_fallthru
      _
    // Predicated region
    $region38: #{atomic_reconstruction_forward.1} parent=1 // pred_check
      _
    $region39: #{atomic_reconstruction_forward.1} parent=1 // pred_check_branch
      %89 = sbr.rel (0) target = $region41
    $region40: #{atomic_reconstruction_forward.1} parent=1 // pred_region
      _
    $region41: #{atomic_reconstruction_forward.1} parent=1 // pred_fallthru
      _
    // Predicated region
    $region42: #{atomic_reconstruction_forward.1} parent=1 // pred_check
      _
    $region43: #{atomic_reconstruction_forward.1} parent=1 // pred_check_branch
      %91 = sbr.rel (0) target = $region45
    $region44: #{atomic_reconstruction_forward.1} parent=1 // pred_region
      %s93 = ssub.s32 1024, 1024
      %94 = vsyncadd [#allocation9], %s93
      %s95 = sshll.u32 [#allocation8], 4
      %s96 = int_to_ptr.vmem [resolvable:$true] %s95
      %101 = dma.hbm_to_vmem [thread:$0]  %s10, 1024, %s96, [#allocation9], 64, 64, 4
    $region45: #{atomic_reconstruction_forward.1} parent=1 // pred_fallthru
      _
    // Predicated region
    $region46: #{atomic_reconstruction_forward.1} parent=1 // pred_check
      _
    $region47: #{atomic_reconstruction_forward.1} parent=1 // pred_check_branch
      %103 = sbr.rel (0) target = $region49
    $region48: #{atomic_reconstruction_forward.1} parent=1 // pred_region
      %s105 = ssub.s32 64, 64
      %106 = vsyncadd [#allocation9], %s105
      %s108 = sshll.u32 [#allocation10], 4
      %s109 = int_to_ptr.vmem [resolvable:$true] %s108
      %111 = dma.hbm_to_vmem [thread:$0]  %s11, 64, %s109, [#allocation9]
    $region49: #{atomic_reconstruction_forward.1} parent=1 // pred_fallthru
      _
    // Predicated region
    $region50: #{atomic_reconstruction_forward.1} parent=1 // pred_check
      _
    $region51: #{atomic_reconstruction_forward.1} parent=1 // pred_check_branch
      %113 = sbr.rel (0) target = $region53
    $region52: #{atomic_reconstruction_forward.1} parent=1 // pred_region
      %s115 = ssub.s32 1024, 1024
      %116 = vsyncadd [#allocation12], %s115
      %s117 = sshll.u32 [#allocation11], 4
      %s118 = int_to_ptr.vmem [resolvable:$true] %s117
      %123 = dma.hbm_to_vmem [thread:$0]  %s12, 1024, %s118, [#allocation12], 64, 64, 4
    $region53: #{atomic_reconstruction_forward.1} parent=1 // pred_fallthru
      _
    // Predicated region
    $region54: #{atomic_reconstruction_forward.1} parent=1 // pred_check
      _
    $region55: #{atomic_reconstruction_forward.1} parent=1 // pred_check_branch
      %125 = sbr.rel (0) target = $region57
    $region56: #{atomic_reconstruction_forward.1} parent=1 // pred_region
      %s127 = ssub.s32 1024, 1024
      %128 = vsyncadd [#allocation12], %s127
      %s129 = sshll.u32 [#allocation13], 4
      %s130 = int_to_ptr.vmem [resolvable:$true] %s129
      %135 = dma.hbm_to_vmem [thread:$0]  %s13, 1024, %s130, [#allocation12], 64, 64, 4
    $region57: #{atomic_reconstruction_forward.1} parent=1 // pred_fallthru
      _
    // Predicated region
    $region58: #{atomic_reconstruction_forward.1} parent=1 // pred_check
      _
    $region59: #{atomic_reconstruction_forward.1} parent=1 // pred_check_branch
      %137 = sbr.rel (0) target = $region61
    $region60: #{atomic_reconstruction_forward.1} parent=1 // pred_region
      %s139 = ssub.s32 16, 16
      %140 = vsyncadd [#allocation15], %s139
      %s142 = sshll.u32 [#allocation14], 4
      %s143 = int_to_ptr.vmem [resolvable:$true] %s142
      %145 = dma.hbm_to_vmem [thread:$0]  %s14, 16, %s143, [#allocation15]
    $region61: #{atomic_reconstruction_forward.1} parent=1 // pred_fallthru
      _
    // Predicated region
    $region62: #{atomic_reconstruction_forward.1} parent=1 // pred_check
      _
    $region63: #{atomic_reconstruction_forward.1} parent=1 // pred_check_branch
      %147 = sbr.rel (0) target = $region65
    $region64: #{atomic_reconstruction_forward.1} parent=1 // pred_region
      %s149 = ssub.s32 3072, 3072
      %150 = vsyncadd [#allocation15], %s149
      %s151 = sshll.u32 [#allocation16], 4
      %s152 = int_to_ptr.vmem [resolvable:$true] %s151
      %157 = dma.hbm_to_vmem [thread:$0]  %s15, 3072, %s152, [#allocation15], 64, 64, 4
    $region65: #{atomic_reconstruction_forward.1} parent=1 // pred_fallthru
      _
    // Predicated region
    $region66: #{atomic_reconstruction_forward.1} parent=1 // pred_check
      _
    $region67: #{atomic_reconstruction_forward.1} parent=1 // pred_check_branch
      %159 = sbr.rel (0) target = $region69
    $region68: #{atomic_reconstruction_forward.1} parent=1 // pred_region
      %s161 = ssub.s32 3072, 3072
      %162 = vsyncadd [#allocation18], %s161
      %s163 = sshll.u32 [#allocation17], 4
      %s164 = int_to_ptr.vmem [resolvable:$true] %s163
      %169 = dma.hbm_to_vmem [thread:$0]  %s16, 3072, %s164, [#allocation18], 64, 64, 4
    $region69: #{atomic_reconstruction_forward.1} parent=1 // pred_fallthru
      _
    // Predicated region
    $region70: #{atomic_reconstruction_forward.1} parent=1 // pred_check
      _
    $region71: #{atomic_reconstruction_forward.1} parent=1 // pred_check_branch
      %171 = sbr.rel (0) target = $region73
    $region72: #{atomic_reconstruction_forward.1} parent=1 // pred_region
      %s173 = ssub.s32 192, 192
      %174 = vsyncadd [#allocation18], %s173
      %s175 = sshll.u32 [#allocation19], 4
      %s176 = int_to_ptr.vmem [resolvable:$true] %s175
      %181 = dma.hbm_to_vmem [thread:$0]  %s17, 192, %s176, [#allocation18], 64, 64, 4
    $region73: #{atomic_reconstruction_forward.1} parent=1 // pred_fallthru
      _
    // Predicated region
    $region74: #{atomic_reconstruction_forward.1} parent=1 // pred_check
      _
    $region75: #{atomic_reconstruction_forward.1} parent=1 // pred_check_branch
      %183 = sbr.rel (0) target = $region77
    $region76: #{atomic_reconstruction_forward.1} parent=1 // pred_region
      %s185 = ssub.s32 3072, 3072
      %186 = vsyncadd [#allocation21], %s185
      %s187 = sshll.u32 [#allocation20], 4
      %s188 = int_to_ptr.vmem [resolvable:$true] %s187
      %193 = dma.hbm_to_vmem [thread:$0]  %s18, 3072, %s188, [#allocation21], 64, 64, 4
    $region77: #{atomic_reconstruction_forward.1} parent=1 // pred_fallthru
      _
    // Predicated region
    $region78: #{atomic_reconstruction_forward.1} parent=1 // pred_check
      _
    $region79: #{atomic_reconstruction_forward.1} parent=1 // pred_check_branch
      %195 = sbr.rel (0) target = $region81
    $region80: #{atomic_reconstruction_forward.1} parent=1 // pred_region
      %s197 = ssub.s32 3072, 3072
      %198 = vsyncadd [#allocation21], %s197
      %s199 = sshll.u32 [#allocation22], 4
      %s200 = int_to_ptr.vmem [resolvable:$true] %s199
      %205 = dma.hbm_to_vmem [thread:$0]  %s19, 3072, %s200, [#allocation21], 64, 64, 4
    $region81: #{atomic_reconstruction_forward.1} parent=1 // pred_fallthru
      _
    // Predicated region
    $region82: #{atomic_reconstruction_forward.1} parent=1 // pred_check
      _
    $region83: #{atomic_reconstruction_forward.1} parent=1 // pred_check_branch
      %207 = sbr.rel (0) target = $region85
    $region84: #{atomic_reconstruction_forward.1} parent=1 // pred_region
      %s209 = ssub.s32 48, 48
      %210 = vsyncadd [#allocation24], %s209
      %s211 = sshll.u32 [#allocation23], 4
      %s212 = int_to_ptr.vmem [resolvable:$true] %s211
      %217 = dma.hbm_to_vmem [thread:$0]  %s20, 48, %s212, [#allocation24], 16, 16, 1
    $region85: #{atomic_reconstruction_forward.1} parent=1 // pred_fallthru
      _
    // Predicated region
    $region86: #{atomic_reconstruction_forward.1} parent=1 // pred_check
      _
    $region87: #{atomic_reconstruction_forward.1} parent=1 // pred_check_branch
      %219 = sbr.rel (0) target = $region89
    $region88: #{atomic_reconstruction_forward.1} parent=1 // pred_region
      %s221 = ssub.s32 1024, 1024
      %222 = vsyncadd [#allocation24], %s221
      %s223 = sshll.u32 [#allocation25], 4
      %s224 = int_to_ptr.vmem [resolvable:$true] %s223
      %229 = dma.hbm_to_vmem [thread:$0]  %s21, 1024, %s224, [#allocation24], 64, 64, 4
    $region89: #{atomic_reconstruction_forward.1} parent=1 // pred_fallthru
      _
    // Predicated region
    $region90: #{atomic_reconstruction_forward.1} parent=1 // pred_check
      _
    $region91: #{atomic_reconstruction_forward.1} parent=1 // pred_check_branch
      %231 = sbr.rel (0) target = $region93
    $region92: #{atomic_reconstruction_forward.1} parent=1 // pred_region
      %s233 = ssub.s32 16, 16
      %234 = vsyncadd [#allocation27], %s233
      %s236 = sshll.u32 [#allocation26], 4
      %s237 = int_to_ptr.vmem [resolvable:$true] %s236
      %239 = dma.hbm_to_vmem [thread:$0]  %s22, 16, %s237, [#allocation27]
    $region93: #{atomic_reconstruction_forward.1} parent=1 // pred_fallthru
      _
    // Predicated region
    $region94: #{atomic_reconstruction_forward.1} parent=1 // pred_check
      _
    $region95: #{atomic_reconstruction_forward.1} parent=1 // pred_check_branch
      %241 = sbr.rel (0) target = $region97
    $region96: #{atomic_reconstruction_forward.1} parent=1 // pred_region
      %242 = dma.done [#allocation3], 64
    $region97: #{atomic_reconstruction_forward.1} parent=1 // pred_fallthru
      _
    // Predicated region
    $region98: #{atomic_reconstruction_forward.1} parent=1 // pred_check
      _
    $region99: #{atomic_reconstruction_forward.1} parent=1 // pred_check_branch
      %244 = sbr.rel (0) target = $region101
    $region100: #{atomic_reconstruction_forward.1} parent=1 // pred_region
      %245 = dma.done [#allocation6], 1024
    $region101: #{atomic_reconstruction_forward.1} parent=1 // pred_fallthru
      _
    // Predicated region
    $region102: #{atomic_reconstruction_forward.1} parent=1 // pred_check
      _
    $region103: #{atomic_reconstruction_forward.1} parent=1 // pred_check_branch
      %247 = sbr.rel (0) target = $region105
    $region104: #{atomic_reconstruction_forward.1} parent=1 // pred_region
      %248 = dma.done [#allocation6], 1024
    $region105: #{atomic_reconstruction_forward.1} parent=1 // pred_fallthru
      _
    // Predicated region
    $region106: #{atomic_reconstruction_forward.1} parent=1 // pred_check
      _
    $region107: #{atomic_reconstruction_forward.1} parent=1 // pred_check_branch
      %250 = sbr.rel (0) target = $region109
    $region108: #{atomic_reconstruction_forward.1} parent=1 // pred_region
      %251 = dma.done [#allocation9], 1024
    $region109: #{atomic_reconstruction_forward.1} parent=1 // pred_fallthru
      _
    // Predicated region
    $region110: #{atomic_reconstruction_forward.1} parent=1 // pred_check
      _
    $region111: #{atomic_reconstruction_forward.1} parent=1 // pred_check_branch
      %253 = sbr.rel (0) target = $region113
    $region112: #{atomic_reconstruction_forward.1} parent=1 // pred_region
      %254 = dma.done [#allocation9], 64
    $region113: #{atomic_reconstruction_forward.1} parent=1 // pred_fallthru
      _
    // Predicated region
    $region114: #{atomic_reconstruction_forward.1} parent=1 // pred_check
      _
    $region115: #{atomic_reconstruction_forward.1} parent=1 // pred_check_branch
      %256 = sbr.rel (0) target = $region117
    $region116: #{atomic_reconstruction_forward.1} parent=1 // pred_region
      %257 = dma.done [#allocation12], 1024
    $region117: #{atomic_reconstruction_forward.1} parent=1 // pred_fallthru
      _
    // Predicated region
    $region118: #{atomic_reconstruction_forward.1} parent=1 // pred_check
      _
    $region119: #{atomic_reconstruction_forward.1} parent=1 // pred_check_branch
      %259 = sbr.rel (0) target = $region121
    $region120: #{atomic_reconstruction_forward.1} parent=1 // pred_region
      %260 = dma.done [#allocation12], 1024
    $region121: #{atomic_reconstruction_forward.1} parent=1 // pred_fallthru
      _
    // Predicated region
    $region122: #{atomic_reconstruction_forward.1} parent=1 // pred_check
      _
    $region123: #{atomic_reconstruction_forward.1} parent=1 // pred_check_branch
      %262 = sbr.rel (0) target = $region125
    $region124: #{atomic_reconstruction_forward.1} parent=1 // pred_region
      %263 = dma.done [#allocation15], 16
    $region125: #{atomic_reconstruction_forward.1} parent=1 // pred_fallthru
      _
    // Predicated region
    $region126: #{atomic_reconstruction_forward.1} parent=1 // pred_check
      _
    $region127: #{atomic_reconstruction_forward.1} parent=1 // pred_check_branch
      %265 = sbr.rel (0) target = $region129
    $region128: #{atomic_reconstruction_forward.1} parent=1 // pred_region
      %266 = dma.done [#allocation15], 3072
    $region129: #{atomic_reconstruction_forward.1} parent=1 // pred_fallthru
      _
    // Predicated region
    $region130: #{atomic_reconstruction_forward.1} parent=1 // pred_check
      _
    $region131: #{atomic_reconstruction_forward.1} parent=1 // pred_check_branch
      %268 = sbr.rel (0) target = $region133
    $region132: #{atomic_reconstruction_forward.1} parent=1 // pred_region
      %269 = dma.done [#allocation18], 3072
    $region133: #{atomic_reconstruction_forward.1} parent=1 // pred_fallthru
      _
    // Predicated region
    $region134: #{atomic_reconstruction_forward.1} parent=1 // pred_check
      _
    $region135: #{atomic_reconstruction_forward.1} parent=1 // pred_check_branch
      %271 = sbr.rel (0) target = $region137
    $region136: #{atomic_reconstruction_forward.1} parent=1 // pred_region
      %272 = dma.done [#allocation18], 192
    $region137: #{atomic_reconstruction_forward.1} parent=1 // pred_fallthru
      _
    // Predicated region
    $region138: #{atomic_reconstruction_forward.1} parent=1 // pred_check
      _
    $region139: #{atomic_reconstruction_forward.1} parent=1 // pred_check_branch
      %274 = sbr.rel (0) target = $region141
    $region140: #{atomic_reconstruction_forward.1} parent=1 // pred_region
      %275 = dma.done [#allocation21], 3072
    $region141: #{atomic_reconstruction_forward.1} parent=1 // pred_fallthru
      _
    // Predicated region
    $region142: #{atomic_reconstruction_forward.1} parent=1 // pred_check
      _
    $region143: #{atomic_reconstruction_forward.1} parent=1 // pred_check_branch
      %277 = sbr.rel (0) target = $region145
    $region144: #{atomic_reconstruction_forward.1} parent=1 // pred_region
      %278 = dma.done [#allocation21], 3072
    $region145: #{atomic_reconstruction_forward.1} parent=1 // pred_fallthru
      _
    // Predicated region
    $region146: #{atomic_reconstruction_forward.1} parent=1 // pred_check
      _
    $region147: #{atomic_reconstruction_forward.1} parent=1 // pred_check_branch
      %280 = sbr.rel (0) target = $region149
    $region148: #{atomic_reconstruction_forward.1} parent=1 // pred_region
      %281 = dma.done [#allocation24], 48
    $region149: #{atomic_reconstruction_forward.1} parent=1 // pred_fallthru
      _
    // Predicated region
    $region150: #{atomic_reconstruction_forward.1} parent=1 // pred_check
      _
    $region151: #{atomic_reconstruction_forward.1} parent=1 // pred_check_branch
      %283 = sbr.rel (0) target = $region153
    $region152: #{atomic_reconstruction_forward.1} parent=1 // pred_region
      %284 = dma.done [#allocation24], 1024
    $region153: #{atomic_reconstruction_forward.1} parent=1 // pred_fallthru
      _
    // Predicated region
    $region154: #{atomic_reconstruction_forward.1} parent=1 // pred_check
      _
    $region155: #{atomic_reconstruction_forward.1} parent=1 // pred_check_branch
      %286 = sbr.rel (0) target = $region157
    $region156: #{atomic_reconstruction_forward.1} parent=1 // pred_region
      %287 = dma.done [#allocation27], 16
    $region157: #{atomic_reconstruction_forward.1} parent=1 // pred_fallthru
      _
    %v289 = vld [vmem:[#allocation2] sm:$0xf]
    %v290 = vld [vmem:[%s0] sm:$0xff]
    %v291 = vld [vmem:[%s3] sm:$0xf]
    %v292 = vld [vmem:[%s3 + $0x4] sm:$0xf]
    %v293 = vld [vmem:[%s3 + $0x8] sm:$0xf]
    %v294 = vld [vmem:[%s3 + $0xc] sm:$0xf]
    %v295 = vld [vmem:[%s3 + $0x10] sm:$0xf]
    %v296 = vld [vmem:[%s3 + $0x14] sm:$0xf]
    %v297 = vld [vmem:[%s3 + $0x18] sm:$0xf]
    %v298 = vld [vmem:[%s3 + $0x1c] sm:$0xf]
    %v299 = vld [vmem:[%s3 + $0x20] sm:$0xf]
    %v300 = vld [vmem:[%s3 + $0x24] sm:$0xf]
    %v301 = vld [vmem:[%s3 + $0x28] sm:$0xf]
    %v302 = vld [vmem:[%s3 + $0x2c] sm:$0xf]
    %v303 = vld [vmem:[%s3 + $0x30] sm:$0xf]
    %v304 = vld [vmem:[%s3 + $0x34] sm:$0xf]
    %v305 = vld [vmem:[%s3 + $0x38] sm:$0xf]
    %v306 = vld [vmem:[%s3 + $0x3c] sm:$0xf]
    %v307 = vpack.c.bf16 %v290, %v290
    %v324 = vunpack.c.l.b16 %v291
    %v325 = vunpack.c.l.b16 %v292
    %v326 = vunpack.c.l.b16 %v293
    %v327 = vunpack.c.l.b16 %v294
    %v328 = vunpack.c.l.b16 %v295
    %v329 = vunpack.c.l.b16 %v296
    %v330 = vunpack.c.l.b16 %v297
    %v331 = vunpack.c.l.b16 %v298
    %v332 = vunpack.c.l.b16 %v299
    %v333 = vunpack.c.l.b16 %v300
    %v334 = vunpack.c.l.b16 %v301
    %v335 = vunpack.c.l.b16 %v302
    %v336 = vunpack.c.l.b16 %v303
    %v337 = vunpack.c.l.b16 %v304
    %v338 = vunpack.c.l.b16 %v305
    %v339 = vunpack.c.l.b16 %v306
    %v340 = vpack.c.b16 %v325, %v324
    %v341 = vpack.c.b16 %v327, %v326
    %v342 = vpack.c.b16 %v329, %v328
    %v343 = vpack.c.b16 %v331, %v330
    %v344 = vpack.c.b16 %v333, %v332
    %v345 = vpack.c.b16 %v335, %v334
    %v346 = vpack.c.b16 %v337, %v336
    %v347 = vpack.c.b16 %v339, %v338
    %356 = vmatprep.subr.bf16.mxu0 0
    %357 = vmatpush1.bf16.msra.mxu0 %v340
    %358 = vmatprep.subr.bf16.mxu0 0
    %359 = vmatpush1.bf16.msra.mxu0 %v341
    %360 = vmatprep.subr.bf16.mxu0 0
    %361 = vmatpush1.bf16.msra.mxu0 %v342
    %362 = vmatprep.subr.bf16.mxu0 0
    %363 = vmatpush1.bf16.msra.mxu0 %v343
    %364 = vmatprep.subr.bf16.mxu0 0
    %365 = vmatpush1.bf16.msra.mxu0 %v344
    %366 = vmatprep.subr.bf16.mxu0 0
    %367 = vmatpush1.bf16.msra.mxu0 %v345
    %368 = vmatprep.subr.bf16.mxu0 0
    %369 = vmatpush1.bf16.msra.mxu0 %v346
    %370 = vmatprep.subr.bf16.mxu0 0
    %371 = vmatpush1.bf16.msra.mxu0 %v347
    %372 = vmatprep.subr.bf16.mxu0 0
    %373 = vmatpush1.bf16.msra.mxu0 0
    %374 = vmatprep.subr.bf16.mxu0 0
    %375 = vmatpush1.bf16.msra.mxu0 0
    %376 = vmatprep.subr.bf16.mxu0 0
    %377 = vmatpush1.bf16.msra.mxu0 0
    %378 = vmatprep.subr.bf16.mxu0 0
    %379 = vmatpush1.bf16.msra.mxu0 0
    %380 = vmatprep.subr.bf16.mxu0 0
    %381 = vmatpush1.bf16.msra.mxu0 0
    %382 = vmatprep.subr.bf16.mxu0 0
    %383 = vmatpush1.bf16.msra.mxu0 0
    %384 = vmatprep.subr.bf16.mxu0 0
    %385 = vmatpush1.bf16.msra.mxu0 0
    %386 = vmatprep.subr.bf16.mxu0 0
    %387 = vmatpush1.bf16.msra.mxu0 0
    %388 = vmatprep.mubr.bf16.mxu0 0
    %389 = vmatmul.mubr.bf16.gmra.mrb[0].mxu0 %v307
    %v390 = vpop.f32.mrb[0].mxu0
    %v391 = vadd.f32 0.0, %v390
    %v392 = vpop.f32.mrb[0].mxu0
    %v393 = vpop.f32.mrb[0].mxu0
    %v394 = vpop.f32.mrb[0].mxu0
    %395 = vdwg.mxu0
    %v396 = vrot.slane %v391, 4
    %v397 = vadd.f32 %v391, %v396
    %v398 = vrot.slane %v397, 2
    %v399 = vadd.f32 %v397, %v398
    %v400 = vrot.slane %v399, 1
    %v401 = vadd.f32 %v399, %v400
    %v402 = vrcp.pop 8.0
    %v403 = vmul.f32 %v401, %v402
    %v404 = vsub.f32 %v391, %v403
    %v405 = vmul.f32 %v404, %v404
    %v406 = vrot.slane %v405, 4
    %v407 = vadd.f32 %v405, %v406
    %v408 = vrot.slane %v407, 2
    %v409 = vadd.f32 %v407, %v408
    %v410 = vrot.slane %v409, 1
    %v411 = vadd.f32 %v409, %v410
    %v412 = vmul.f32 %v411, %v402
    %v413 = vadd.f32 %v412, 1e-05
    %v414 = vrsqrt.pop %v413
    %v415 = vmul.f32 %v414, %v289
    %v416 = vmul.f32 %v403, %v415
    %v418 = vrot.slane %v416, 7
    %v420 = vsub.f32 %v289, %v418
    %v421 = vlaneseq
    %v422 = vshrl.u32 %v421, 7
    %v423 = vsub.s32 0, %v422
    %v424 = vrot.slane %v415, %v423
    %v425 = vmul.f32 %v391, %v424
    %v426 = vlaneseq
    %v427 = vshrl.u32 %v426, 7
    %v428 = vsub.s32 1, %v427
    %v429 = vrot.slane %v420, %v428
    %v430 = vadd.f32 %v425, %v429
    %v431 = vmax.f32 %v430, 0.0
    %v432 = vld [vmem:[#allocation5] sm:$0xf]
    %v433 = vld [vmem:[#allocation5 + $0x4] sm:$0xf]
    %v434 = vld [vmem:[#allocation5 + $0x8] sm:$0xf]
    %v435 = vld [vmem:[#allocation5 + $0xc] sm:$0xf]
    %v436 = vld [vmem:[#allocation5 + $0x10] sm:$0xf]
    %v437 = vld [vmem:[#allocation5 + $0x14] sm:$0xf]
    %v438 = vld [vmem:[#allocation5 + $0x18] sm:$0xf]
    %v439 = vld [vmem:[#allocation5 + $0x1c] sm:$0xf]
    %v440 = vld [vmem:[#allocation5 + $0x20] sm:$0xf]
    %v441 = vld [vmem:[#allocation5 + $0x24] sm:$0xf]
    %v442 = vld [vmem:[#allocation5 + $0x28] sm:$0xf]
    %v443 = vld [vmem:[#allocation5 + $0x2c] sm:$0xf]
    %v444 = vld [vmem:[#allocation5 + $0x30] sm:$0xf]
    %v445 = vld [vmem:[#allocation5 + $0x34] sm:$0xf]
    %v446 = vld [vmem:[#allocation5 + $0x38] sm:$0xf]
    %v447 = vld [vmem:[#allocation5 + $0x3c] sm:$0xf]
    %v448 = vpack.c.bf16 %v431, %v431
    %v465 = vunpack.c.l.b16 %v432
    %v466 = vunpack.c.l.b16 %v433
    %v467 = vunpack.c.l.b16 %v434
    %v468 = vunpack.c.l.b16 %v435
    %v469 = vunpack.c.l.b16 %v436
    %v470 = vunpack.c.l.b16 %v437
    %v471 = vunpack.c.l.b16 %v438
    %v472 = vunpack.c.l.b16 %v439
    %v473 = vunpack.c.l.b16 %v440
    %v474 = vunpack.c.l.b16 %v441
    %v475 = vunpack.c.l.b16 %v442
    %v476 = vunpack.c.l.b16 %v443
    %v477 = vunpack.c.l.b16 %v444
    %v478 = vunpack.c.l.b16 %v445
    %v479 = vunpack.c.l.b16 %v446
    %v480 = vunpack.c.l.b16 %v447
    %v481 = vpack.c.b16 %v466, %v465
    %v482 = vpack.c.b16 %v468, %v467
    %v483 = vpack.c.b16 %v470, %v469
    %v484 = vpack.c.b16 %v472, %v471
    %v485 = vpack.c.b16 %v474, %v473
    %v486 = vpack.c.b16 %v476, %v475
    %v487 = vpack.c.b16 %v478, %v477
    %v488 = vpack.c.b16 %v480, %v479
    %497 = vmatprep.subr.bf16.mxu0 0
    %498 = vmatpush1.bf16.msra.mxu0 %v481
    %499 = vmatprep.subr.bf16.mxu0 0
    %500 = vmatpush1.bf16.msra.mxu0 %v482
    %501 = vmatprep.subr.bf16.mxu0 0
    %502 = vmatpush1.bf16.msra.mxu0 %v483
    %503 = vmatprep.subr.bf16.mxu0 0
    %504 = vmatpush1.bf16.msra.mxu0 %v484
    %505 = vmatprep.subr.bf16.mxu0 0
    %506 = vmatpush1.bf16.msra.mxu0 %v485
    %507 = vmatprep.subr.bf16.mxu0 0
    %508 = vmatpush1.bf16.msra.mxu0 %v486
    %509 = vmatprep.subr.bf16.mxu0 0
    %510 = vmatpush1.bf16.msra.mxu0 %v487
    %511 = vmatprep.subr.bf16.mxu0 0
    %512 = vmatpush1.bf16.msra.mxu0 %v488
    %513 = vmatprep.subr.bf16.mxu0 0
    %514 = vmatpush1.bf16.msra.mxu0 0
    %515 = vmatprep.subr.bf16.mxu0 0
    %516 = vmatpush1.bf16.msra.mxu0 0
    %517 = vmatprep.subr.bf16.mxu0 0
    %518 = vmatpush1.bf16.msra.mxu0 0
    %519 = vmatprep.subr.bf16.mxu0 0
    %520 = vmatpush1.bf16.msra.mxu0 0
    %521 = vmatprep.subr.bf16.mxu0 0
    %522 = vmatpush1.bf16.msra.mxu0 0
    %523 = vmatprep.subr.bf16.mxu0 0
    %524 = vmatpush1.bf16.msra.mxu0 0
    %525 = vmatprep.subr.bf16.mxu0 0
    %526 = vmatpush1.bf16.msra.mxu0 0
    %527 = vmatprep.subr.bf16.mxu0 0
    %528 = vmatpush1.bf16.msra.mxu0 0
    %529 = vmatprep.mubr.bf16.mxu0 0
    %530 = vmatmul.mubr.bf16.gmra.mrb[0].mxu0 %v448
    %v531 = vpop.f32.mrb[0].mxu0
    %v532 = vadd.f32 0.0, %v531
    %v533 = vpop.f32.mrb[0].mxu0
    %v534 = vpop.f32.mrb[0].mxu0
    %v535 = vpop.f32.mrb[0].mxu0
    %536 = vdwg.mxu0
    %v537 = vrot.slane %v532, 4
    %v538 = vadd.f32 %v532, %v537
    %v539 = vrot.slane %v538, 2
    %v540 = vadd.f32 %v538, %v539
    %v541 = vrot.slane %v540, 1
    %v542 = vadd.f32 %v540, %v541
    %v543 = vmul.f32 %v542, %v402
    %v544 = vsub.f32 %v532, %v543
    %v545 = vmul.f32 %v544, %v544
    %v546 = vrot.slane %v545, 4
    %v547 = vadd.f32 %v545, %v546
    %v548 = vrot.slane %v547, 2
    %v549 = vadd.f32 %v547, %v548
    %v550 = vrot.slane %v549, 1
    %v551 = vadd.f32 %v549, %v550
    %v552 = vmul.f32 %v551, %v402
    %v553 = vadd.f32 %v552, 1e-05
    %v554 = vrsqrt.pop %v553
    %v555 = vmul.f32 %v554, %v289
    %v556 = vmul.f32 %v543, %v555
    %v558 = vrot.slane %v556, 7
    %v560 = vsub.f32 %v289, %v558
    %v561 = vlaneseq
    %v562 = vshrl.u32 %v561, 7
    %v563 = vsub.s32 2, %v562
    %v564 = vrot.slane %v555, %v563
    %v565 = vmul.f32 %v532, %v564
    %v566 = vlaneseq
    %v567 = vshrl.u32 %v566, 7
    %v568 = vsub.s32 3, %v567
    %v569 = vrot.slane %v560, %v568
    %v570 = vadd.f32 %v565, %v569
    %v571 = vmax.f32 %v570, 0.0
    %v572 = vld [vmem:[%s6] sm:$0xf]
    %v573 = vld [vmem:[%s6 + $0x4] sm:$0xf]
    %v574 = vld [vmem:[%s6 + $0x8] sm:$0xf]
    %v575 = vld [vmem:[%s6 + $0xc] sm:$0xf]
    %v576 = vld [vmem:[%s6 + $0x10] sm:$0xf]
    %v577 = vld [vmem:[%s6 + $0x14] sm:$0xf]
    %v578 = vld [vmem:[%s6 + $0x18] sm:$0xf]
    %v579 = vld [vmem:[%s6 + $0x1c] sm:$0xf]
    %v580 = vld [vmem:[%s6 + $0x20] sm:$0xf]
    %v581 = vld [vmem:[%s6 + $0x24] sm:$0xf]
    %v582 = vld [vmem:[%s6 + $0x28] sm:$0xf]
    %v583 = vld [vmem:[%s6 + $0x2c] sm:$0xf]
    %v584 = vld [vmem:[%s6 + $0x30] sm:$0xf]
    %v585 = vld [vmem:[%s6 + $0x34] sm:$0xf]
    %v586 = vld [vmem:[%s6 + $0x38] sm:$0xf]
    %v587 = vld [vmem:[%s6 + $0x3c] sm:$0xf]
    %v588 = vpack.c.bf16 %v571, %v571
    %v589 = vld [vmem:[%s7] sm:$0x1]
    %v591 = vlaneseq
    %v592 = vshrl.u32 %v591, 7
    %v593 = vsub.s32 0, %v592
    %v594 = vrot.slane %v589, %v593
    %v612 = vunpack.c.l.b16 %v572
    %v613 = vunpack.c.l.b16 %v573
    %v614 = vunpack.c.l.b16 %v574
    %v615 = vunpack.c.l.b16 %v575
    %v616 = vunpack.c.l.b16 %v576
    %v617 = vunpack.c.l.b16 %v577
    %v618 = vunpack.c.l.b16 %v578
    %v619 = vunpack.c.l.b16 %v579
    %v620 = vunpack.c.l.b16 %v580
    %v621 = vunpack.c.l.b16 %v581
    %v622 = vunpack.c.l.b16 %v582
    %v623 = vunpack.c.l.b16 %v583
    %v624 = vunpack.c.l.b16 %v584
    %v625 = vunpack.c.l.b16 %v585
    %v626 = vunpack.c.l.b16 %v586
    %v627 = vunpack.c.l.b16 %v587
    %v628 = vpack.c.b16 %v613, %v612
    %v629 = vpack.c.b16 %v615, %v614
    %v630 = vpack.c.b16 %v617, %v616
    %v631 = vpack.c.b16 %v619, %v618
    %v632 = vpack.c.b16 %v621, %v620
    %v633 = vpack.c.b16 %v623, %v622
    %v634 = vpack.c.b16 %v625, %v624
    %v635 = vpack.c.b16 %v627, %v626
    %644 = vmatprep.subr.bf16.mxu0 0
    %645 = vmatpush1.bf16.msra.mxu0 %v628
    %646 = vmatprep.subr.bf16.mxu0 0
    %647 = vmatpush1.bf16.msra.mxu0 %v629
    %648 = vmatprep.subr.bf16.mxu0 0
    %649 = vmatpush1.bf16.msra.mxu0 %v630
    %650 = vmatprep.subr.bf16.mxu0 0
    %651 = vmatpush1.bf16.msra.mxu0 %v631
    %652 = vmatprep.subr.bf16.mxu0 0
    %653 = vmatpush1.bf16.msra.mxu0 %v632
    %654 = vmatprep.subr.bf16.mxu0 0
    %655 = vmatpush1.bf16.msra.mxu0 %v633
    %656 = vmatprep.subr.bf16.mxu0 0
    %657 = vmatpush1.bf16.msra.mxu0 %v634
    %658 = vmatprep.subr.bf16.mxu0 0
    %659 = vmatpush1.bf16.msra.mxu0 %v635
    %660 = vmatprep.subr.bf16.mxu0 0
    %661 = vmatpush1.bf16.msra.mxu0 0
    %662 = vmatprep.subr.bf16.mxu0 0
    %663 = vmatpush1.bf16.msra.mxu0 0
    %664 = vmatprep.subr.bf16.mxu0 0
    %665 = vmatpush1.bf16.msra.mxu0 0
    %666 = vmatprep.subr.bf16.mxu0 0
    %667 = vmatpush1.bf16.msra.mxu0 0
    %668 = vmatprep.subr.bf16.mxu0 0
    %669 = vmatpush1.bf16.msra.mxu0 0
    %670 = vmatprep.subr.bf16.mxu0 0
    %671 = vmatpush1.bf16.msra.mxu0 0
    %672 = vmatprep.subr.bf16.mxu0 0
    %673 = vmatpush1.bf16.msra.mxu0 0
    %674 = vmatprep.subr.bf16.mxu0 0
    %675 = vmatpush1.bf16.msra.mxu0 0
    %676 = vmatprep.mubr.bf16.mxu0 0
    %677 = vmatmul.mubr.bf16.gmra.mrb[0].mxu0 %v588
    %v678 = vpop.f32.mrb[0].mxu0
    %v679 = vadd.f32 %v594, %v678
    %v680 = vpop.f32.mrb[0].mxu0
    %v681 = vpop.f32.mrb[0].mxu0
    %v682 = vpop.f32.mrb[0].mxu0
    %683 = vdwg.mxu0
    %v684 = vld [vmem:[#allocation7] sm:$0xf]
    %v685 = vld [vmem:[#allocation7 + $0x4] sm:$0xf]
    %v686 = vld [vmem:[#allocation7 + $0x8] sm:$0xf]
    %v687 = vld [vmem:[#allocation7 + $0xc] sm:$0xf]
    %v688 = vld [vmem:[#allocation7 + $0x10] sm:$0xf]
    %v689 = vld [vmem:[#allocation7 + $0x14] sm:$0xf]
    %v690 = vld [vmem:[#allocation7 + $0x18] sm:$0xf]
    %v691 = vld [vmem:[#allocation7 + $0x1c] sm:$0xf]
    %v692 = vld [vmem:[#allocation7 + $0x20] sm:$0xf]
    %v693 = vld [vmem:[#allocation7 + $0x24] sm:$0xf]
    %v694 = vld [vmem:[#allocation7 + $0x28] sm:$0xf]
    %v695 = vld [vmem:[#allocation7 + $0x2c] sm:$0xf]
    %v696 = vld [vmem:[#allocation7 + $0x30] sm:$0xf]
    %v697 = vld [vmem:[#allocation7 + $0x34] sm:$0xf]
    %v698 = vld [vmem:[#allocation7 + $0x38] sm:$0xf]
    %v699 = vld [vmem:[#allocation7 + $0x3c] sm:$0xf]
    %v700 = vld [vmem:[%s9] sm:$0x1]
    %v702 = vlaneseq
    %v703 = vshrl.u32 %v702, 7
    %v704 = vsub.s32 0, %v703
    %v705 = vrot.slane %v700, %v704
    %v723 = vunpack.c.l.b16 %v684
    %v724 = vunpack.c.l.b16 %v685
    %v725 = vunpack.c.l.b16 %v686
    %v726 = vunpack.c.l.b16 %v687
    %v727 = vunpack.c.l.b16 %v688
    %v728 = vunpack.c.l.b16 %v689
    %v729 = vunpack.c.l.b16 %v690
    %v730 = vunpack.c.l.b16 %v691
    %v731 = vunpack.c.l.b16 %v692
    %v732 = vunpack.c.l.b16 %v693
    %v733 = vunpack.c.l.b16 %v694
    %v734 = vunpack.c.l.b16 %v695
    %v735 = vunpack.c.l.b16 %v696
    %v736 = vunpack.c.l.b16 %v697
    %v737 = vunpack.c.l.b16 %v698
    %v738 = vunpack.c.l.b16 %v699
    %v739 = vpack.c.b16 %v724, %v723
    %v740 = vpack.c.b16 %v726, %v725
    %v741 = vpack.c.b16 %v728, %v727
    %v742 = vpack.c.b16 %v730, %v729
    %v743 = vpack.c.b16 %v732, %v731
    %v744 = vpack.c.b16 %v734, %v733
    %v745 = vpack.c.b16 %v736, %v735
    %v746 = vpack.c.b16 %v738, %v737
    %755 = vmatprep.subr.bf16.mxu0 0
    %756 = vmatpush1.bf16.msra.mxu0 %v739
    %757 = vmatprep.subr.bf16.mxu0 0
    %758 = vmatpush1.bf16.msra.mxu0 %v740
    %759 = vmatprep.subr.bf16.mxu0 0
    %760 = vmatpush1.bf16.msra.mxu0 %v741
    %761 = vmatprep.subr.bf16.mxu0 0
    %762 = vmatpush1.bf16.msra.mxu0 %v742
    %763 = vmatprep.subr.bf16.mxu0 0
    %764 = vmatpush1.bf16.msra.mxu0 %v743
    %765 = vmatprep.subr.bf16.mxu0 0
    %766 = vmatpush1.bf16.msra.mxu0 %v744
    %767 = vmatprep.subr.bf16.mxu0 0
    %768 = vmatpush1.bf16.msra.mxu0 %v745
    %769 = vmatprep.subr.bf16.mxu0 0
    %770 = vmatpush1.bf16.msra.mxu0 %v746
    %771 = vmatprep.subr.bf16.mxu0 0
    %772 = vmatpush1.bf16.msra.mxu0 0
    %773 = vmatprep.subr.bf16.mxu0 0
    %774 = vmatpush1.bf16.msra.mxu0 0
    %775 = vmatprep.subr.bf16.mxu0 0
    %776 = vmatpush1.bf16.msra.mxu0 0
    %777 = vmatprep.subr.bf16.mxu0 0
    %778 = vmatpush1.bf16.msra.mxu0 0
    %779 = vmatprep.subr.bf16.mxu0 0
    %780 = vmatpush1.bf16.msra.mxu0 0
    %781 = vmatprep.subr.bf16.mxu0 0
    %782 = vmatpush1.bf16.msra.mxu0 0
    %783 = vmatprep.subr.bf16.mxu0 0
    %784 = vmatpush1.bf16.msra.mxu0 0
    %785 = vmatprep.subr.bf16.mxu0 0
    %786 = vmatpush1.bf16.msra.mxu0 0
    %787 = vmatprep.mubr.bf16.mxu0 0
    %788 = vmatmul.mubr.bf16.gmra.mrb[0].mxu0 %v588
    %v789 = vpop.f32.mrb[0].mxu0
    %v790 = vadd.f32 %v705, %v789
    %v791 = vpop.f32.mrb[0].mxu0
    %v792 = vpop.f32.mrb[0].mxu0
    %v793 = vpop.f32.mrb[0].mxu0
    %794 = vdwg.mxu0
    %v795 = vld [vmem:[%s2] sm:$0xff]
    %v796 = vmul.f32 %v790, 0.5
    %v797 = vmul.f32 %v796, 1.442695
    %v798 = vpow.pop %v797
    %v799 = vmul.f32 %v795, %v798
    %v800 = vadd.f32 %v679, %v799
    %v801 = vld [vmem:[#allocation10] sm:$0xf]
    %v802 = vld [vmem:[%s1] sm:$0xff]
    %v803 = vld [vmem:[#allocation8] sm:$0xf]
    %v804 = vld [vmem:[#allocation8 + $0x4] sm:$0xf]
    %v805 = vld [vmem:[#allocation8 + $0x8] sm:$0xf]
    %v806 = vld [vmem:[#allocation8 + $0xc] sm:$0xf]
    %v807 = vld [vmem:[#allocation8 + $0x10] sm:$0xf]
    %v808 = vld [vmem:[#allocation8 + $0x14] sm:$0xf]
    %v809 = vld [vmem:[#allocation8 + $0x18] sm:$0xf]
    %v810 = vld [vmem:[#allocation8 + $0x1c] sm:$0xf]
    %v811 = vld [vmem:[#allocation8 + $0x20] sm:$0xf]
    %v812 = vld [vmem:[#allocation8 + $0x24] sm:$0xf]
    %v813 = vld [vmem:[#allocation8 + $0x28] sm:$0xf]
    %v814 = vld [vmem:[#allocation8 + $0x2c] sm:$0xf]
    %v815 = vld [vmem:[#allocation8 + $0x30] sm:$0xf]
    %v816 = vld [vmem:[#allocation8 + $0x34] sm:$0xf]
    %v817 = vld [vmem:[#allocation8 + $0x38] sm:$0xf]
    %v818 = vld [vmem:[#allocation8 + $0x3c] sm:$0xf]
    %v819 = vpack.c.bf16 %v802, %v802
    %v836 = vunpack.c.l.b16 %v803
    %v837 = vunpack.c.l.b16 %v804
    %v838 = vunpack.c.l.b16 %v805
    %v839 = vunpack.c.l.b16 %v806
    %v840 = vunpack.c.l.b16 %v807
    %v841 = vunpack.c.l.b16 %v808
    %v842 = vunpack.c.l.b16 %v809
    %v843 = vunpack.c.l.b16 %v810
    %v844 = vunpack.c.l.b16 %v811
    %v845 = vunpack.c.l.b16 %v812
    %v846 = vunpack.c.l.b16 %v813
    %v847 = vunpack.c.l.b16 %v814
    %v848 = vunpack.c.l.b16 %v815
    %v849 = vunpack.c.l.b16 %v816
    %v850 = vunpack.c.l.b16 %v817
    %v851 = vunpack.c.l.b16 %v818
    %v852 = vpack.c.b16 %v837, %v836
    %v853 = vpack.c.b16 %v839, %v838
    %v854 = vpack.c.b16 %v841, %v840
    %v855 = vpack.c.b16 %v843, %v842
    %v856 = vpack.c.b16 %v845, %v844
    %v857 = vpack.c.b16 %v847, %v846
    %v858 = vpack.c.b16 %v849, %v848
    %v859 = vpack.c.b16 %v851, %v850
    %868 = vmatprep.subr.bf16.mxu0 0
    %869 = vmatpush1.bf16.msra.mxu0 %v852
    %870 = vmatprep.subr.bf16.mxu0 0
    %871 = vmatpush1.bf16.msra.mxu0 %v853
    %872 = vmatprep.subr.bf16.mxu0 0
    %873 = vmatpush1.bf16.msra.mxu0 %v854
    %874 = vmatprep.subr.bf16.mxu0 0
    %875 = vmatpush1.bf16.msra.mxu0 %v855
    %876 = vmatprep.subr.bf16.mxu0 0
    %877 = vmatpush1.bf16.msra.mxu0 %v856
    %878 = vmatprep.subr.bf16.mxu0 0
    %879 = vmatpush1.bf16.msra.mxu0 %v857
    %880 = vmatprep.subr.bf16.mxu0 0
    %881 = vmatpush1.bf16.msra.mxu0 %v858
    %882 = vmatprep.subr.bf16.mxu0 0
    %883 = vmatpush1.bf16.msra.mxu0 %v859
    %884 = vmatprep.subr.bf16.mxu0 0
    %885 = vmatpush1.bf16.msra.mxu0 0
    %886 = vmatprep.subr.bf16.mxu0 0
    %887 = vmatpush1.bf16.msra.mxu0 0
    %888 = vmatprep.subr.bf16.mxu0 0
    %889 = vmatpush1.bf16.msra.mxu0 0
    %890 = vmatprep.subr.bf16.mxu0 0
    %891 = vmatpush1.bf16.msra.mxu0 0
    %892 = vmatprep.subr.bf16.mxu0 0
    %893 = vmatpush1.bf16.msra.mxu0 0
    %894 = vmatprep.subr.bf16.mxu0 0
    %895 = vmatpush1.bf16.msra.mxu0 0
    %896 = vmatprep.subr.bf16.mxu0 0
    %897 = vmatpush1.bf16.msra.mxu0 0
    %898 = vmatprep.subr.bf16.mxu0 0
    %899 = vmatpush1.bf16.msra.mxu0 0
    %900 = vmatprep.mubr.bf16.mxu0 0
    %901 = vmatmul.mubr.bf16.gmra.mrb[0].mxu0 %v819
    %v902 = vpop.f32.mrb[0].mxu0
    %v903 = vadd.f32 0.0, %v902
    %v904 = vpop.f32.mrb[0].mxu0
    %v905 = vpop.f32.mrb[0].mxu0
    %v906 = vpop.f32.mrb[0].mxu0
    %907 = vdwg.mxu0
    %v908 = vrot.slane %v903, 4
    %v909 = vadd.f32 %v903, %v908
    %v910 = vrot.slane %v909, 2
    %v911 = vadd.f32 %v909, %v910
    %v912 = vrot.slane %v911, 1
    %v913 = vadd.f32 %v911, %v912
    %v914 = vmul.f32 %v913, %v402
    %v915 = vsub.f32 %v903, %v914
    %v916 = vmul.f32 %v915, %v915
    %v917 = vrot.slane %v916, 4
    %v918 = vadd.f32 %v916, %v917
    %v919 = vrot.slane %v918, 2
    %v920 = vadd.f32 %v918, %v919
    %v921 = vrot.slane %v920, 1
    %v922 = vadd.f32 %v920, %v921
    %v923 = vmul.f32 %v922, %v402
    %v924 = vadd.f32 %v923, 1e-05
    %v925 = vrsqrt.pop %v924
    %v926 = vmul.f32 %v925, %v801
    %v927 = vmul.f32 %v914, %v926
    %v929 = vrot.slane %v927, 7
    %v931 = vsub.f32 %v801, %v929
    %v932 = vlaneseq
    %v933 = vshrl.u32 %v932, 7
    %v934 = vsub.s32 0, %v933
    %v935 = vrot.slane %v926, %v934
    %v936 = vmul.f32 %v903, %v935
    %v937 = vlaneseq
    %v938 = vshrl.u32 %v937, 7
    %v939 = vsub.s32 1, %v938
    %v940 = vrot.slane %v931, %v939
    %v941 = vadd.f32 %v936, %v940
    %v942 = vmax.f32 %v941, 0.0
    %v943 = vld [vmem:[#allocation11] sm:$0xf]
    %v944 = vld [vmem:[#allocation11 + $0x4] sm:$0xf]
    %v945 = vld [vmem:[#allocation11 + $0x8] sm:$0xf]
    %v946 = vld [vmem:[#allocation11 + $0xc] sm:$0xf]
    %v947 = vld [vmem:[#allocation11 + $0x10] sm:$0xf]
    %v948 = vld [vmem:[#allocation11 + $0x14] sm:$0xf]
    %v949 = vld [vmem:[#allocation11 + $0x18] sm:$0xf]
    %v950 = vld [vmem:[#allocation11 + $0x1c] sm:$0xf]
    %v951 = vld [vmem:[#allocation11 + $0x20] sm:$0xf]
    %v952 = vld [vmem:[#allocation11 + $0x24] sm:$0xf]
    %v953 = vld [vmem:[#allocation11 + $0x28] sm:$0xf]
    %v954 = vld [vmem:[#allocation11 + $0x2c] sm:$0xf]
    %v955 = vld [vmem:[#allocation11 + $0x30] sm:$0xf]
    %v956 = vld [vmem:[#allocation11 + $0x34] sm:$0xf]
    %v957 = vld [vmem:[#allocation11 + $0x38] sm:$0xf]
    %v958 = vld [vmem:[#allocation11 + $0x3c] sm:$0xf]
    %v959 = vpack.c.bf16 %v942, %v942
    %v976 = vunpack.c.l.b16 %v943
    %v977 = vunpack.c.l.b16 %v944
    %v978 = vunpack.c.l.b16 %v945
    %v979 = vunpack.c.l.b16 %v946
    %v980 = vunpack.c.l.b16 %v947
    %v981 = vunpack.c.l.b16 %v948
    %v982 = vunpack.c.l.b16 %v949
    %v983 = vunpack.c.l.b16 %v950
    %v984 = vunpack.c.l.b16 %v951
    %v985 = vunpack.c.l.b16 %v952
    %v986 = vunpack.c.l.b16 %v953
    %v987 = vunpack.c.l.b16 %v954
    %v988 = vunpack.c.l.b16 %v955
    %v989 = vunpack.c.l.b16 %v956
    %v990 = vunpack.c.l.b16 %v957
    %v991 = vunpack.c.l.b16 %v958
    %v992 = vpack.c.b16 %v977, %v976
    %v993 = vpack.c.b16 %v979, %v978
    %v994 = vpack.c.b16 %v981, %v980
    %v995 = vpack.c.b16 %v983, %v982
    %v996 = vpack.c.b16 %v985, %v984
    %v997 = vpack.c.b16 %v987, %v986
    %v998 = vpack.c.b16 %v989, %v988
    %v999 = vpack.c.b16 %v991, %v990
    %1008 = vmatprep.subr.bf16.mxu0 0
    %1009 = vmatpush1.bf16.msra.mxu0 %v992
    %1010 = vmatprep.subr.bf16.mxu0 0
    %1011 = vmatpush1.bf16.msra.mxu0 %v993
    %1012 = vmatprep.subr.bf16.mxu0 0
    %1013 = vmatpush1.bf16.msra.mxu0 %v994
    %1014 = vmatprep.subr.bf16.mxu0 0
    %1015 = vmatpush1.bf16.msra.mxu0 %v995
    %1016 = vmatprep.subr.bf16.mxu0 0
    %1017 = vmatpush1.bf16.msra.mxu0 %v996
    %1018 = vmatprep.subr.bf16.mxu0 0
    %1019 = vmatpush1.bf16.msra.mxu0 %v997
    %1020 = vmatprep.subr.bf16.mxu0 0
    %1021 = vmatpush1.bf16.msra.mxu0 %v998
    %1022 = vmatprep.subr.bf16.mxu0 0
    %1023 = vmatpush1.bf16.msra.mxu0 %v999
    %1024 = vmatprep.subr.bf16.mxu0 0
    %1025 = vmatpush1.bf16.msra.mxu0 0
    %1026 = vmatprep.subr.bf16.mxu0 0
    %1027 = vmatpush1.bf16.msra.mxu0 0
    %1028 = vmatprep.subr.bf16.mxu0 0
    %1029 = vmatpush1.bf16.msra.mxu0 0
    %1030 = vmatprep.subr.bf16.mxu0 0
    %1031 = vmatpush1.bf16.msra.mxu0 0
    %1032 = vmatprep.subr.bf16.mxu0 0
    %1033 = vmatpush1.bf16.msra.mxu0 0
    %1034 = vmatprep.subr.bf16.mxu0 0
    %1035 = vmatpush1.bf16.msra.mxu0 0
    %1036 = vmatprep.subr.bf16.mxu0 0
    %1037 = vmatpush1.bf16.msra.mxu0 0
    %1038 = vmatprep.subr.bf16.mxu0 0
    %1039 = vmatpush1.bf16.msra.mxu0 0
    %1040 = vmatprep.mubr.bf16.mxu0 0
    %1041 = vmatmul.mubr.bf16.gmra.mrb[0].mxu0 %v959
    %v1042 = vpop.f32.mrb[0].mxu0
    %v1043 = vadd.f32 0.0, %v1042
    %v1044 = vpop.f32.mrb[0].mxu0
    %v1045 = vpop.f32.mrb[0].mxu0
    %v1046 = vpop.f32.mrb[0].mxu0
    %1047 = vdwg.mxu0
    %v1048 = vrot.slane %v1043, 4
    %v1049 = vadd.f32 %v1043, %v1048
    %v1050 = vrot.slane %v1049, 2
    %v1051 = vadd.f32 %v1049, %v1050
    %v1052 = vrot.slane %v1051, 1
    %v1053 = vadd.f32 %v1051, %v1052
    %v1054 = vmul.f32 %v1053, %v402
    %v1055 = vsub.f32 %v1043, %v1054
    %v1056 = vmul.f32 %v1055, %v1055
    %v1057 = vrot.slane %v1056, 4
    %v1058 = vadd.f32 %v1056, %v1057
    %v1059 = vrot.slane %v1058, 2
    %v1060 = vadd.f32 %v1058, %v1059
    %v1061 = vrot.slane %v1060, 1
    %v1062 = vadd.f32 %v1060, %v1061
    %v1063 = vmul.f32 %v1062, %v402
    %v1064 = vadd.f32 %v1063, 1e-05
    %v1065 = vrsqrt.pop %v1064
    %v1066 = vmul.f32 %v1065, %v801
    %v1067 = vmul.f32 %v1054, %v1066
    %v1069 = vrot.slane %v1067, 7
    %v1071 = vsub.f32 %v801, %v1069
    %v1072 = vlaneseq
    %v1073 = vshrl.u32 %v1072, 7
    %v1074 = vsub.s32 2, %v1073
    %v1075 = vrot.slane %v1066, %v1074
    %v1076 = vmul.f32 %v1043, %v1075
    %v1077 = vlaneseq
    %v1078 = vshrl.u32 %v1077, 7
    %v1079 = vsub.s32 3, %v1078
    %v1080 = vrot.slane %v1071, %v1079
    %v1081 = vadd.f32 %v1076, %v1080
    %v1082 = vmax.f32 %v1081, 0.0
    %v1083 = vld [vmem:[#allocation13] sm:$0xf]
    %v1084 = vld [vmem:[#allocation13 + $0x4] sm:$0xf]
    %v1085 = vld [vmem:[#allocation13 + $0x8] sm:$0xf]
    %v1086 = vld [vmem:[#allocation13 + $0xc] sm:$0xf]
    %v1087 = vld [vmem:[#allocation13 + $0x10] sm:$0xf]
    %v1088 = vld [vmem:[#allocation13 + $0x14] sm:$0xf]
    %v1089 = vld [vmem:[#allocation13 + $0x18] sm:$0xf]
    %v1090 = vld [vmem:[#allocation13 + $0x1c] sm:$0xf]
    %v1091 = vld [vmem:[#allocation13 + $0x20] sm:$0xf]
    %v1092 = vld [vmem:[#allocation13 + $0x24] sm:$0xf]
    %v1093 = vld [vmem:[#allocation13 + $0x28] sm:$0xf]
    %v1094 = vld [vmem:[#allocation13 + $0x2c] sm:$0xf]
    %v1095 = vld [vmem:[#allocation13 + $0x30] sm:$0xf]
    %v1096 = vld [vmem:[#allocation13 + $0x34] sm:$0xf]
    %v1097 = vld [vmem:[#allocation13 + $0x38] sm:$0xf]
    %v1098 = vld [vmem:[#allocation13 + $0x3c] sm:$0xf]
    %v1099 = vpack.c.bf16 %v1082, %v1082
    %v1100 = vld [vmem:[#allocation14] sm:$0x1]
    %v1102 = vlaneseq
    %v1103 = vshrl.u32 %v1102, 7
    %v1104 = vsub.s32 0, %v1103
    %v1105 = vrot.slane %v1100, %v1104
    %v1123 = vunpack.c.l.b16 %v1083
    %v1124 = vunpack.c.l.b16 %v1084
    %v1125 = vunpack.c.l.b16 %v1085
    %v1126 = vunpack.c.l.b16 %v1086
    %v1127 = vunpack.c.l.b16 %v1087
    %v1128 = vunpack.c.l.b16 %v1088
    %v1129 = vunpack.c.l.b16 %v1089
    %v1130 = vunpack.c.l.b16 %v1090
    %v1131 = vunpack.c.l.b16 %v1091
    %v1132 = vunpack.c.l.b16 %v1092
    %v1133 = vunpack.c.l.b16 %v1093
    %v1134 = vunpack.c.l.b16 %v1094
    %v1135 = vunpack.c.l.b16 %v1095
    %v1136 = vunpack.c.l.b16 %v1096
    %v1137 = vunpack.c.l.b16 %v1097
    %v1138 = vunpack.c.l.b16 %v1098
    %v1139 = vpack.c.b16 %v1124, %v1123
    %v1140 = vpack.c.b16 %v1126, %v1125
    %v1141 = vpack.c.b16 %v1128, %v1127
    %v1142 = vpack.c.b16 %v1130, %v1129
    %v1143 = vpack.c.b16 %v1132, %v1131
    %v1144 = vpack.c.b16 %v1134, %v1133
    %v1145 = vpack.c.b16 %v1136, %v1135
    %v1146 = vpack.c.b16 %v1138, %v1137
    %1155 = vmatprep.subr.bf16.mxu0 0
    %1156 = vmatpush1.bf16.msra.mxu0 %v1139
    %1157 = vmatprep.subr.bf16.mxu0 0
    %1158 = vmatpush1.bf16.msra.mxu0 %v1140
    %1159 = vmatprep.subr.bf16.mxu0 0
    %1160 = vmatpush1.bf16.msra.mxu0 %v1141
    %1161 = vmatprep.subr.bf16.mxu0 0
    %1162 = vmatpush1.bf16.msra.mxu0 %v1142
    %1163 = vmatprep.subr.bf16.mxu0 0
    %1164 = vmatpush1.bf16.msra.mxu0 %v1143
    %1165 = vmatprep.subr.bf16.mxu0 0
    %1166 = vmatpush1.bf16.msra.mxu0 %v1144
    %1167 = vmatprep.subr.bf16.mxu0 0
    %1168 = vmatpush1.bf16.msra.mxu0 %v1145
    %1169 = vmatprep.subr.bf16.mxu0 0
    %1170 = vmatpush1.bf16.msra.mxu0 %v1146
    %1171 = vmatprep.subr.bf16.mxu0 0
    %1172 = vmatpush1.bf16.msra.mxu0 0
    %1173 = vmatprep.subr.bf16.mxu0 0
    %1174 = vmatpush1.bf16.msra.mxu0 0
    %1175 = vmatprep.subr.bf16.mxu0 0
    %1176 = vmatpush1.bf16.msra.mxu0 0
    %1177 = vmatprep.subr.bf16.mxu0 0
    %1178 = vmatpush1.bf16.msra.mxu0 0
    %1179 = vmatprep.subr.bf16.mxu0 0
    %1180 = vmatpush1.bf16.msra.mxu0 0
    %1181 = vmatprep.subr.bf16.mxu0 0
    %1182 = vmatpush1.bf16.msra.mxu0 0
    %1183 = vmatprep.subr.bf16.mxu0 0
    %1184 = vmatpush1.bf16.msra.mxu0 0
    %1185 = vmatprep.subr.bf16.mxu0 0
    %1186 = vmatpush1.bf16.msra.mxu0 0
    %1187 = vmatprep.mubr.bf16.mxu0 0
    %1188 = vmatmul.mubr.bf16.gmra.mrb[0].mxu0 %v1099
    %v1189 = vpop.f32.mrb[0].mxu0
    %v1190 = vadd.f32 %v1105, %v1189
    %v1191 = vpop.f32.mrb[0].mxu0
    %v1192 = vpop.f32.mrb[0].mxu0
    %v1193 = vpop.f32.mrb[0].mxu0
    %1194 = vdwg.mxu0
    %s1195 = scalar_lea.vmem [#allocation19], 8
    %v1196 = vld [vmem:[%s1195] sm:$0xf]
    %s1197 = scalar_lea.vmem [#allocation16], 128
    %v1198 = vld [vmem:[%s1197] sm:$0xf]
    %v1199 = vld [vmem:[%s1197 + $0x4] sm:$0xf]
    %v1200 = vld [vmem:[%s1197 + $0x8] sm:$0xf]
    %v1201 = vld [vmem:[%s1197 + $0xc] sm:$0xf]
    %v1202 = vld [vmem:[%s1197 + $0x10] sm:$0xf]
    %v1203 = vld [vmem:[%s1197 + $0x14] sm:$0xf]
    %v1204 = vld [vmem:[%s1197 + $0x18] sm:$0xf]
    %v1205 = vld [vmem:[%s1197 + $0x1c] sm:$0xf]
    %v1206 = vld [vmem:[%s1197 + $0x20] sm:$0xf]
    %v1207 = vld [vmem:[%s1197 + $0x24] sm:$0xf]
    %v1208 = vld [vmem:[%s1197 + $0x28] sm:$0xf]
    %v1209 = vld [vmem:[%s1197 + $0x2c] sm:$0xf]
    %v1210 = vld [vmem:[%s1197 + $0x30] sm:$0xf]
    %v1211 = vld [vmem:[%s1197 + $0x34] sm:$0xf]
    %v1212 = vld [vmem:[%s1197 + $0x38] sm:$0xf]
    %v1213 = vld [vmem:[%s1197 + $0x3c] sm:$0xf]
    %v1214 = vpack.c.bf16 %v800, %v800
    %s1215 = scalar_lea.vmem [#allocation17], 128
    %v1216 = vld [vmem:[%s1215] sm:$0xf]
    %v1217 = vld [vmem:[%s1215 + $0x4] sm:$0xf]
    %v1218 = vld [vmem:[%s1215 + $0x8] sm:$0xf]
    %v1219 = vld [vmem:[%s1215 + $0xc] sm:$0xf]
    %v1220 = vld [vmem:[%s1215 + $0x10] sm:$0xf]
    %v1221 = vld [vmem:[%s1215 + $0x14] sm:$0xf]
    %v1222 = vld [vmem:[%s1215 + $0x18] sm:$0xf]
    %v1223 = vld [vmem:[%s1215 + $0x1c] sm:$0xf]
    %v1224 = vld [vmem:[%s1215 + $0x20] sm:$0xf]
    %v1225 = vld [vmem:[%s1215 + $0x24] sm:$0xf]
    %v1226 = vld [vmem:[%s1215 + $0x28] sm:$0xf]
    %v1227 = vld [vmem:[%s1215 + $0x2c] sm:$0xf]
    %v1228 = vld [vmem:[%s1215 + $0x30] sm:$0xf]
    %v1229 = vld [vmem:[%s1215 + $0x34] sm:$0xf]
    %v1230 = vld [vmem:[%s1215 + $0x38] sm:$0xf]
    %v1231 = vld [vmem:[%s1215 + $0x3c] sm:$0xf]
    %v1232 = vpack.c.bf16 %v1190, %v1190
    %v1249 = vunpack.c.l.b16 %v1216
    %v1250 = vunpack.c.l.b16 %v1217
    %v1251 = vunpack.c.l.b16 %v1218
    %v1252 = vunpack.c.l.b16 %v1219
    %v1253 = vunpack.c.l.b16 %v1220
    %v1254 = vunpack.c.l.b16 %v1221
    %v1255 = vunpack.c.l.b16 %v1222
    %v1256 = vunpack.c.l.b16 %v1223
    %v1257 = vunpack.c.l.b16 %v1224
    %v1258 = vunpack.c.l.b16 %v1225
    %v1259 = vunpack.c.l.b16 %v1226
    %v1260 = vunpack.c.l.b16 %v1227
    %v1261 = vunpack.c.l.b16 %v1228
    %v1262 = vunpack.c.l.b16 %v1229
    %v1263 = vunpack.c.l.b16 %v1230
    %v1264 = vunpack.c.l.b16 %v1231
    %v1265 = vpack.c.b16 %v1250, %v1249
    %v1266 = vpack.c.b16 %v1252, %v1251
    %v1267 = vpack.c.b16 %v1254, %v1253
    %v1268 = vpack.c.b16 %v1256, %v1255
    %v1269 = vpack.c.b16 %v1258, %v1257
    %v1270 = vpack.c.b16 %v1260, %v1259
    %v1271 = vpack.c.b16 %v1262, %v1261
    %v1272 = vpack.c.b16 %v1264, %v1263
    %1281 = vmatprep.subr.bf16.mxu0 0
    %1282 = vmatpush1.bf16.msra.mxu0 %v1265
    %1283 = vmatprep.subr.bf16.mxu0 0
    %1284 = vmatpush1.bf16.msra.mxu0 %v1266
    %1285 = vmatprep.subr.bf16.mxu0 0
    %1286 = vmatpush1.bf16.msra.mxu0 %v1267
    %1287 = vmatprep.subr.bf16.mxu0 0
    %1288 = vmatpush1.bf16.msra.mxu0 %v1268
    %1289 = vmatprep.subr.bf16.mxu0 0
    %1290 = vmatpush1.bf16.msra.mxu0 %v1269
    %1291 = vmatprep.subr.bf16.mxu0 0
    %1292 = vmatpush1.bf16.msra.mxu0 %v1270
    %1293 = vmatprep.subr.bf16.mxu0 0
    %1294 = vmatpush1.bf16.msra.mxu0 %v1271
    %1295 = vmatprep.subr.bf16.mxu0 0
    %1296 = vmatpush1.bf16.msra.mxu0 %v1272
    %1297 = vmatprep.subr.bf16.mxu0 0
    %1298 = vmatpush1.bf16.msra.mxu0 0
    %1299 = vmatprep.subr.bf16.mxu0 0
    %1300 = vmatpush1.bf16.msra.mxu0 0
    %1301 = vmatprep.subr.bf16.mxu0 0
    %1302 = vmatpush1.bf16.msra.mxu0 0
    %1303 = vmatprep.subr.bf16.mxu0 0
    %1304 = vmatpush1.bf16.msra.mxu0 0
    %1305 = vmatprep.subr.bf16.mxu0 0
    %1306 = vmatpush1.bf16.msra.mxu0 0
    %1307 = vmatprep.subr.bf16.mxu0 0
    %1308 = vmatpush1.bf16.msra.mxu0 0
    %1309 = vmatprep.subr.bf16.mxu0 0
    %1310 = vmatpush1.bf16.msra.mxu0 0
    %1311 = vmatprep.subr.bf16.mxu0 0
    %1312 = vmatpush1.bf16.msra.mxu0 0
    %1313 = vmatprep.mubr.bf16.mxu0 0
    %1314 = vmatmul.mubr.bf16.gmra.mrb[0].mxu0 %v1232
    %v1315 = vpop.f32.mrb[0].mxu0
    %v1316 = vadd.f32 0.0, %v1315
    %v1317 = vpop.f32.mrb[0].mxu0
    %v1318 = vpop.f32.mrb[0].mxu0
    %v1319 = vpop.f32.mrb[0].mxu0
    %1320 = vdwg.mxu0
    %v1337 = vunpack.c.l.b16 %v1198
    %v1338 = vunpack.c.l.b16 %v1199
    %v1339 = vunpack.c.l.b16 %v1200
    %v1340 = vunpack.c.l.b16 %v1201
    %v1341 = vunpack.c.l.b16 %v1202
    %v1342 = vunpack.c.l.b16 %v1203
    %v1343 = vunpack.c.l.b16 %v1204
    %v1344 = vunpack.c.l.b16 %v1205
    %v1345 = vunpack.c.l.b16 %v1206
    %v1346 = vunpack.c.l.b16 %v1207
    %v1347 = vunpack.c.l.b16 %v1208
    %v1348 = vunpack.c.l.b16 %v1209
    %v1349 = vunpack.c.l.b16 %v1210
    %v1350 = vunpack.c.l.b16 %v1211
    %v1351 = vunpack.c.l.b16 %v1212
    %v1352 = vunpack.c.l.b16 %v1213
    %v1353 = vpack.c.b16 %v1338, %v1337
    %v1354 = vpack.c.b16 %v1340, %v1339
    %v1355 = vpack.c.b16 %v1342, %v1341
    %v1356 = vpack.c.b16 %v1344, %v1343
    %v1357 = vpack.c.b16 %v1346, %v1345
    %v1358 = vpack.c.b16 %v1348, %v1347
    %v1359 = vpack.c.b16 %v1350, %v1349
    %v1360 = vpack.c.b16 %v1352, %v1351
    %1369 = vmatprep.subr.bf16.mxu0 0
    %1370 = vmatpush1.bf16.msra.mxu0 %v1353
    %1371 = vmatprep.subr.bf16.mxu0 0
    %1372 = vmatpush1.bf16.msra.mxu0 %v1354
    %1373 = vmatprep.subr.bf16.mxu0 0
    %1374 = vmatpush1.bf16.msra.mxu0 %v1355
    %1375 = vmatprep.subr.bf16.mxu0 0
    %1376 = vmatpush1.bf16.msra.mxu0 %v1356
    %1377 = vmatprep.subr.bf16.mxu0 0
    %1378 = vmatpush1.bf16.msra.mxu0 %v1357
    %1379 = vmatprep.subr.bf16.mxu0 0
    %1380 = vmatpush1.bf16.msra.mxu0 %v1358
    %1381 = vmatprep.subr.bf16.mxu0 0
    %1382 = vmatpush1.bf16.msra.mxu0 %v1359
    %1383 = vmatprep.subr.bf16.mxu0 0
    %1384 = vmatpush1.bf16.msra.mxu0 %v1360
    %1385 = vmatprep.subr.bf16.mxu0 0
    %1386 = vmatpush1.bf16.msra.mxu0 0
    %1387 = vmatprep.subr.bf16.mxu0 0
    %1388 = vmatpush1.bf16.msra.mxu0 0
    %1389 = vmatprep.subr.bf16.mxu0 0
    %1390 = vmatpush1.bf16.msra.mxu0 0
    %1391 = vmatprep.subr.bf16.mxu0 0
    %1392 = vmatpush1.bf16.msra.mxu0 0
    %1393 = vmatprep.subr.bf16.mxu0 0
    %1394 = vmatpush1.bf16.msra.mxu0 0
    %1395 = vmatprep.subr.bf16.mxu0 0
    %1396 = vmatpush1.bf16.msra.mxu0 0
    %1397 = vmatprep.subr.bf16.mxu0 0
    %1398 = vmatpush1.bf16.msra.mxu0 0
    %1399 = vmatprep.subr.bf16.mxu0 0
    %1400 = vmatpush1.bf16.msra.mxu0 0
    %1401 = vmatprep.mubr.bf16.mxu0 0
    %1402 = vmatmul.mubr.bf16.gmra.mrb[0].mxu0 %v1214
    %v1403 = vpop.f32.mrb[0].mxu0
    %v1404 = vadd.f32 %v1316, %v1403
    %v1405 = vpop.f32.mrb[0].mxu0
    %v1406 = vpop.f32.mrb[0].mxu0
    %v1407 = vpop.f32.mrb[0].mxu0
    %1408 = vdwg.mxu0
    %v1409 = vrot.slane %v1404, 4
    %v1410 = vadd.f32 %v1404, %v1409
    %v1411 = vrot.slane %v1410, 2
    %v1412 = vadd.f32 %v1410, %v1411
    %v1413 = vrot.slane %v1412, 1
    %v1414 = vadd.f32 %v1412, %v1413
    %v1415 = vmul.f32 %v1414, %v402
    %v1416 = vsub.f32 %v1404, %v1415
    %v1417 = vmul.f32 %v1416, %v1416
    %v1418 = vrot.slane %v1417, 4
    %v1419 = vadd.f32 %v1417, %v1418
    %v1420 = vrot.slane %v1419, 2
    %v1421 = vadd.f32 %v1419, %v1420
    %v1422 = vrot.slane %v1421, 1
    %v1423 = vadd.f32 %v1421, %v1422
    %v1424 = vmul.f32 %v1423, %v402
    %v1425 = vadd.f32 %v1424, 1e-05
    %v1426 = vrsqrt.pop %v1425
    %v1427 = vmul.f32 %v1426, %v1196
    %v1428 = vmul.f32 %v1415, %v1427
    %v1430 = vrot.slane %v1428, 7
    %v1432 = vsub.f32 %v1196, %v1430
    %v1433 = vlaneseq
    %v1434 = vshrl.u32 %v1433, 7
    %v1435 = vsub.s32 0, %v1434
    %v1436 = vrot.slane %v1427, %v1435
    %v1437 = vmul.f32 %v1404, %v1436
    %v1438 = vlaneseq
    %v1439 = vshrl.u32 %v1438, 7
    %v1440 = vsub.s32 1, %v1439
    %v1441 = vrot.slane %v1432, %v1440
    %v1442 = vadd.f32 %v1437, %v1441
    %v1443 = vmax.f32 %v1442, 0.0
    %s1444 = scalar_lea.vmem [#allocation20], 128
    %v1445 = vld [vmem:[%s1444] sm:$0xf]
    %v1446 = vld [vmem:[%s1444 + $0x4] sm:$0xf]
    %v1447 = vld [vmem:[%s1444 + $0x8] sm:$0xf]
    %v1448 = vld [vmem:[%s1444 + $0xc] sm:$0xf]
    %v1449 = vld [vmem:[%s1444 + $0x10] sm:$0xf]
    %v1450 = vld [vmem:[%s1444 + $0x14] sm:$0xf]
    %v1451 = vld [vmem:[%s1444 + $0x18] sm:$0xf]
    %v1452 = vld [vmem:[%s1444 + $0x1c] sm:$0xf]
    %v1453 = vld [vmem:[%s1444 + $0x20] sm:$0xf]
    %v1454 = vld [vmem:[%s1444 + $0x24] sm:$0xf]
    %v1455 = vld [vmem:[%s1444 + $0x28] sm:$0xf]
    %v1456 = vld [vmem:[%s1444 + $0x2c] sm:$0xf]
    %v1457 = vld [vmem:[%s1444 + $0x30] sm:$0xf]
    %v1458 = vld [vmem:[%s1444 + $0x34] sm:$0xf]
    %v1459 = vld [vmem:[%s1444 + $0x38] sm:$0xf]
    %v1460 = vld [vmem:[%s1444 + $0x3c] sm:$0xf]
    %v1461 = vpack.c.bf16 %v1443, %v1443
    %v1478 = vunpack.c.l.b16 %v1445
    %v1479 = vunpack.c.l.b16 %v1446
    %v1480 = vunpack.c.l.b16 %v1447
    %v1481 = vunpack.c.l.b16 %v1448
    %v1482 = vunpack.c.l.b16 %v1449
    %v1483 = vunpack.c.l.b16 %v1450
    %v1484 = vunpack.c.l.b16 %v1451
    %v1485 = vunpack.c.l.b16 %v1452
    %v1486 = vunpack.c.l.b16 %v1453
    %v1487 = vunpack.c.l.b16 %v1454
    %v1488 = vunpack.c.l.b16 %v1455
    %v1489 = vunpack.c.l.b16 %v1456
    %v1490 = vunpack.c.l.b16 %v1457
    %v1491 = vunpack.c.l.b16 %v1458
    %v1492 = vunpack.c.l.b16 %v1459
    %v1493 = vunpack.c.l.b16 %v1460
    %v1494 = vpack.c.b16 %v1479, %v1478
    %v1495 = vpack.c.b16 %v1481, %v1480
    %v1496 = vpack.c.b16 %v1483, %v1482
    %v1497 = vpack.c.b16 %v1485, %v1484
    %v1498 = vpack.c.b16 %v1487, %v1486
    %v1499 = vpack.c.b16 %v1489, %v1488
    %v1500 = vpack.c.b16 %v1491, %v1490
    %v1501 = vpack.c.b16 %v1493, %v1492
    %1510 = vmatprep.subr.bf16.mxu0 0
    %1511 = vmatpush1.bf16.msra.mxu0 %v1494
    %1512 = vmatprep.subr.bf16.mxu0 0
    %1513 = vmatpush1.bf16.msra.mxu0 %v1495
    %1514 = vmatprep.subr.bf16.mxu0 0
    %1515 = vmatpush1.bf16.msra.mxu0 %v1496
    %1516 = vmatprep.subr.bf16.mxu0 0
    %1517 = vmatpush1.bf16.msra.mxu0 %v1497
    %1518 = vmatprep.subr.bf16.mxu0 0
    %1519 = vmatpush1.bf16.msra.mxu0 %v1498
    %1520 = vmatprep.subr.bf16.mxu0 0
    %1521 = vmatpush1.bf16.msra.mxu0 %v1499
    %1522 = vmatprep.subr.bf16.mxu0 0
    %1523 = vmatpush1.bf16.msra.mxu0 %v1500
    %1524 = vmatprep.subr.bf16.mxu0 0
    %1525 = vmatpush1.bf16.msra.mxu0 %v1501
    %1526 = vmatprep.subr.bf16.mxu0 0
    %1527 = vmatpush1.bf16.msra.mxu0 0
    %1528 = vmatprep.subr.bf16.mxu0 0
    %1529 = vmatpush1.bf16.msra.mxu0 0
    %1530 = vmatprep.subr.bf16.mxu0 0
    %1531 = vmatpush1.bf16.msra.mxu0 0
    %1532 = vmatprep.subr.bf16.mxu0 0
    %1533 = vmatpush1.bf16.msra.mxu0 0
    %1534 = vmatprep.subr.bf16.mxu0 0
    %1535 = vmatpush1.bf16.msra.mxu0 0
    %1536 = vmatprep.subr.bf16.mxu0 0
    %1537 = vmatpush1.bf16.msra.mxu0 0
    %1538 = vmatprep.subr.bf16.mxu0 0
    %1539 = vmatpush1.bf16.msra.mxu0 0
    %1540 = vmatprep.subr.bf16.mxu0 0
    %1541 = vmatpush1.bf16.msra.mxu0 0
    %1542 = vmatprep.mubr.bf16.mxu0 0
    %1543 = vmatmul.mubr.bf16.gmra.mrb[0].mxu0 %v1461
    %v1544 = vpop.f32.mrb[0].mxu0
    %v1545 = vadd.f32 0.0, %v1544
    %v1546 = vpop.f32.mrb[0].mxu0
    %v1547 = vpop.f32.mrb[0].mxu0
    %v1548 = vpop.f32.mrb[0].mxu0
    %1549 = vdwg.mxu0
    %v1550 = vrot.slane %v1545, 4
    %v1551 = vadd.f32 %v1545, %v1550
    %v1552 = vrot.slane %v1551, 2
    %v1553 = vadd.f32 %v1551, %v1552
    %v1554 = vrot.slane %v1553, 1
    %v1555 = vadd.f32 %v1553, %v1554
    %v1556 = vmul.f32 %v1555, %v402
    %v1557 = vsub.f32 %v1545, %v1556
    %v1558 = vmul.f32 %v1557, %v1557
    %v1559 = vrot.slane %v1558, 4
    %v1560 = vadd.f32 %v1558, %v1559
    %v1561 = vrot.slane %v1560, 2
    %v1562 = vadd.f32 %v1560, %v1561
    %v1563 = vrot.slane %v1562, 1
    %v1564 = vadd.f32 %v1562, %v1563
    %v1565 = vmul.f32 %v1564, %v402
    %v1566 = vadd.f32 %v1565, 1e-05
    %v1567 = vrsqrt.pop %v1566
    %v1568 = vmul.f32 %v1567, %v1196
    %v1569 = vmul.f32 %v1556, %v1568
    %v1571 = vrot.slane %v1569, 7
    %v1573 = vsub.f32 %v1196, %v1571
    %v1574 = vlaneseq
    %v1575 = vshrl.u32 %v1574, 7
    %v1576 = vsub.s32 2, %v1575
    %v1577 = vrot.slane %v1568, %v1576
    %v1578 = vmul.f32 %v1545, %v1577
    %v1579 = vlaneseq
    %v1580 = vshrl.u32 %v1579, 7
    %v1581 = vsub.s32 3, %v1580
    %v1582 = vrot.slane %v1573, %v1581
    %v1583 = vadd.f32 %v1578, %v1582
    %v1584 = vmax.f32 %v1583, 0.0
    %s1585 = scalar_lea.vmem [#allocation22], 128
    %v1586 = vld [vmem:[%s1585] sm:$0xf]
    %v1587 = vld [vmem:[%s1585 + $0x4] sm:$0xf]
    %v1588 = vld [vmem:[%s1585 + $0x8] sm:$0xf]
    %v1589 = vld [vmem:[%s1585 + $0xc] sm:$0xf]
    %v1590 = vld [vmem:[%s1585 + $0x10] sm:$0xf]
    %v1591 = vld [vmem:[%s1585 + $0x14] sm:$0xf]
    %v1592 = vld [vmem:[%s1585 + $0x18] sm:$0xf]
    %v1593 = vld [vmem:[%s1585 + $0x1c] sm:$0xf]
    %v1594 = vld [vmem:[%s1585 + $0x20] sm:$0xf]
    %v1595 = vld [vmem:[%s1585 + $0x24] sm:$0xf]
    %v1596 = vld [vmem:[%s1585 + $0x28] sm:$0xf]
    %v1597 = vld [vmem:[%s1585 + $0x2c] sm:$0xf]
    %v1598 = vld [vmem:[%s1585 + $0x30] sm:$0xf]
    %v1599 = vld [vmem:[%s1585 + $0x34] sm:$0xf]
    %v1600 = vld [vmem:[%s1585 + $0x38] sm:$0xf]
    %v1601 = vld [vmem:[%s1585 + $0x3c] sm:$0xf]
    %v1602 = vpack.c.bf16 %v1584, %v1584
    %s1603 = scalar_lea.vmem [#allocation23], 2
    %v1604 = vld [vmem:[%s1603] sm:$0x1]
    %v1606 = vlaneseq
    %v1607 = vshrl.u32 %v1606, 7
    %v1608 = vsub.s32 0, %v1607
    %v1609 = vrot.slane %v1604, %v1608
    %v1627 = vunpack.c.l.b16 %v1586
    %v1628 = vunpack.c.l.b16 %v1587
    %v1629 = vunpack.c.l.b16 %v1588
    %v1630 = vunpack.c.l.b16 %v1589
    %v1631 = vunpack.c.l.b16 %v1590
    %v1632 = vunpack.c.l.b16 %v1591
    %v1633 = vunpack.c.l.b16 %v1592
    %v1634 = vunpack.c.l.b16 %v1593
    %v1635 = vunpack.c.l.b16 %v1594
    %v1636 = vunpack.c.l.b16 %v1595
    %v1637 = vunpack.c.l.b16 %v1596
    %v1638 = vunpack.c.l.b16 %v1597
    %v1639 = vunpack.c.l.b16 %v1598
    %v1640 = vunpack.c.l.b16 %v1599
    %v1641 = vunpack.c.l.b16 %v1600
    %v1642 = vunpack.c.l.b16 %v1601
    %v1643 = vpack.c.b16 %v1628, %v1627
    %v1644 = vpack.c.b16 %v1630, %v1629
    %v1645 = vpack.c.b16 %v1632, %v1631
    %v1646 = vpack.c.b16 %v1634, %v1633
    %v1647 = vpack.c.b16 %v1636, %v1635
    %v1648 = vpack.c.b16 %v1638, %v1637
    %v1649 = vpack.c.b16 %v1640, %v1639
    %v1650 = vpack.c.b16 %v1642, %v1641
    %1659 = vmatprep.subr.bf16.mxu0 0
    %1660 = vmatpush1.bf16.msra.mxu0 %v1643
    %1661 = vmatprep.subr.bf16.mxu0 0
    %1662 = vmatpush1.bf16.msra.mxu0 %v1644
    %1663 = vmatprep.subr.bf16.mxu0 0
    %1664 = vmatpush1.bf16.msra.mxu0 %v1645
    %1665 = vmatprep.subr.bf16.mxu0 0
    %1666 = vmatpush1.bf16.msra.mxu0 %v1646
    %1667 = vmatprep.subr.bf16.mxu0 0
    %1668 = vmatpush1.bf16.msra.mxu0 %v1647
    %1669 = vmatprep.subr.bf16.mxu0 0
    %1670 = vmatpush1.bf16.msra.mxu0 %v1648
    %1671 = vmatprep.subr.bf16.mxu0 0
    %1672 = vmatpush1.bf16.msra.mxu0 %v1649
    %1673 = vmatprep.subr.bf16.mxu0 0
    %1674 = vmatpush1.bf16.msra.mxu0 %v1650
    %1675 = vmatprep.subr.bf16.mxu0 0
    %1676 = vmatpush1.bf16.msra.mxu0 0
    %1677 = vmatprep.subr.bf16.mxu0 0
    %1678 = vmatpush1.bf16.msra.mxu0 0
    %1679 = vmatprep.subr.bf16.mxu0 0
    %1680 = vmatpush1.bf16.msra.mxu0 0
    %1681 = vmatprep.subr.bf16.mxu0 0
    %1682 = vmatpush1.bf16.msra.mxu0 0
    %1683 = vmatprep.subr.bf16.mxu0 0
    %1684 = vmatpush1.bf16.msra.mxu0 0
    %1685 = vmatprep.subr.bf16.mxu0 0
    %1686 = vmatpush1.bf16.msra.mxu0 0
    %1687 = vmatprep.subr.bf16.mxu0 0
    %1688 = vmatpush1.bf16.msra.mxu0 0
    %1689 = vmatprep.subr.bf16.mxu0 0
    %1690 = vmatpush1.bf16.msra.mxu0 0
    %1691 = vmatprep.mubr.bf16.mxu0 0
    %1692 = vmatmul.mubr.bf16.gmra.mrb[0].mxu0 %v1602
    %v1693 = vpop.f32.mrb[0].mxu0
    %v1694 = vadd.f32 %v1609, %v1693
    %v1695 = vpop.f32.mrb[0].mxu0
    %v1696 = vpop.f32.mrb[0].mxu0
    %v1697 = vpop.f32.mrb[0].mxu0
    %1698 = vdwg.mxu0
    %v1699 = vsub.f32 %v800, %v1694
    %s1700 = scalar_lea.vmem [#allocation19], 4
    %v1701 = vld [vmem:[%s1700] sm:$0xf]
    %s1702 = scalar_lea.vmem [#allocation16], 64
    %v1703 = vld [vmem:[%s1702] sm:$0xf]
    %v1704 = vld [vmem:[%s1702 + $0x4] sm:$0xf]
    %v1705 = vld [vmem:[%s1702 + $0x8] sm:$0xf]
    %v1706 = vld [vmem:[%s1702 + $0xc] sm:$0xf]
    %v1707 = vld [vmem:[%s1702 + $0x10] sm:$0xf]
    %v1708 = vld [vmem:[%s1702 + $0x14] sm:$0xf]
    %v1709 = vld [vmem:[%s1702 + $0x18] sm:$0xf]
    %v1710 = vld [vmem:[%s1702 + $0x1c] sm:$0xf]
    %v1711 = vld [vmem:[%s1702 + $0x20] sm:$0xf]
    %v1712 = vld [vmem:[%s1702 + $0x24] sm:$0xf]
    %v1713 = vld [vmem:[%s1702 + $0x28] sm:$0xf]
    %v1714 = vld [vmem:[%s1702 + $0x2c] sm:$0xf]
    %v1715 = vld [vmem:[%s1702 + $0x30] sm:$0xf]
    %v1716 = vld [vmem:[%s1702 + $0x34] sm:$0xf]
    %v1717 = vld [vmem:[%s1702 + $0x38] sm:$0xf]
    %v1718 = vld [vmem:[%s1702 + $0x3c] sm:$0xf]
    %v1719 = vpack.c.bf16 %v1699, %v1699
    %s1720 = scalar_lea.vmem [#allocation17], 64
    %v1721 = vld [vmem:[%s1720] sm:$0xf]
    %v1722 = vld [vmem:[%s1720 + $0x4] sm:$0xf]
    %v1723 = vld [vmem:[%s1720 + $0x8] sm:$0xf]
    %v1724 = vld [vmem:[%s1720 + $0xc] sm:$0xf]
    %v1725 = vld [vmem:[%s1720 + $0x10] sm:$0xf]
    %v1726 = vld [vmem:[%s1720 + $0x14] sm:$0xf]
    %v1727 = vld [vmem:[%s1720 + $0x18] sm:$0xf]
    %v1728 = vld [vmem:[%s1720 + $0x1c] sm:$0xf]
    %v1729 = vld [vmem:[%s1720 + $0x20] sm:$0xf]
    %v1730 = vld [vmem:[%s1720 + $0x24] sm:$0xf]
    %v1731 = vld [vmem:[%s1720 + $0x28] sm:$0xf]
    %v1732 = vld [vmem:[%s1720 + $0x2c] sm:$0xf]
    %v1733 = vld [vmem:[%s1720 + $0x30] sm:$0xf]
    %v1734 = vld [vmem:[%s1720 + $0x34] sm:$0xf]
    %v1735 = vld [vmem:[%s1720 + $0x38] sm:$0xf]
    %v1736 = vld [vmem:[%s1720 + $0x3c] sm:$0xf]
    %v1753 = vunpack.c.l.b16 %v1721
    %v1754 = vunpack.c.l.b16 %v1722
    %v1755 = vunpack.c.l.b16 %v1723
    %v1756 = vunpack.c.l.b16 %v1724
    %v1757 = vunpack.c.l.b16 %v1725
    %v1758 = vunpack.c.l.b16 %v1726
    %v1759 = vunpack.c.l.b16 %v1727
    %v1760 = vunpack.c.l.b16 %v1728
    %v1761 = vunpack.c.l.b16 %v1729
    %v1762 = vunpack.c.l.b16 %v1730
    %v1763 = vunpack.c.l.b16 %v1731
    %v1764 = vunpack.c.l.b16 %v1732
    %v1765 = vunpack.c.l.b16 %v1733
    %v1766 = vunpack.c.l.b16 %v1734
    %v1767 = vunpack.c.l.b16 %v1735
    %v1768 = vunpack.c.l.b16 %v1736
    %v1769 = vpack.c.b16 %v1754, %v1753
    %v1770 = vpack.c.b16 %v1756, %v1755
    %v1771 = vpack.c.b16 %v1758, %v1757
    %v1772 = vpack.c.b16 %v1760, %v1759
    %v1773 = vpack.c.b16 %v1762, %v1761
    %v1774 = vpack.c.b16 %v1764, %v1763
    %v1775 = vpack.c.b16 %v1766, %v1765
    %v1776 = vpack.c.b16 %v1768, %v1767
    %1785 = vmatprep.subr.bf16.mxu0 0
    %1786 = vmatpush1.bf16.msra.mxu0 %v1769
    %1787 = vmatprep.subr.bf16.mxu0 0
    %1788 = vmatpush1.bf16.msra.mxu0 %v1770
    %1789 = vmatprep.subr.bf16.mxu0 0
    %1790 = vmatpush1.bf16.msra.mxu0 %v1771
    %1791 = vmatprep.subr.bf16.mxu0 0
    %1792 = vmatpush1.bf16.msra.mxu0 %v1772
    %1793 = vmatprep.subr.bf16.mxu0 0
    %1794 = vmatpush1.bf16.msra.mxu0 %v1773
    %1795 = vmatprep.subr.bf16.mxu0 0
    %1796 = vmatpush1.bf16.msra.mxu0 %v1774
    %1797 = vmatprep.subr.bf16.mxu0 0
    %1798 = vmatpush1.bf16.msra.mxu0 %v1775
    %1799 = vmatprep.subr.bf16.mxu0 0
    %1800 = vmatpush1.bf16.msra.mxu0 %v1776
    %1801 = vmatprep.subr.bf16.mxu0 0
    %1802 = vmatpush1.bf16.msra.mxu0 0
    %1803 = vmatprep.subr.bf16.mxu0 0
    %1804 = vmatpush1.bf16.msra.mxu0 0
    %1805 = vmatprep.subr.bf16.mxu0 0
    %1806 = vmatpush1.bf16.msra.mxu0 0
    %1807 = vmatprep.subr.bf16.mxu0 0
    %1808 = vmatpush1.bf16.msra.mxu0 0
    %1809 = vmatprep.subr.bf16.mxu0 0
    %1810 = vmatpush1.bf16.msra.mxu0 0
    %1811 = vmatprep.subr.bf16.mxu0 0
    %1812 = vmatpush1.bf16.msra.mxu0 0
    %1813 = vmatprep.subr.bf16.mxu0 0
    %1814 = vmatpush1.bf16.msra.mxu0 0
    %1815 = vmatprep.subr.bf16.mxu0 0
    %1816 = vmatpush1.bf16.msra.mxu0 0
    %1817 = vmatprep.mubr.bf16.mxu0 0
    %1818 = vmatmul.mubr.bf16.gmra.mrb[0].mxu0 %v1232
    %v1819 = vpop.f32.mrb[0].mxu0
    %v1820 = vadd.f32 0.0, %v1819
    %v1821 = vpop.f32.mrb[0].mxu0
    %v1822 = vpop.f32.mrb[0].mxu0
    %v1823 = vpop.f32.mrb[0].mxu0
    %1824 = vdwg.mxu0
    %v1841 = vunpack.c.l.b16 %v1703
    %v1842 = vunpack.c.l.b16 %v1704
    %v1843 = vunpack.c.l.b16 %v1705
    %v1844 = vunpack.c.l.b16 %v1706
    %v1845 = vunpack.c.l.b16 %v1707
    %v1846 = vunpack.c.l.b16 %v1708
    %v1847 = vunpack.c.l.b16 %v1709
    %v1848 = vunpack.c.l.b16 %v1710
    %v1849 = vunpack.c.l.b16 %v1711
    %v1850 = vunpack.c.l.b16 %v1712
    %v1851 = vunpack.c.l.b16 %v1713
    %v1852 = vunpack.c.l.b16 %v1714
    %v1853 = vunpack.c.l.b16 %v1715
    %v1854 = vunpack.c.l.b16 %v1716
    %v1855 = vunpack.c.l.b16 %v1717
    %v1856 = vunpack.c.l.b16 %v1718
    %v1857 = vpack.c.b16 %v1842, %v1841
    %v1858 = vpack.c.b16 %v1844, %v1843
    %v1859 = vpack.c.b16 %v1846, %v1845
    %v1860 = vpack.c.b16 %v1848, %v1847
    %v1861 = vpack.c.b16 %v1850, %v1849
    %v1862 = vpack.c.b16 %v1852, %v1851
    %v1863 = vpack.c.b16 %v1854, %v1853
    %v1864 = vpack.c.b16 %v1856, %v1855
    %1873 = vmatprep.subr.bf16.mxu0 0
    %1874 = vmatpush1.bf16.msra.mxu0 %v1857
    %1875 = vmatprep.subr.bf16.mxu0 0
    %1876 = vmatpush1.bf16.msra.mxu0 %v1858
    %1877 = vmatprep.subr.bf16.mxu0 0
    %1878 = vmatpush1.bf16.msra.mxu0 %v1859
    %1879 = vmatprep.subr.bf16.mxu0 0
    %1880 = vmatpush1.bf16.msra.mxu0 %v1860
    %1881 = vmatprep.subr.bf16.mxu0 0
    %1882 = vmatpush1.bf16.msra.mxu0 %v1861
    %1883 = vmatprep.subr.bf16.mxu0 0
    %1884 = vmatpush1.bf16.msra.mxu0 %v1862
    %1885 = vmatprep.subr.bf16.mxu0 0
    %1886 = vmatpush1.bf16.msra.mxu0 %v1863
    %1887 = vmatprep.subr.bf16.mxu0 0
    %1888 = vmatpush1.bf16.msra.mxu0 %v1864
    %1889 = vmatprep.subr.bf16.mxu0 0
    %1890 = vmatpush1.bf16.msra.mxu0 0
    %1891 = vmatprep.subr.bf16.mxu0 0
    %1892 = vmatpush1.bf16.msra.mxu0 0
    %1893 = vmatprep.subr.bf16.mxu0 0
    %1894 = vmatpush1.bf16.msra.mxu0 0
    %1895 = vmatprep.subr.bf16.mxu0 0
    %1896 = vmatpush1.bf16.msra.mxu0 0
    %1897 = vmatprep.subr.bf16.mxu0 0
    %1898 = vmatpush1.bf16.msra.mxu0 0
    %1899 = vmatprep.subr.bf16.mxu0 0
    %1900 = vmatpush1.bf16.msra.mxu0 0
    %1901 = vmatprep.subr.bf16.mxu0 0
    %1902 = vmatpush1.bf16.msra.mxu0 0
    %1903 = vmatprep.subr.bf16.mxu0 0
    %1904 = vmatpush1.bf16.msra.mxu0 0
    %1905 = vmatprep.mubr.bf16.mxu0 0
    %1906 = vmatmul.mubr.bf16.gmra.mrb[0].mxu0 %v1719
    %v1907 = vpop.f32.mrb[0].mxu0
    %v1908 = vadd.f32 %v1820, %v1907
    %v1909 = vpop.f32.mrb[0].mxu0
    %v1910 = vpop.f32.mrb[0].mxu0
    %v1911 = vpop.f32.mrb[0].mxu0
    %1912 = vdwg.mxu0
    %v1913 = vrot.slane %v1908, 4
    %v1914 = vadd.f32 %v1908, %v1913
    %v1915 = vrot.slane %v1914, 2
    %v1916 = vadd.f32 %v1914, %v1915
    %v1917 = vrot.slane %v1916, 1
    %v1918 = vadd.f32 %v1916, %v1917
    %v1919 = vmul.f32 %v1918, %v402
    %v1920 = vsub.f32 %v1908, %v1919
    %v1921 = vmul.f32 %v1920, %v1920
    %v1922 = vrot.slane %v1921, 4
    %v1923 = vadd.f32 %v1921, %v1922
    %v1924 = vrot.slane %v1923, 2
    %v1925 = vadd.f32 %v1923, %v1924
    %v1926 = vrot.slane %v1925, 1
    %v1927 = vadd.f32 %v1925, %v1926
    %v1928 = vmul.f32 %v1927, %v402
    %v1929 = vadd.f32 %v1928, 1e-05
    %v1930 = vrsqrt.pop %v1929
    %v1931 = vmul.f32 %v1930, %v1701
    %v1932 = vmul.f32 %v1919, %v1931
    %v1934 = vrot.slane %v1932, 7
    %v1936 = vsub.f32 %v1701, %v1934
    %v1937 = vlaneseq
    %v1938 = vshrl.u32 %v1937, 7
    %v1939 = vsub.s32 0, %v1938
    %v1940 = vrot.slane %v1931, %v1939
    %v1941 = vmul.f32 %v1908, %v1940
    %v1942 = vlaneseq
    %v1943 = vshrl.u32 %v1942, 7
    %v1944 = vsub.s32 1, %v1943
    %v1945 = vrot.slane %v1936, %v1944
    %v1946 = vadd.f32 %v1941, %v1945
    %v1947 = vmax.f32 %v1946, 0.0
    %s1948 = scalar_lea.vmem [#allocation20], 64
    %v1949 = vld [vmem:[%s1948] sm:$0xf]
    %v1950 = vld [vmem:[%s1948 + $0x4] sm:$0xf]
    %v1951 = vld [vmem:[%s1948 + $0x8] sm:$0xf]
    %v1952 = vld [vmem:[%s1948 + $0xc] sm:$0xf]
    %v1953 = vld [vmem:[%s1948 + $0x10] sm:$0xf]
    %v1954 = vld [vmem:[%s1948 + $0x14] sm:$0xf]
    %v1955 = vld [vmem:[%s1948 + $0x18] sm:$0xf]
    %v1956 = vld [vmem:[%s1948 + $0x1c] sm:$0xf]
    %v1957 = vld [vmem:[%s1948 + $0x20] sm:$0xf]
    %v1958 = vld [vmem:[%s1948 + $0x24] sm:$0xf]
    %v1959 = vld [vmem:[%s1948 + $0x28] sm:$0xf]
    %v1960 = vld [vmem:[%s1948 + $0x2c] sm:$0xf]
    %v1961 = vld [vmem:[%s1948 + $0x30] sm:$0xf]
    %v1962 = vld [vmem:[%s1948 + $0x34] sm:$0xf]
    %v1963 = vld [vmem:[%s1948 + $0x38] sm:$0xf]
    %v1964 = vld [vmem:[%s1948 + $0x3c] sm:$0xf]
    %v1965 = vpack.c.bf16 %v1947, %v1947
    %v1982 = vunpack.c.l.b16 %v1949
    %v1983 = vunpack.c.l.b16 %v1950
    %v1984 = vunpack.c.l.b16 %v1951
    %v1985 = vunpack.c.l.b16 %v1952
    %v1986 = vunpack.c.l.b16 %v1953
    %v1987 = vunpack.c.l.b16 %v1954
    %v1988 = vunpack.c.l.b16 %v1955
    %v1989 = vunpack.c.l.b16 %v1956
    %v1990 = vunpack.c.l.b16 %v1957
    %v1991 = vunpack.c.l.b16 %v1958
    %v1992 = vunpack.c.l.b16 %v1959
    %v1993 = vunpack.c.l.b16 %v1960
    %v1994 = vunpack.c.l.b16 %v1961
    %v1995 = vunpack.c.l.b16 %v1962
    %v1996 = vunpack.c.l.b16 %v1963
    %v1997 = vunpack.c.l.b16 %v1964
    %v1998 = vpack.c.b16 %v1983, %v1982
    %v1999 = vpack.c.b16 %v1985, %v1984
    %v2000 = vpack.c.b16 %v1987, %v1986
    %v2001 = vpack.c.b16 %v1989, %v1988
    %v2002 = vpack.c.b16 %v1991, %v1990
    %v2003 = vpack.c.b16 %v1993, %v1992
    %v2004 = vpack.c.b16 %v1995, %v1994
    %v2005 = vpack.c.b16 %v1997, %v1996
    %2014 = vmatprep.subr.bf16.mxu0 0
    %2015 = vmatpush1.bf16.msra.mxu0 %v1998
    %2016 = vmatprep.subr.bf16.mxu0 0
    %2017 = vmatpush1.bf16.msra.mxu0 %v1999
    %2018 = vmatprep.subr.bf16.mxu0 0
    %2019 = vmatpush1.bf16.msra.mxu0 %v2000
    %2020 = vmatprep.subr.bf16.mxu0 0
    %2021 = vmatpush1.bf16.msra.mxu0 %v2001
    %2022 = vmatprep.subr.bf16.mxu0 0
    %2023 = vmatpush1.bf16.msra.mxu0 %v2002
    %2024 = vmatprep.subr.bf16.mxu0 0
    %2025 = vmatpush1.bf16.msra.mxu0 %v2003
    %2026 = vmatprep.subr.bf16.mxu0 0
    %2027 = vmatpush1.bf16.msra.mxu0 %v2004
    %2028 = vmatprep.subr.bf16.mxu0 0
    %2029 = vmatpush1.bf16.msra.mxu0 %v2005
    %2030 = vmatprep.subr.bf16.mxu0 0
    %2031 = vmatpush1.bf16.msra.mxu0 0
    %2032 = vmatprep.subr.bf16.mxu0 0
    %2033 = vmatpush1.bf16.msra.mxu0 0
    %2034 = vmatprep.subr.bf16.mxu0 0
    %2035 = vmatpush1.bf16.msra.mxu0 0
    %2036 = vmatprep.subr.bf16.mxu0 0
    %2037 = vmatpush1.bf16.msra.mxu0 0
    %2038 = vmatprep.subr.bf16.mxu0 0
    %2039 = vmatpush1.bf16.msra.mxu0 0
    %2040 = vmatprep.subr.bf16.mxu0 0
    %2041 = vmatpush1.bf16.msra.mxu0 0
    %2042 = vmatprep.subr.bf16.mxu0 0
    %2043 = vmatpush1.bf16.msra.mxu0 0
    %2044 = vmatprep.subr.bf16.mxu0 0
    %2045 = vmatpush1.bf16.msra.mxu0 0
    %2046 = vmatprep.mubr.bf16.mxu0 0
    %2047 = vmatmul.mubr.bf16.gmra.mrb[0].mxu0 %v1965
    %v2048 = vpop.f32.mrb[0].mxu0
    %v2049 = vadd.f32 0.0, %v2048
    %v2050 = vpop.f32.mrb[0].mxu0
    %v2051 = vpop.f32.mrb[0].mxu0
    %v2052 = vpop.f32.mrb[0].mxu0
    %2053 = vdwg.mxu0
    %v2054 = vrot.slane %v2049, 4
    %v2055 = vadd.f32 %v2049, %v2054
    %v2056 = vrot.slane %v2055, 2
    %v2057 = vadd.f32 %v2055, %v2056
    %v2058 = vrot.slane %v2057, 1
    %v2059 = vadd.f32 %v2057, %v2058
    %v2060 = vmul.f32 %v2059, %v402
    %v2061 = vsub.f32 %v2049, %v2060
    %v2062 = vmul.f32 %v2061, %v2061
    %v2063 = vrot.slane %v2062, 4
    %v2064 = vadd.f32 %v2062, %v2063
    %v2065 = vrot.slane %v2064, 2
    %v2066 = vadd.f32 %v2064, %v2065
    %v2067 = vrot.slane %v2066, 1
    %v2068 = vadd.f32 %v2066, %v2067
    %v2069 = vmul.f32 %v2068, %v402
    %v2070 = vadd.f32 %v2069, 1e-05
    %v2071 = vrsqrt.pop %v2070
    %v2072 = vmul.f32 %v2071, %v1701
    %v2073 = vmul.f32 %v2060, %v2072
    %v2075 = vrot.slane %v2073, 7
    %v2077 = vsub.f32 %v1701, %v2075
    %v2078 = vlaneseq
    %v2079 = vshrl.u32 %v2078, 7
    %v2080 = vsub.s32 2, %v2079
    %v2081 = vrot.slane %v2072, %v2080
    %v2082 = vmul.f32 %v2049, %v2081
    %v2083 = vlaneseq
    %v2084 = vshrl.u32 %v2083, 7
    %v2085 = vsub.s32 3, %v2084
    %v2086 = vrot.slane %v2077, %v2085
    %v2087 = vadd.f32 %v2082, %v2086
    %v2088 = vmax.f32 %v2087, 0.0
    %s2089 = scalar_lea.vmem [#allocation22], 64
    %v2090 = vld [vmem:[%s2089] sm:$0xf]
    %v2091 = vld [vmem:[%s2089 + $0x4] sm:$0xf]
    %v2092 = vld [vmem:[%s2089 + $0x8] sm:$0xf]
    %v2093 = vld [vmem:[%s2089 + $0xc] sm:$0xf]
    %v2094 = vld [vmem:[%s2089 + $0x10] sm:$0xf]
    %v2095 = vld [vmem:[%s2089 + $0x14] sm:$0xf]
    %v2096 = vld [vmem:[%s2089 + $0x18] sm:$0xf]
    %v2097 = vld [vmem:[%s2089 + $0x1c] sm:$0xf]
    %v2098 = vld [vmem:[%s2089 + $0x20] sm:$0xf]
    %v2099 = vld [vmem:[%s2089 + $0x24] sm:$0xf]
    %v2100 = vld [vmem:[%s2089 + $0x28] sm:$0xf]
    %v2101 = vld [vmem:[%s2089 + $0x2c] sm:$0xf]
    %v2102 = vld [vmem:[%s2089 + $0x30] sm:$0xf]
    %v2103 = vld [vmem:[%s2089 + $0x34] sm:$0xf]
    %v2104 = vld [vmem:[%s2089 + $0x38] sm:$0xf]
    %v2105 = vld [vmem:[%s2089 + $0x3c] sm:$0xf]
    %v2106 = vpack.c.bf16 %v2088, %v2088
    %s2107 = scalar_lea.vmem [#allocation23], 1
    %v2108 = vld [vmem:[%s2107] sm:$0x1]
    %v2110 = vlaneseq
    %v2111 = vshrl.u32 %v2110, 7
    %v2112 = vsub.s32 0, %v2111
    %v2113 = vrot.slane %v2108, %v2112
    %v2131 = vunpack.c.l.b16 %v2090
    %v2132 = vunpack.c.l.b16 %v2091
    %v2133 = vunpack.c.l.b16 %v2092
    %v2134 = vunpack.c.l.b16 %v2093
    %v2135 = vunpack.c.l.b16 %v2094
    %v2136 = vunpack.c.l.b16 %v2095
    %v2137 = vunpack.c.l.b16 %v2096
    %v2138 = vunpack.c.l.b16 %v2097
    %v2139 = vunpack.c.l.b16 %v2098
    %v2140 = vunpack.c.l.b16 %v2099
    %v2141 = vunpack.c.l.b16 %v2100
    %v2142 = vunpack.c.l.b16 %v2101
    %v2143 = vunpack.c.l.b16 %v2102
    %v2144 = vunpack.c.l.b16 %v2103
    %v2145 = vunpack.c.l.b16 %v2104
    %v2146 = vunpack.c.l.b16 %v2105
    %v2147 = vpack.c.b16 %v2132, %v2131
    %v2148 = vpack.c.b16 %v2134, %v2133
    %v2149 = vpack.c.b16 %v2136, %v2135
    %v2150 = vpack.c.b16 %v2138, %v2137
    %v2151 = vpack.c.b16 %v2140, %v2139
    %v2152 = vpack.c.b16 %v2142, %v2141
    %v2153 = vpack.c.b16 %v2144, %v2143
    %v2154 = vpack.c.b16 %v2146, %v2145
    %2163 = vmatprep.subr.bf16.mxu0 0
    %2164 = vmatpush1.bf16.msra.mxu0 %v2147
    %2165 = vmatprep.subr.bf16.mxu0 0
    %2166 = vmatpush1.bf16.msra.mxu0 %v2148
    %2167 = vmatprep.subr.bf16.mxu0 0
    %2168 = vmatpush1.bf16.msra.mxu0 %v2149
    %2169 = vmatprep.subr.bf16.mxu0 0
    %2170 = vmatpush1.bf16.msra.mxu0 %v2150
    %2171 = vmatprep.subr.bf16.mxu0 0
    %2172 = vmatpush1.bf16.msra.mxu0 %v2151
    %2173 = vmatprep.subr.bf16.mxu0 0
    %2174 = vmatpush1.bf16.msra.mxu0 %v2152
    %2175 = vmatprep.subr.bf16.mxu0 0
    %2176 = vmatpush1.bf16.msra.mxu0 %v2153
    %2177 = vmatprep.subr.bf16.mxu0 0
    %2178 = vmatpush1.bf16.msra.mxu0 %v2154
    %2179 = vmatprep.subr.bf16.mxu0 0
    %2180 = vmatpush1.bf16.msra.mxu0 0
    %2181 = vmatprep.subr.bf16.mxu0 0
    %2182 = vmatpush1.bf16.msra.mxu0 0
    %2183 = vmatprep.subr.bf16.mxu0 0
    %2184 = vmatpush1.bf16.msra.mxu0 0
    %2185 = vmatprep.subr.bf16.mxu0 0
    %2186 = vmatpush1.bf16.msra.mxu0 0
    %2187 = vmatprep.subr.bf16.mxu0 0
    %2188 = vmatpush1.bf16.msra.mxu0 0
    %2189 = vmatprep.subr.bf16.mxu0 0
    %2190 = vmatpush1.bf16.msra.mxu0 0
    %2191 = vmatprep.subr.bf16.mxu0 0
    %2192 = vmatpush1.bf16.msra.mxu0 0
    %2193 = vmatprep.subr.bf16.mxu0 0
    %2194 = vmatpush1.bf16.msra.mxu0 0
    %2195 = vmatprep.mubr.bf16.mxu0 0
    %2196 = vmatmul.mubr.bf16.gmra.mrb[0].mxu0 %v2106
    %v2197 = vpop.f32.mrb[0].mxu0
    %v2198 = vadd.f32 %v2113, %v2197
    %v2199 = vpop.f32.mrb[0].mxu0
    %v2200 = vpop.f32.mrb[0].mxu0
    %v2201 = vpop.f32.mrb[0].mxu0
    %2202 = vdwg.mxu0
    %v2203 = vsub.f32 %v1699, %v2198
    %v2204 = vld [vmem:[#allocation19] sm:$0xf]
    %v2205 = vld [vmem:[#allocation16] sm:$0xf]
    %v2206 = vld [vmem:[#allocation16 + $0x4] sm:$0xf]
    %v2207 = vld [vmem:[#allocation16 + $0x8] sm:$0xf]
    %v2208 = vld [vmem:[#allocation16 + $0xc] sm:$0xf]
    %v2209 = vld [vmem:[#allocation16 + $0x10] sm:$0xf]
    %v2210 = vld [vmem:[#allocation16 + $0x14] sm:$0xf]
    %v2211 = vld [vmem:[#allocation16 + $0x18] sm:$0xf]
    %v2212 = vld [vmem:[#allocation16 + $0x1c] sm:$0xf]
    %v2213 = vld [vmem:[#allocation16 + $0x20] sm:$0xf]
    %v2214 = vld [vmem:[#allocation16 + $0x24] sm:$0xf]
    %v2215 = vld [vmem:[#allocation16 + $0x28] sm:$0xf]
    %v2216 = vld [vmem:[#allocation16 + $0x2c] sm:$0xf]
    %v2217 = vld [vmem:[#allocation16 + $0x30] sm:$0xf]
    %v2218 = vld [vmem:[#allocation16 + $0x34] sm:$0xf]
    %v2219 = vld [vmem:[#allocation16 + $0x38] sm:$0xf]
    %v2220 = vld [vmem:[#allocation16 + $0x3c] sm:$0xf]
    %v2221 = vpack.c.bf16 %v2203, %v2203
    %v2222 = vld [vmem:[#allocation17] sm:$0xf]
    %v2223 = vld [vmem:[#allocation17 + $0x4] sm:$0xf]
    %v2224 = vld [vmem:[#allocation17 + $0x8] sm:$0xf]
    %v2225 = vld [vmem:[#allocation17 + $0xc] sm:$0xf]
    %v2226 = vld [vmem:[#allocation17 + $0x10] sm:$0xf]
    %v2227 = vld [vmem:[#allocation17 + $0x14] sm:$0xf]
    %v2228 = vld [vmem:[#allocation17 + $0x18] sm:$0xf]
    %v2229 = vld [vmem:[#allocation17 + $0x1c] sm:$0xf]
    %v2230 = vld [vmem:[#allocation17 + $0x20] sm:$0xf]
    %v2231 = vld [vmem:[#allocation17 + $0x24] sm:$0xf]
    %v2232 = vld [vmem:[#allocation17 + $0x28] sm:$0xf]
    %v2233 = vld [vmem:[#allocation17 + $0x2c] sm:$0xf]
    %v2234 = vld [vmem:[#allocation17 + $0x30] sm:$0xf]
    %v2235 = vld [vmem:[#allocation17 + $0x34] sm:$0xf]
    %v2236 = vld [vmem:[#allocation17 + $0x38] sm:$0xf]
    %v2237 = vld [vmem:[#allocation17 + $0x3c] sm:$0xf]
    %v2254 = vunpack.c.l.b16 %v2222
    %v2255 = vunpack.c.l.b16 %v2223
    %v2256 = vunpack.c.l.b16 %v2224
    %v2257 = vunpack.c.l.b16 %v2225
    %v2258 = vunpack.c.l.b16 %v2226
    %v2259 = vunpack.c.l.b16 %v2227
    %v2260 = vunpack.c.l.b16 %v2228
    %v2261 = vunpack.c.l.b16 %v2229
    %v2262 = vunpack.c.l.b16 %v2230
    %v2263 = vunpack.c.l.b16 %v2231
    %v2264 = vunpack.c.l.b16 %v2232
    %v2265 = vunpack.c.l.b16 %v2233
    %v2266 = vunpack.c.l.b16 %v2234
    %v2267 = vunpack.c.l.b16 %v2235
    %v2268 = vunpack.c.l.b16 %v2236
    %v2269 = vunpack.c.l.b16 %v2237
    %v2270 = vpack.c.b16 %v2255, %v2254
    %v2271 = vpack.c.b16 %v2257, %v2256
    %v2272 = vpack.c.b16 %v2259, %v2258
    %v2273 = vpack.c.b16 %v2261, %v2260
    %v2274 = vpack.c.b16 %v2263, %v2262
    %v2275 = vpack.c.b16 %v2265, %v2264
    %v2276 = vpack.c.b16 %v2267, %v2266
    %v2277 = vpack.c.b16 %v2269, %v2268
    %2286 = vmatprep.subr.bf16.mxu0 0
    %2287 = vmatpush1.bf16.msra.mxu0 %v2270
    %2288 = vmatprep.subr.bf16.mxu0 0
    %2289 = vmatpush1.bf16.msra.mxu0 %v2271
    %2290 = vmatprep.subr.bf16.mxu0 0
    %2291 = vmatpush1.bf16.msra.mxu0 %v2272
    %2292 = vmatprep.subr.bf16.mxu0 0
    %2293 = vmatpush1.bf16.msra.mxu0 %v2273
    %2294 = vmatprep.subr.bf16.mxu0 0
    %2295 = vmatpush1.bf16.msra.mxu0 %v2274
    %2296 = vmatprep.subr.bf16.mxu0 0
    %2297 = vmatpush1.bf16.msra.mxu0 %v2275
    %2298 = vmatprep.subr.bf16.mxu0 0
    %2299 = vmatpush1.bf16.msra.mxu0 %v2276
    %2300 = vmatprep.subr.bf16.mxu0 0
    %2301 = vmatpush1.bf16.msra.mxu0 %v2277
    %2302 = vmatprep.subr.bf16.mxu0 0
    %2303 = vmatpush1.bf16.msra.mxu0 0
    %2304 = vmatprep.subr.bf16.mxu0 0
    %2305 = vmatpush1.bf16.msra.mxu0 0
    %2306 = vmatprep.subr.bf16.mxu0 0
    %2307 = vmatpush1.bf16.msra.mxu0 0
    %2308 = vmatprep.subr.bf16.mxu0 0
    %2309 = vmatpush1.bf16.msra.mxu0 0
    %2310 = vmatprep.subr.bf16.mxu0 0
    %2311 = vmatpush1.bf16.msra.mxu0 0
    %2312 = vmatprep.subr.bf16.mxu0 0
    %2313 = vmatpush1.bf16.msra.mxu0 0
    %2314 = vmatprep.subr.bf16.mxu0 0
    %2315 = vmatpush1.bf16.msra.mxu0 0
    %2316 = vmatprep.subr.bf16.mxu0 0
    %2317 = vmatpush1.bf16.msra.mxu0 0
    %2318 = vmatprep.mubr.bf16.mxu0 0
    %2319 = vmatmul.mubr.bf16.gmra.mrb[0].mxu0 %v1232
    %v2320 = vpop.f32.mrb[0].mxu0
    %v2321 = vadd.f32 0.0, %v2320
    %v2322 = vpop.f32.mrb[0].mxu0
    %v2323 = vpop.f32.mrb[0].mxu0
    %v2324 = vpop.f32.mrb[0].mxu0
    %2325 = vdwg.mxu0
    %v2342 = vunpack.c.l.b16 %v2205
    %v2343 = vunpack.c.l.b16 %v2206
    %v2344 = vunpack.c.l.b16 %v2207
    %v2345 = vunpack.c.l.b16 %v2208
    %v2346 = vunpack.c.l.b16 %v2209
    %v2347 = vunpack.c.l.b16 %v2210
    %v2348 = vunpack.c.l.b16 %v2211
    %v2349 = vunpack.c.l.b16 %v2212
    %v2350 = vunpack.c.l.b16 %v2213
    %v2351 = vunpack.c.l.b16 %v2214
    %v2352 = vunpack.c.l.b16 %v2215
    %v2353 = vunpack.c.l.b16 %v2216
    %v2354 = vunpack.c.l.b16 %v2217
    %v2355 = vunpack.c.l.b16 %v2218
    %v2356 = vunpack.c.l.b16 %v2219
    %v2357 = vunpack.c.l.b16 %v2220
    %v2358 = vpack.c.b16 %v2343, %v2342
    %v2359 = vpack.c.b16 %v2345, %v2344
    %v2360 = vpack.c.b16 %v2347, %v2346
    %v2361 = vpack.c.b16 %v2349, %v2348
    %v2362 = vpack.c.b16 %v2351, %v2350
    %v2363 = vpack.c.b16 %v2353, %v2352
    %v2364 = vpack.c.b16 %v2355, %v2354
    %v2365 = vpack.c.b16 %v2357, %v2356
    %2374 = vmatprep.subr.bf16.mxu0 0
    %2375 = vmatpush1.bf16.msra.mxu0 %v2358
    %2376 = vmatprep.subr.bf16.mxu0 0
    %2377 = vmatpush1.bf16.msra.mxu0 %v2359
    %2378 = vmatprep.subr.bf16.mxu0 0
    %2379 = vmatpush1.bf16.msra.mxu0 %v2360
    %2380 = vmatprep.subr.bf16.mxu0 0
    %2381 = vmatpush1.bf16.msra.mxu0 %v2361
    %2382 = vmatprep.subr.bf16.mxu0 0
    %2383 = vmatpush1.bf16.msra.mxu0 %v2362
    %2384 = vmatprep.subr.bf16.mxu0 0
    %2385 = vmatpush1.bf16.msra.mxu0 %v2363
    %2386 = vmatprep.subr.bf16.mxu0 0
    %2387 = vmatpush1.bf16.msra.mxu0 %v2364
    %2388 = vmatprep.subr.bf16.mxu0 0
    %2389 = vmatpush1.bf16.msra.mxu0 %v2365
    %2390 = vmatprep.subr.bf16.mxu0 0
    %2391 = vmatpush1.bf16.msra.mxu0 0
    %2392 = vmatprep.subr.bf16.mxu0 0
    %2393 = vmatpush1.bf16.msra.mxu0 0
    %2394 = vmatprep.subr.bf16.mxu0 0
    %2395 = vmatpush1.bf16.msra.mxu0 0
    %2396 = vmatprep.subr.bf16.mxu0 0
    %2397 = vmatpush1.bf16.msra.mxu0 0
    %2398 = vmatprep.subr.bf16.mxu0 0
    %2399 = vmatpush1.bf16.msra.mxu0 0
    %2400 = vmatprep.subr.bf16.mxu0 0
    %2401 = vmatpush1.bf16.msra.mxu0 0
    %2402 = vmatprep.subr.bf16.mxu0 0
    %2403 = vmatpush1.bf16.msra.mxu0 0
    %2404 = vmatprep.subr.bf16.mxu0 0
    %2405 = vmatpush1.bf16.msra.mxu0 0
    %2406 = vmatprep.mubr.bf16.mxu0 0
    %2407 = vmatmul.mubr.bf16.gmra.mrb[0].mxu0 %v2221
    %v2408 = vpop.f32.mrb[0].mxu0
    %v2409 = vadd.f32 %v2321, %v2408
    %v2410 = vpop.f32.mrb[0].mxu0
    %v2411 = vpop.f32.mrb[0].mxu0
    %v2412 = vpop.f32.mrb[0].mxu0
    %2413 = vdwg.mxu0
    %v2414 = vrot.slane %v2409, 4
    %v2415 = vadd.f32 %v2409, %v2414
    %v2416 = vrot.slane %v2415, 2
    %v2417 = vadd.f32 %v2415, %v2416
    %v2418 = vrot.slane %v2417, 1
    %v2419 = vadd.f32 %v2417, %v2418
    %v2420 = vmul.f32 %v2419, %v402
    %v2421 = vsub.f32 %v2409, %v2420
    %v2422 = vmul.f32 %v2421, %v2421
    %v2423 = vrot.slane %v2422, 4
    %v2424 = vadd.f32 %v2422, %v2423
    %v2425 = vrot.slane %v2424, 2
    %v2426 = vadd.f32 %v2424, %v2425
    %v2427 = vrot.slane %v2426, 1
    %v2428 = vadd.f32 %v2426, %v2427
    %v2429 = vmul.f32 %v2428, %v402
    %v2430 = vadd.f32 %v2429, 1e-05
    %v2431 = vrsqrt.pop %v2430
    %v2432 = vmul.f32 %v2431, %v2204
    %v2433 = vmul.f32 %v2420, %v2432
    %v2435 = vrot.slane %v2433, 7
    %v2437 = vsub.f32 %v2204, %v2435
    %v2438 = vlaneseq
    %v2439 = vshrl.u32 %v2438, 7
    %v2440 = vsub.s32 0, %v2439
    %v2441 = vrot.slane %v2432, %v2440
    %v2442 = vmul.f32 %v2409, %v2441
    %v2443 = vlaneseq
    %v2444 = vshrl.u32 %v2443, 7
    %v2445 = vsub.s32 1, %v2444
    %v2446 = vrot.slane %v2437, %v2445
    %v2447 = vadd.f32 %v2442, %v2446
    %v2448 = vmax.f32 %v2447, 0.0
    %v2449 = vld [vmem:[#allocation20] sm:$0xf]
    %v2450 = vld [vmem:[#allocation20 + $0x4] sm:$0xf]
    %v2451 = vld [vmem:[#allocation20 + $0x8] sm:$0xf]
    %v2452 = vld [vmem:[#allocation20 + $0xc] sm:$0xf]
    %v2453 = vld [vmem:[#allocation20 + $0x10] sm:$0xf]
    %v2454 = vld [vmem:[#allocation20 + $0x14] sm:$0xf]
    %v2455 = vld [vmem:[#allocation20 + $0x18] sm:$0xf]
    %v2456 = vld [vmem:[#allocation20 + $0x1c] sm:$0xf]
    %v2457 = vld [vmem:[#allocation20 + $0x20] sm:$0xf]
    %v2458 = vld [vmem:[#allocation20 + $0x24] sm:$0xf]
    %v2459 = vld [vmem:[#allocation20 + $0x28] sm:$0xf]
    %v2460 = vld [vmem:[#allocation20 + $0x2c] sm:$0xf]
    %v2461 = vld [vmem:[#allocation20 + $0x30] sm:$0xf]
    %v2462 = vld [vmem:[#allocation20 + $0x34] sm:$0xf]
    %v2463 = vld [vmem:[#allocation20 + $0x38] sm:$0xf]
    %v2464 = vld [vmem:[#allocation20 + $0x3c] sm:$0xf]
    %v2465 = vpack.c.bf16 %v2448, %v2448
    %v2482 = vunpack.c.l.b16 %v2449
    %v2483 = vunpack.c.l.b16 %v2450
    %v2484 = vunpack.c.l.b16 %v2451
    %v2485 = vunpack.c.l.b16 %v2452
    %v2486 = vunpack.c.l.b16 %v2453
    %v2487 = vunpack.c.l.b16 %v2454
    %v2488 = vunpack.c.l.b16 %v2455
    %v2489 = vunpack.c.l.b16 %v2456
    %v2490 = vunpack.c.l.b16 %v2457
    %v2491 = vunpack.c.l.b16 %v2458
    %v2492 = vunpack.c.l.b16 %v2459
    %v2493 = vunpack.c.l.b16 %v2460
    %v2494 = vunpack.c.l.b16 %v2461
    %v2495 = vunpack.c.l.b16 %v2462
    %v2496 = vunpack.c.l.b16 %v2463
    %v2497 = vunpack.c.l.b16 %v2464
    %v2498 = vpack.c.b16 %v2483, %v2482
    %v2499 = vpack.c.b16 %v2485, %v2484
    %v2500 = vpack.c.b16 %v2487, %v2486
    %v2501 = vpack.c.b16 %v2489, %v2488
    %v2502 = vpack.c.b16 %v2491, %v2490
    %v2503 = vpack.c.b16 %v2493, %v2492
    %v2504 = vpack.c.b16 %v2495, %v2494
    %v2505 = vpack.c.b16 %v2497, %v2496
    %2514 = vmatprep.subr.bf16.mxu0 0
    %2515 = vmatpush1.bf16.msra.mxu0 %v2498
    %2516 = vmatprep.subr.bf16.mxu0 0
    %2517 = vmatpush1.bf16.msra.mxu0 %v2499
    %2518 = vmatprep.subr.bf16.mxu0 0
    %2519 = vmatpush1.bf16.msra.mxu0 %v2500
    %2520 = vmatprep.subr.bf16.mxu0 0
    %2521 = vmatpush1.bf16.msra.mxu0 %v2501
    %2522 = vmatprep.subr.bf16.mxu0 0
    %2523 = vmatpush1.bf16.msra.mxu0 %v2502
    %2524 = vmatprep.subr.bf16.mxu0 0
    %2525 = vmatpush1.bf16.msra.mxu0 %v2503
    %2526 = vmatprep.subr.bf16.mxu0 0
    %2527 = vmatpush1.bf16.msra.mxu0 %v2504
    %2528 = vmatprep.subr.bf16.mxu0 0
    %2529 = vmatpush1.bf16.msra.mxu0 %v2505
    %2530 = vmatprep.subr.bf16.mxu0 0
    %2531 = vmatpush1.bf16.msra.mxu0 0
    %2532 = vmatprep.subr.bf16.mxu0 0
    %2533 = vmatpush1.bf16.msra.mxu0 0
    %2534 = vmatprep.subr.bf16.mxu0 0
    %2535 = vmatpush1.bf16.msra.mxu0 0
    %2536 = vmatprep.subr.bf16.mxu0 0
    %2537 = vmatpush1.bf16.msra.mxu0 0
    %2538 = vmatprep.subr.bf16.mxu0 0
    %2539 = vmatpush1.bf16.msra.mxu0 0
    %2540 = vmatprep.subr.bf16.mxu0 0
    %2541 = vmatpush1.bf16.msra.mxu0 0
    %2542 = vmatprep.subr.bf16.mxu0 0
    %2543 = vmatpush1.bf16.msra.mxu0 0
    %2544 = vmatprep.subr.bf16.mxu0 0
    %2545 = vmatpush1.bf16.msra.mxu0 0
    %2546 = vmatprep.mubr.bf16.mxu0 0
    %2547 = vmatmul.mubr.bf16.gmra.mrb[0].mxu0 %v2465
    %v2548 = vpop.f32.mrb[0].mxu0
    %v2549 = vadd.f32 0.0, %v2548
    %v2550 = vpop.f32.mrb[0].mxu0
    %v2551 = vpop.f32.mrb[0].mxu0
    %v2552 = vpop.f32.mrb[0].mxu0
    %2553 = vdwg.mxu0
    %v2554 = vrot.slane %v2549, 4
    %v2555 = vadd.f32 %v2549, %v2554
    %v2556 = vrot.slane %v2555, 2
    %v2557 = vadd.f32 %v2555, %v2556
    %v2558 = vrot.slane %v2557, 1
    %v2559 = vadd.f32 %v2557, %v2558
    %v2560 = vmul.f32 %v2559, %v402
    %v2561 = vsub.f32 %v2549, %v2560
    %v2562 = vmul.f32 %v2561, %v2561
    %v2563 = vrot.slane %v2562, 4
    %v2564 = vadd.f32 %v2562, %v2563
    %v2565 = vrot.slane %v2564, 2
    %v2566 = vadd.f32 %v2564, %v2565
    %v2567 = vrot.slane %v2566, 1
    %v2568 = vadd.f32 %v2566, %v2567
    %v2569 = vmul.f32 %v2568, %v402
    %v2570 = vadd.f32 %v2569, 1e-05
    %v2571 = vrsqrt.pop %v2570
    %v2572 = vmul.f32 %v2571, %v2204
    %v2573 = vmul.f32 %v2560, %v2572
    %v2575 = vrot.slane %v2573, 7
    %v2577 = vsub.f32 %v2204, %v2575
    %v2578 = vlaneseq
    %v2579 = vshrl.u32 %v2578, 7
    %v2580 = vsub.s32 2, %v2579
    %v2581 = vrot.slane %v2572, %v2580
    %v2582 = vmul.f32 %v2549, %v2581
    %v2583 = vlaneseq
    %v2584 = vshrl.u32 %v2583, 7
    %v2585 = vsub.s32 3, %v2584
    %v2586 = vrot.slane %v2577, %v2585
    %v2587 = vadd.f32 %v2582, %v2586
    %v2588 = vmax.f32 %v2587, 0.0
    %v2589 = vld [vmem:[#allocation22] sm:$0xf]
    %v2590 = vld [vmem:[#allocation22 + $0x4] sm:$0xf]
    %v2591 = vld [vmem:[#allocation22 + $0x8] sm:$0xf]
    %v2592 = vld [vmem:[#allocation22 + $0xc] sm:$0xf]
    %v2593 = vld [vmem:[#allocation22 + $0x10] sm:$0xf]
    %v2594 = vld [vmem:[#allocation22 + $0x14] sm:$0xf]
    %v2595 = vld [vmem:[#allocation22 + $0x18] sm:$0xf]
    %v2596 = vld [vmem:[#allocation22 + $0x1c] sm:$0xf]
    %v2597 = vld [vmem:[#allocation22 + $0x20] sm:$0xf]
    %v2598 = vld [vmem:[#allocation22 + $0x24] sm:$0xf]
    %v2599 = vld [vmem:[#allocation22 + $0x28] sm:$0xf]
    %v2600 = vld [vmem:[#allocation22 + $0x2c] sm:$0xf]
    %v2601 = vld [vmem:[#allocation22 + $0x30] sm:$0xf]
    %v2602 = vld [vmem:[#allocation22 + $0x34] sm:$0xf]
    %v2603 = vld [vmem:[#allocation22 + $0x38] sm:$0xf]
    %v2604 = vld [vmem:[#allocation22 + $0x3c] sm:$0xf]
    %v2605 = vpack.c.bf16 %v2588, %v2588
    %v2606 = vld [vmem:[#allocation23] sm:$0x1]
    %v2608 = vlaneseq
    %v2609 = vshrl.u32 %v2608, 7
    %v2610 = vsub.s32 0, %v2609
    %v2611 = vrot.slane %v2606, %v2610
    %v2629 = vunpack.c.l.b16 %v2589
    %v2630 = vunpack.c.l.b16 %v2590
    %v2631 = vunpack.c.l.b16 %v2591
    %v2632 = vunpack.c.l.b16 %v2592
    %v2633 = vunpack.c.l.b16 %v2593
    %v2634 = vunpack.c.l.b16 %v2594
    %v2635 = vunpack.c.l.b16 %v2595
    %v2636 = vunpack.c.l.b16 %v2596
    %v2637 = vunpack.c.l.b16 %v2597
    %v2638 = vunpack.c.l.b16 %v2598
    %v2639 = vunpack.c.l.b16 %v2599
    %v2640 = vunpack.c.l.b16 %v2600
    %v2641 = vunpack.c.l.b16 %v2601
    %v2642 = vunpack.c.l.b16 %v2602
    %v2643 = vunpack.c.l.b16 %v2603
    %v2644 = vunpack.c.l.b16 %v2604
    %v2645 = vpack.c.b16 %v2630, %v2629
    %v2646 = vpack.c.b16 %v2632, %v2631
    %v2647 = vpack.c.b16 %v2634, %v2633
    %v2648 = vpack.c.b16 %v2636, %v2635
    %v2649 = vpack.c.b16 %v2638, %v2637
    %v2650 = vpack.c.b16 %v2640, %v2639
    %v2651 = vpack.c.b16 %v2642, %v2641
    %v2652 = vpack.c.b16 %v2644, %v2643
    %2661 = vmatprep.subr.bf16.mxu0 0
    %2662 = vmatpush1.bf16.msra.mxu0 %v2645
    %2663 = vmatprep.subr.bf16.mxu0 0
    %2664 = vmatpush1.bf16.msra.mxu0 %v2646
    %2665 = vmatprep.subr.bf16.mxu0 0
    %2666 = vmatpush1.bf16.msra.mxu0 %v2647
    %2667 = vmatprep.subr.bf16.mxu0 0
    %2668 = vmatpush1.bf16.msra.mxu0 %v2648
    %2669 = vmatprep.subr.bf16.mxu0 0
    %2670 = vmatpush1.bf16.msra.mxu0 %v2649
    %2671 = vmatprep.subr.bf16.mxu0 0
    %2672 = vmatpush1.bf16.msra.mxu0 %v2650
    %2673 = vmatprep.subr.bf16.mxu0 0
    %2674 = vmatpush1.bf16.msra.mxu0 %v2651
    %2675 = vmatprep.subr.bf16.mxu0 0
    %2676 = vmatpush1.bf16.msra.mxu0 %v2652
    %2677 = vmatprep.subr.bf16.mxu0 0
    %2678 = vmatpush1.bf16.msra.mxu0 0
    %2679 = vmatprep.subr.bf16.mxu0 0
    %2680 = vmatpush1.bf16.msra.mxu0 0
    %2681 = vmatprep.subr.bf16.mxu0 0
    %2682 = vmatpush1.bf16.msra.mxu0 0
    %2683 = vmatprep.subr.bf16.mxu0 0
    %2684 = vmatpush1.bf16.msra.mxu0 0
    %2685 = vmatprep.subr.bf16.mxu0 0
    %2686 = vmatpush1.bf16.msra.mxu0 0
    %2687 = vmatprep.subr.bf16.mxu0 0
    %2688 = vmatpush1.bf16.msra.mxu0 0
    %2689 = vmatprep.subr.bf16.mxu0 0
    %2690 = vmatpush1.bf16.msra.mxu0 0
    %2691 = vmatprep.subr.bf16.mxu0 0
    %2692 = vmatpush1.bf16.msra.mxu0 0
    %2693 = vmatprep.mubr.bf16.mxu0 0
    %2694 = vmatmul.mubr.bf16.gmra.mrb[0].mxu0 %v2605
    %v2695 = vpop.f32.mrb[0].mxu0
    %v2696 = vadd.f32 %v2611, %v2695
    %v2697 = vpop.f32.mrb[0].mxu0
    %v2698 = vpop.f32.mrb[0].mxu0
    %v2699 = vpop.f32.mrb[0].mxu0
    %2700 = vdwg.mxu0
    %v2701 = vsub.f32 %v2203, %v2696
    %v2702 = vld [vmem:[#allocation25] sm:$0xf]
    %v2703 = vld [vmem:[#allocation25 + $0x4] sm:$0xf]
    %v2704 = vld [vmem:[#allocation25 + $0x8] sm:$0xf]
    %v2705 = vld [vmem:[#allocation25 + $0xc] sm:$0xf]
    %v2706 = vld [vmem:[#allocation25 + $0x10] sm:$0xf]
    %v2707 = vld [vmem:[#allocation25 + $0x14] sm:$0xf]
    %v2708 = vld [vmem:[#allocation25 + $0x18] sm:$0xf]
    %v2709 = vld [vmem:[#allocation25 + $0x1c] sm:$0xf]
    %v2710 = vld [vmem:[#allocation25 + $0x20] sm:$0xf]
    %v2711 = vld [vmem:[#allocation25 + $0x24] sm:$0xf]
    %v2712 = vld [vmem:[#allocation25 + $0x28] sm:$0xf]
    %v2713 = vld [vmem:[#allocation25 + $0x2c] sm:$0xf]
    %v2714 = vld [vmem:[#allocation25 + $0x30] sm:$0xf]
    %v2715 = vld [vmem:[#allocation25 + $0x34] sm:$0xf]
    %v2716 = vld [vmem:[#allocation25 + $0x38] sm:$0xf]
    %v2717 = vld [vmem:[#allocation25 + $0x3c] sm:$0xf]
    %v2718 = vpack.c.bf16 %v2701, %v2701
    %v2719 = vld [vmem:[#allocation26] sm:$0x1]
    %v2721 = vlaneseq
    %v2722 = vshrl.u32 %v2721, 7
    %v2723 = vsub.s32 0, %v2722
    %v2724 = vrot.slane %v2719, %v2723
    %v2742 = vunpack.c.l.b16 %v2702
    %v2743 = vunpack.c.l.b16 %v2703
    %v2744 = vunpack.c.l.b16 %v2704
    %v2745 = vunpack.c.l.b16 %v2705
    %v2746 = vunpack.c.l.b16 %v2706
    %v2747 = vunpack.c.l.b16 %v2707
    %v2748 = vunpack.c.l.b16 %v2708
    %v2749 = vunpack.c.l.b16 %v2709
    %v2750 = vunpack.c.l.b16 %v2710
    %v2751 = vunpack.c.l.b16 %v2711
    %v2752 = vunpack.c.l.b16 %v2712
    %v2753 = vunpack.c.l.b16 %v2713
    %v2754 = vunpack.c.l.b16 %v2714
    %v2755 = vunpack.c.l.b16 %v2715
    %v2756 = vunpack.c.l.b16 %v2716
    %v2757 = vunpack.c.l.b16 %v2717
    %v2758 = vpack.c.b16 %v2743, %v2742
    %v2759 = vpack.c.b16 %v2745, %v2744
    %v2760 = vpack.c.b16 %v2747, %v2746
    %v2761 = vpack.c.b16 %v2749, %v2748
    %v2762 = vpack.c.b16 %v2751, %v2750
    %v2763 = vpack.c.b16 %v2753, %v2752
    %v2764 = vpack.c.b16 %v2755, %v2754
    %v2765 = vpack.c.b16 %v2757, %v2756
    %2774 = vmatprep.subr.bf16.mxu0 0
    %2775 = vmatpush1.bf16.msra.mxu0 %v2758
    %2776 = vmatprep.subr.bf16.mxu0 0
    %2777 = vmatpush1.bf16.msra.mxu0 %v2759
    %2778 = vmatprep.subr.bf16.mxu0 0
    %2779 = vmatpush1.bf16.msra.mxu0 %v2760
    %2780 = vmatprep.subr.bf16.mxu0 0
    %2781 = vmatpush1.bf16.msra.mxu0 %v2761
    %2782 = vmatprep.subr.bf16.mxu0 0
    %2783 = vmatpush1.bf16.msra.mxu0 %v2762
    %2784 = vmatprep.subr.bf16.mxu0 0
    %2785 = vmatpush1.bf16.msra.mxu0 %v2763
    %2786 = vmatprep.subr.bf16.mxu0 0
    %2787 = vmatpush1.bf16.msra.mxu0 %v2764
    %2788 = vmatprep.subr.bf16.mxu0 0
    %2789 = vmatpush1.bf16.msra.mxu0 %v2765
    %2790 = vmatprep.subr.bf16.mxu0 0
    %2791 = vmatpush1.bf16.msra.mxu0 0
    %2792 = vmatprep.subr.bf16.mxu0 0
    %2793 = vmatpush1.bf16.msra.mxu0 0
    %2794 = vmatprep.subr.bf16.mxu0 0
    %2795 = vmatpush1.bf16.msra.mxu0 0
    %2796 = vmatprep.subr.bf16.mxu0 0
    %2797 = vmatpush1.bf16.msra.mxu0 0
    %2798 = vmatprep.subr.bf16.mxu0 0
    %2799 = vmatpush1.bf16.msra.mxu0 0
    %2800 = vmatprep.subr.bf16.mxu0 0
    %2801 = vmatpush1.bf16.msra.mxu0 0
    %2802 = vmatprep.subr.bf16.mxu0 0
    %2803 = vmatpush1.bf16.msra.mxu0 0
    %2804 = vmatprep.subr.bf16.mxu0 0
    %2805 = vmatpush1.bf16.msra.mxu0 0
    %2806 = vmatprep.mubr.bf16.mxu0 0
    %2807 = vmatmul.mubr.bf16.gmra.mrb[0].mxu0 %v2718
    %v2808 = vpop.f32.mrb[0].mxu0
    %v2809 = vadd.f32 %v2724, %v2808
    %v2810 = vpop.f32.mrb[0].mxu0
    %v2811 = vpop.f32.mrb[0].mxu0
    %v2812 = vpop.f32.mrb[0].mxu0
    %2813 = vdwg.mxu0
    %2814 = vst [vmem:[#allocation28] sm:$0xff] %v2809
    %2815 = vst [vmem:[#allocation29] sm:$0xff] %v679
    %2816 = vst [vmem:[#allocation31] sm:$0xff] %v790
    // Predicated region
    $region158: #{atomic_reconstruction_forward.1} parent=1 // pred_check
      _
    $region159: #{atomic_reconstruction_forward.1} parent=1 // pred_check_branch
      %2818 = sbr.rel (0) target = $region161
    $region160: #{atomic_reconstruction_forward.1} parent=1 // pred_region
      %s2820 = ssub.s32 128, 128
      %2821 = vsyncadd [#allocation4], %s2820
      %s2823 = sshll.u32 [#allocation28], 4
      %s2824 = int_to_ptr.vmem [resolvable:$true] %s2823
      %2826 = dma.vmem_to_hbm [thread:$0]  %s2824, 128, %s23, [#allocation4]
    $region161: #{atomic_reconstruction_forward.1} parent=1 // pred_fallthru
      _
    // Predicated region
    $region162: #{atomic_reconstruction_forward.1} parent=1 // pred_check
      _
    $region163: #{atomic_reconstruction_forward.1} parent=1 // pred_check_branch
      %2828 = sbr.rel (0) target = $region165
    $region164: #{atomic_reconstruction_forward.1} parent=1 // pred_region
      %s2830 = ssub.s32 128, 128
      %2831 = vsyncadd [#allocation30], %s2830
      %s2833 = sshll.u32 [#allocation29], 4
      %s2834 = int_to_ptr.vmem [resolvable:$true] %s2833
      %2836 = dma.vmem_to_hbm [thread:$0]  %s2834, 128, %s24, [#allocation30]
    $region165: #{atomic_reconstruction_forward.1} parent=1 // pred_fallthru
      _
    // Predicated region
    $region166: #{atomic_reconstruction_forward.1} parent=1 // pred_check
      _
    $region167: #{atomic_reconstruction_forward.1} parent=1 // pred_check_branch
      %2838 = sbr.rel (0) target = $region169
    $region168: #{atomic_reconstruction_forward.1} parent=1 // pred_region
      %s2840 = ssub.s32 128, 128
      %2841 = vsyncadd [#allocation30], %s2840
      %s2843 = sshll.u32 [#allocation31], 4
      %s2844 = int_to_ptr.vmem [resolvable:$true] %s2843
      %2846 = dma.vmem_to_hbm [thread:$0]  %s2844, 128, %s25, [#allocation30]
    $region169: #{atomic_reconstruction_forward.1} parent=1 // pred_fallthru
      _
    // Predicated region
    $region170: #{atomic_reconstruction_forward.1} parent=1 // pred_check
      _
    $region171: #{atomic_reconstruction_forward.1} parent=1 // pred_check_branch
      %2848 = sbr.rel (0) target = $region173
    $region172: #{atomic_reconstruction_forward.1} parent=1 // pred_region
      %2849 = dma.done [#allocation4], 128
    $region173: #{atomic_reconstruction_forward.1} parent=1 // pred_fallthru
      _
    // Predicated region
    $region174: #{atomic_reconstruction_forward.1} parent=1 // pred_check
      _
    $region175: #{atomic_reconstruction_forward.1} parent=1 // pred_check_branch
      %2851 = sbr.rel (0) target = $region177
    $region176: #{atomic_reconstruction_forward.1} parent=1 // pred_region
      %2852 = dma.done [#allocation30], 128
    $region177: #{atomic_reconstruction_forward.1} parent=1 // pred_fallthru
      _
    // Predicated region
    $region178: #{atomic_reconstruction_forward.1} parent=1 // pred_check
      _
    $region179: #{atomic_reconstruction_forward.1} parent=1 // pred_check_branch
      %2854 = sbr.rel (0) target = $region181
    $region180: #{atomic_reconstruction_forward.1} parent=1 // pred_region
      %2855 = dma.done [#allocation30], 128
    $region181: #{atomic_reconstruction_forward.1} parent=1 // pred_fallthru
      _
    %2856 = vsyncpa [#allocation3], 1
    %2857 = vsyncpa [#allocation6], 1
    %2858 = vsyncpa [#allocation9], 1
    %2859 = vsyncpa [#allocation12], 1
    %2860 = vsyncpa [#allocation15], 1
    %2861 = vsyncpa [#allocation18], 1
    %2862 = vsyncpa [#allocation21], 1
    %2863 = vsyncpa [#allocation24], 1
    %2864 = vsyncpa [#allocation27], 1
    %2865 = vsyncpa [#allocation4], 1
    %2866 = vsyncpa [#allocation30], 1

</llo_original>
